<compile_context>
chip_gen: v7x
topology: tpu7x:2x2x1
jax: 0.10.0
libtpu: 0.0.40
codegen_flags: <defaults>
</compile_context>

<pallas_src>
import math

import jax
import jax.numpy as jnp
import numpy as np
from jax import lax
from jax.experimental import pallas as pl
from jax.experimental.pallas import tpu as pltpu


# ----------------------------- configuration ---------------------------------
N_NODES = 32
N_EDGES = 64
N_NODE_FEATURES = 8
N_EDGE_ATTRIBUTES = 4
N_CLASSES = 2
HIDDEN_SIZE = 16
HEADS = 5
HEAD_SIZE = 12
HC = HEADS * HEAD_SIZE            # 60 (real model width)

# Padded geometry: 8 heads x 16 channels = 128 = one full vreg lane span.
HEADS_P = 8
HEAD_SIZE_P = 16
HCP = HEADS_P * HEAD_SIZE_P       # 128
FE_P = 8                          # edge-attr features padded 4 -> 8
WIDE = 4 * HCP                    # q|k|v|skip concatenated projection width (512)

INV_SQRT_C = 1.0 / math.sqrt(HEAD_SIZE)   # folded into wq/bq at pack time

# real channel (h, c) -> padded channel h*HEAD_SIZE_P + c
_PAD_IDX = (np.arange(HEADS)[:, None] * HEAD_SIZE_P
            + np.arange(HEAD_SIZE)[None, :]).reshape(-1)

# conv-weights blob row layout (width = WIDE = 512)
R_W1 = 0                          # [8, 512]    conv1 q|k|v|skip weights
R_B1 = 8                          # [1, 512]    conv1 biases
R_WE1 = 16                        # [8, 128]    conv1 edge embedding (cols 0:128)
R_W2 = 24                         # [128, 512]  conv2 q|k|v|skip weights
R_B2 = R_W2 + HCP                 # 152
R_WE2 = 160                       # [8, 128]    conv2 edge embedding
CONV_BLOB_ROWS = 168

# MLP blob row layout (width = HIDDEN_SIZE = 16)
R_L1W = 0                         # [128, 16]
R_L1B = 128                       # [1, 16]
R_L2W = 136                       # [16, 16]   (cols >= N_CLASSES zero)
R_L2B = 152                       # [1, 16]
MLP_BLOB_ROWS = 160


# ----------------------------- fused Pallas kernel ----------------------------
def _fused_model_kernel(x_ref, ea_ref, ei_ref, wc_ref, wm_ref, o_ref):
    """conv1 -> relu -> conv2 -> relu -> linear1 -> relu -> linear2 (logits)."""
    f32 = jnp.float32
    n = x_ref.shape[0]
    e = ei_ref.shape[0]

    src = ei_ref[:, 0:1]                                            # [E, 1] int32
    dst = ei_ref[:, 1:2]                                            # [E, 1] int32

    # One-hot incidence matrices, built in-kernel (cheap VPU iota/compare work).
    node_iota = lax.broadcasted_iota(jnp.int32, (e, n), 1)
    src_oh = (src == node_iota).astype(f32)                         # [E, N] gather k/v[src]
    dstT_oh = (dst == node_iota).astype(f32)                        # [E, N] gather q[dst] / scatter

    # Same-destination edge/edge matrix.  Depends only on dst -> off the critical
    # path; built once, reused by both conv layers.  Collapses the old two-step
    # denominator (scatter-to-node + gather-to-edge) into a single matmul.
    same_dst = lax.dot_general(dstT_oh, dstT_oh, (((1,), (1,)), ((), ())),
                               preferred_element_type=f32)          # [E, E]

    # Per-head channel pooling matrix: pool[c, h] = 1 iff channel c belongs to head h.
    c_idx = lax.broadcasted_iota(jnp.int32, (HCP, HEADS_P), 0)
    h_idx = lax.broadcasted_iota(jnp.int32, (HCP, HEADS_P), 1)
    pool = ((c_idx >= h_idx * HEAD_SIZE_P)
            & (c_idx < (h_idx + 1) * HEAD_SIZE_P)).astype(f32)      # [HCP, H_P]

    edge_contract = (((0,), (0,)), ((), ()))   # A^T @ B : scatter-add over edge axis
    head_bcast = (((1,), (1,)), ((), ()))      # alpha @ pool^T : head -> channel bcast

    def conv_layer(x, w_all, b_all, we):
        # Single wide projection [q | k | v | skip] -> [N, 4*HCP]; all splits 128-aligned.
        proj = jnp.dot(x, w_all, preferred_element_type=f32) + b_all
        q = proj[:, :HCP]
        kv = proj[:, HCP:3 * HCP]
        skip = proj[:, 3 * HCP:]

        eemb = jnp.dot(ea_ref[...], we, preferred_element_type=f32)  # [E, 128]

        # Per-edge gathers as one-hot matmuls.
        q_e = jnp.dot(dstT_oh, q, preferred_element_type=f32)        # q[dst[e]]
        kv_e = jnp.dot(src_oh, kv, preferred_element_type=f32)       # [k|v][src[e]]
        k_e = kv_e[:, :HCP] + eemb
        v_e = kv_e[:, HCP:] + eemb

        # Attention logits per (edge, head).  1/sqrt(head_size) is folded into wq/bq.
        s = jnp.dot(q_e * k_e, pool, preferred_element_type=f32)     # [E, H_P]
        # Global per-head max subtraction: softmax value unchanged, exp can't overflow.
        s = s - jnp.max(s, axis=0, keepdims=True)
        es = jnp.exp(s)

        # Segment softmax over edges sharing a destination node (single matmul).
        denom_e = jnp.dot(same_dst, es, preferred_element_type=f32)  # [E, H_P], > 0
        alpha = es * pl.reciprocal(jnp.maximum(denom_e, 1e-30), approx=True)

        # Broadcast per-head alpha to channels, weight messages, scatter-add to dst.
        alpha_full = lax.dot_general(alpha, pool, head_bcast,
                                     preferred_element_type=f32)     # [E, 128]
        msg = alpha_full * v_e
        aggr = lax.dot_general(dstT_oh, msg, edge_contract,
                               preferred_element_type=f32)           # [N, 128]
        # Nodes with no incoming edges get aggr == 0 (matches PyG); output = relu(skip).
        return jnp.maximum(aggr + skip, 0.0)

    # Static-offset slices of the packed weight blobs (free).
    w1 = wc_ref[R_W1:R_W1 + N_NODE_FEATURES, :]
    b1 = wc_ref[R_B1:R_B1 + 1, :]
    we1 = wc_ref[R_WE1:R_WE1 + FE_P, :HCP]
    w2 = wc_ref[R_W2:R_W2 + HCP, :]
    b2 = wc_ref[R_B2:R_B2 + 1, :]
    we2 = wc_ref[R_WE2:R_WE2 + FE_P, :HCP]

    h = conv_layer(x_ref[...], w1, b1, we1)      # conv1 + relu   [N, 128]
    h = conv_layer(h, w2, b2, we2)               # conv2 + relu   [N, 128]

    wl1 = wm_ref[R_L1W:R_L1W + HCP, :]
    bl1 = wm_ref[R_L1B:R_L1B + 1, :]
    wl2 = wm_ref[R_L2W:R_L2W + HIDDEN_SIZE, :]
    bl2 = wm_ref[R_L2B:R_L2B + 1, :]

    hid = jnp.maximum(jnp.dot(h, wl1, preferred_element_type=f32) + bl1, 0.0)
    logits = jnp.dot(hid, wl2, preferred_element_type=f32) + bl2      # [N, 16]
    o_ref[...] = logits[:, :N_CLASSES]


# ----------------------------- wrapper -----------------------------------------
def model_attention_multi_head(x, edge_index, edge_attr, packed):
    n = x.shape[0]
    ei = jnp.transpose(edge_index).astype(jnp.int32)                  # [E, 2] (src, dst)
    ea_p = jnp.pad(edge_attr.astype(jnp.float32),
                   ((0, 0), (0, FE_P - edge_attr.shape[1])))          # [E, 8]
    args = (x.astype(jnp.float32), ea_p, ei, packed["wconv"], packed["wmlp"])
    # TODO(synk): for many-graph workloads add a leading ("parallel",) grid axis over
    # graphs (uses both v7x TensorCores) and tile edges over an "arbitrary" axis once
    # the [E,N]/[E,E] one-hot matrices outgrow VMEM at realistic graph sizes.
    return pl.pallas_call(
        _fused_model_kernel,
        out_shape=jax.ShapeDtypeStruct((n, N_CLASSES), jnp.float32),
        in_specs=[pl.BlockSpec(memory_space=pltpu.MemorySpace.VMEM) for _ in args],
        out_specs=pl.BlockSpec(memory_space=pltpu.MemorySpace.VMEM),
    )(*args)


# ----------------------------- parameter init ----------------------------------
def _linear_init(key, fan_in, fan_out, bias=True):
    kw, kb = jax.random.split(key)
    bound = 1.0 / math.sqrt(fan_in)
    w = jax.random.uniform(kw, (fan_in, fan_out), jnp.float32, -bound, bound)
    b = (jax.random.uniform(kb, (1, fan_out), jnp.float32, -bound, bound)
         if bias else None)
    return w, b


def init_conv_params(key, in_dim, edge_dim, heads, head_size):
    hc = heads * head_size
    ks = jax.random.split(key, 5)
    wq, bq = _linear_init(ks[0], in_dim, hc)
    wk, bk = _linear_init(ks[1], in_dim, hc)
    wv, bv = _linear_init(ks[2], in_dim, hc)
    we, _ = _linear_init(ks[3], edge_dim, hc, bias=False)
    wskip, bskip = _linear_init(ks[4], in_dim, hc)
    return dict(wq=wq, bq=bq, wk=wk, bk=bk, wv=wv, bv=bv,
                we=we, wskip=wskip, bskip=bskip)


def init_params(key):
    k1, k2, k3, k4 = jax.random.split(key, 4)
    conv1 = init_conv_params(k1, N_NODE_FEATURES, N_EDGE_ATTRIBUTES, HEADS, HEAD_SIZE)
    conv2 = init_conv_params(k2, HC, N_EDGE_ATTRIBUTES, HEADS, HEAD_SIZE)
    w1, b1 = _linear_init(k3, HC, HIDDEN_SIZE)
    w2, b2 = _linear_init(k4, HIDDEN_SIZE, N_CLASSES)
    return dict(conv1=conv1, conv2=conv2, lin=dict(w1=w1, b1=b1, w2=w2, b2=b2))


# ----------------------------- host-side packing (numpy, one-time) -------------
def _pad_cols(w):
    """[F, HC] -> [F, HCP]: scatter real channels to padded head-major positions."""
    w = np.asarray(w, np.float32)
    out = np.zeros((w.shape[0], HCP), np.float32)
    out[:, _PAD_IDX] = w
    return out


def _pad_rows(w):
    """[HC, F] -> [HCP, F]: same scatter along the input-channel axis."""
    w = np.asarray(w, np.float32)
    out = np.zeros((HCP, w.shape[1]), np.float32)
    out[_PAD_IDX, :] = w
    return out


def _pack_conv(p, pad_in_rows):
    def rows(w):
        w = np.asarray(w, np.float32)
        return _pad_rows(w) if pad_in_rows else w
    # Fold 1/sqrt(head_size) into the query projection (value/skip untouched).
    wq = _pad_cols(rows(p["wq"])) * INV_SQRT_C
    wk = _pad_cols(rows(p["wk"]))
    wv = _pad_cols(rows(p["wv"]))
    wskip = _pad_cols(rows(p["wskip"]))
    bq = _pad_cols(p["bq"]) * INV_SQRT_C
    bk = _pad_cols(p["bk"])
    bv = _pad_cols(p["bv"])
    bskip = _pad_cols(p["bskip"])
    we = _pad_cols(p["we"])                                        # [Fe, 128]
    we = np.pad(we, ((0, FE_P - we.shape[0]), (0, 0)))             # [8, 128]
    w_all = np.concatenate([wq, wk, wv, wskip], axis=1)            # [fan_in, 512]
    b_all = np.concatenate([bq, bk, bv, bskip], axis=1)            # [1, 512]
    return w_all, b_all, we


def pack_params(params):
    w_all1, b_all1, we1 = _pack_conv(params["conv1"], pad_in_rows=False)
    w_all2, b_all2, we2 = _pack_conv(params["conv2"], pad_in_rows=True)

    wc = np.zeros((CONV_BLOB_ROWS, WIDE), np.float32)
    wc[R_W1:R_W1 + N_NODE_FEATURES, :] = w_all1
    wc[R_B1, :] = b_all1[0]
    wc[R_WE1:R_WE1 + FE_P, :HCP] = we1
    wc[R_W2:R_W2 + HCP, :] = w_all2
    wc[R_B2, :] = b_all2[0]
    wc[R_WE2:R_WE2 + FE_P, :HCP] = we2

    wl1 = _pad_rows(params["lin"]["w1"])                           # [128, 16]
    wm = np.zeros((MLP_BLOB_ROWS, HIDDEN_SIZE), np.float32)
    wm[R_L1W:R_L1W + HCP, :] = wl1
    wm[R_L1B, :] = np.asarray(params["lin"]["b1"], np.float32)[0]
    wm[R_L2W:R_L2W + HIDDEN_SIZE, :N_CLASSES] = np.asarray(params["lin"]["w2"], np.float32)
    wm[R_L2B, :N_CLASSES] = np.asarray(params["lin"]["b2"], np.float32)[0]

    return dict(wconv=jnp.asarray(wc), wmlp=jnp.asarray(wm))


# ----------------------------- pure-JAX reference ------------------------------
def _transformer_conv_ref(x, edge_index, edge_attr, p, heads, head_size):
    n = x.shape[0]
    src, dst = edge_index[0], edge_index[1]
    H, C = heads, head_size
    q = (x @ p["wq"] + p["bq"]).reshape(n, H, C)
    k = (x @ p["wk"] + p["bk"]).reshape(n, H, C)
    v = (x @ p["wv"] + p["bv"]).reshape(n, H, C)
    e = (edge_attr @ p["we"]).reshape(-1, H, C)
    q_i, k_j, v_j = q[dst], k[src] + e, v[src] + e
    alpha = (q_i * k_j).sum(-1) / math.sqrt(C)                     # [E, H]
    amax = jax.ops.segment_max(alpha, dst, num_segments=n)
    alpha = jnp.exp(alpha - amax[dst])
    denom = jax.ops.segment_sum(alpha, dst, num_segments=n)
    alpha = alpha / denom[dst]
    msg = v_j * alpha[..., None]
    aggr = jax.ops.segment_sum(msg, dst, num_segments=n).reshape(n, H * C)
    return jax.nn.relu(aggr + x @ p["wskip"] + p["bskip"])


def model_ref(x, edge_index, edge_attr, params):
    h = _transformer_conv_ref(x, edge_index, edge_attr, params["conv1"], HEADS, HEAD_SIZE)
    h = _transformer_conv_ref(h, edge_index, edge_attr, params["conv2"], HEADS, HEAD_SIZE)
    h = jax.nn.relu(h @ params["lin"]["w1"] + params["lin"]["b1"])
    return h @ params["lin"]["w2"] + params["lin"]["b2"]


# ----------------------------- main --------------------------------------------
if __name__ == "__main__":
    key = jax.random.PRNGKey(0)
    k_x, k_src, k_dst, k_ea, k_p = jax.random.split(key, 5)

    x = jax.random.normal(k_x, (N_NODES, N_NODE_FEATURES), jnp.float32)
    src = jax.random.randint(k_src, (N_EDGES,), 0, N_NODES, jnp.int32)
    dst = jax.random.randint(k_dst, (N_EDGES,), 0, N_NODES, jnp.int32)
    edge_index = jnp.stack([src, dst], axis=0)                     # [2, E]
    edge_attr = jax.random.normal(k_ea, (N_EDGES, N_EDGE_ATTRIBUTES), jnp.float32)
    params = init_params(k_p)
    packed = pack_params(params)   # packed/padded once, host-side, outside the jit

    fwd = jax.jit(model_attention_multi_head)
    logits = fwd(x, edge_index, edge_attr, packed)
    jax.block_until_ready(logits)
    assert logits.shape == (N_NODES, N_CLASSES)

    ref = model_ref(x, edge_index, edge_attr, params)
    # Tolerance accounts for pl.reciprocal(approx=True) through two stacked softmaxes.
    np.testing.assert_allclose(np.asarray(logits), np.asarray(ref),
                               rtol=5e-3, atol=5e-3)

    print("KERNEL_OK")
</pallas_src>

<mosaic_0001>
module attributes {stable_mosaic.version = 11 : i64} {
  func.func @_fused_model_kernel(%arg0: memref<32x8xf32, #tpu.memory_space<vmem>>, %arg1: memref<64x8xf32, #tpu.memory_space<vmem>>, %arg2: memref<64x2xi32, #tpu.memory_space<vmem>>, %arg3: memref<168x512xf32, #tpu.memory_space<vmem>>, %arg4: memref<160x16xf32, #tpu.memory_space<vmem>>, %arg5: memref<32x2xf32, #tpu.memory_space<vmem>>) attributes {dimension_semantics = [], scalar_prefetch = 0 : i64, scratch_operands = 0 : i64, tpu.core_type = #tpu.core_type<tc>} {
    %c0 = arith.constant 0 : index
    %c0_0 = arith.constant 0 : index
    %0 = vector.load %arg2[%c0, %c0_0] : memref<64x2xi32, #tpu.memory_space<vmem>>, vector<64x1xi32>
    %c0_1 = arith.constant 0 : index
    %c1 = arith.constant 1 : index
    %1 = vector.load %arg2[%c0_1, %c1] : memref<64x2xi32, #tpu.memory_space<vmem>>, vector<64x1xi32>
    %2 = tpu.iota {dimensions = array<i32: 1>} : vector<64x32xi32>
    %3 = vector.broadcast %0 : vector<64x1xi32> to vector<64x32xi32>
    %4 = arith.cmpi eq, %3, %2 : vector<64x32xi32>
    %5 = arith.extui %4 : vector<64x32xi1> to vector<64x32xi32>
    %6 = arith.sitofp %5 : vector<64x32xi32> to vector<64x32xf32>
    %7 = vector.broadcast %1 : vector<64x1xi32> to vector<64x32xi32>
    %8 = arith.cmpi eq, %7, %2 : vector<64x32xi32>
    %9 = arith.extui %8 : vector<64x32xi1> to vector<64x32xi32>
    %10 = arith.sitofp %9 : vector<64x32xi32> to vector<64x32xf32>
    %cst = arith.constant dense<0.000000e+00> : vector<64x64xf32>
    %11 = tpu.matmul %10, %10, %cst {dimension_numbers = #tpu.dot_dimension_numbers<[1], [1], [0], [0], [0, 0, 1, 0], [], []>} : vector<64x32xf32>, vector<64x32xf32>, vector<64x64xf32> -> vector<64x64xf32>
    %12 = tpu.iota {dimensions = array<i32: 0>} : vector<128x8xi32>
    %13 = tpu.iota {dimensions = array<i32: 1>} : vector<128x8xi32>
    %c16_i32 = arith.constant 16 : i32
    %14 = vector.broadcast %c16_i32 : i32 to vector<128x8xi32>
    %15 = arith.muli %13, %14 : vector<128x8xi32>
    %16 = arith.cmpi sge, %12, %15 : vector<128x8xi32>
    %c1_i32 = arith.constant 1 : i32
    %17 = vector.broadcast %c1_i32 : i32 to vector<128x8xi32>
    %18 = arith.addi %13, %17 : vector<128x8xi32>
    %c16_i32_2 = arith.constant 16 : i32
    %19 = vector.broadcast %c16_i32_2 : i32 to vector<128x8xi32>
    %20 = arith.muli %18, %19 : vector<128x8xi32>
    %21 = arith.cmpi slt, %12, %20 : vector<128x8xi32>
    %22 = arith.andi %16, %21 : vector<128x8xi1>
    %23 = arith.extui %22 : vector<128x8xi1> to vector<128x8xi32>
    %24 = arith.sitofp %23 : vector<128x8xi32> to vector<128x8xf32>
    %c0_3 = arith.constant 0 : index
    %c0_4 = arith.constant 0 : index
    %25 = vector.load %arg3[%c0_3, %c0_4] : memref<168x512xf32, #tpu.memory_space<vmem>>, vector<8x512xf32>
    %c8 = arith.constant 8 : index
    %c0_5 = arith.constant 0 : index
    %26 = vector.load %arg3[%c8, %c0_5] : memref<168x512xf32, #tpu.memory_space<vmem>>, vector<1x512xf32>
    %c16 = arith.constant 16 : index
    %c0_6 = arith.constant 0 : index
    %27 = vector.load %arg3[%c16, %c0_6] : memref<168x512xf32, #tpu.memory_space<vmem>>, vector<8x128xf32>
    %c24 = arith.constant 24 : index
    %c0_7 = arith.constant 0 : index
    %28 = vector.load %arg3[%c24, %c0_7] : memref<168x512xf32, #tpu.memory_space<vmem>>, vector<128x512xf32>
    %c152 = arith.constant 152 : index
    %c0_8 = arith.constant 0 : index
    %29 = vector.load %arg3[%c152, %c0_8] : memref<168x512xf32, #tpu.memory_space<vmem>>, vector<1x512xf32>
    %c160 = arith.constant 160 : index
    %c0_9 = arith.constant 0 : index
    %30 = vector.load %arg3[%c160, %c0_9] : memref<168x512xf32, #tpu.memory_space<vmem>>, vector<8x128xf32>
    %c0_10 = arith.constant 0 : index
    %c0_11 = arith.constant 0 : index
    %31 = vector.load %arg0[%c0_10, %c0_11] : memref<32x8xf32, #tpu.memory_space<vmem>>, vector<32x8xf32>
    %cst_12 = arith.constant dense<0.000000e+00> : vector<32x512xf32>
    %32 = tpu.matmul %31, %25, %cst_12 {dimension_numbers = #tpu.dot_dimension_numbers<[1], [0], [0], [1], [0, 0, 1, 1], [], []>} : vector<32x8xf32>, vector<8x512xf32>, vector<32x512xf32> -> vector<32x512xf32>
    %33 = vector.broadcast %26 : vector<1x512xf32> to vector<32x512xf32>
    %34 = arith.addf %32, %33 : vector<32x512xf32>
    %35 = vector.extract_strided_slice %34 {offsets = [0, 0], sizes = [32, 128], strides = [1, 1]} : vector<32x512xf32> to vector<32x128xf32>
    %36 = vector.extract_strided_slice %34 {offsets = [0, 128], sizes = [32, 256], strides = [1, 1]} : vector<32x512xf32> to vector<32x256xf32>
    %37 = vector.extract_strided_slice %34 {offsets = [0, 384], sizes = [32, 128], strides = [1, 1]} : vector<32x512xf32> to vector<32x128xf32>
    %c0_13 = arith.constant 0 : index
    %c0_14 = arith.constant 0 : index
    %38 = vector.load %arg1[%c0_13, %c0_14] : memref<64x8xf32, #tpu.memory_space<vmem>>, vector<64x8xf32>
    %cst_15 = arith.constant dense<0.000000e+00> : vector<64x128xf32>
    %39 = tpu.matmul %38, %27, %cst_15 {dimension_numbers = #tpu.dot_dimension_numbers<[1], [0], [0], [1], [0, 0, 1, 1], [], []>} : vector<64x8xf32>, vector<8x128xf32>, vector<64x128xf32> -> vector<64x128xf32>
    %cst_16 = arith.constant dense<0.000000e+00> : vector<64x128xf32>
    %40 = tpu.matmul %10, %35, %cst_16 {dimension_numbers = #tpu.dot_dimension_numbers<[1], [0], [0], [1], [0, 0, 1, 1], [], []>} : vector<64x32xf32>, vector<32x128xf32>, vector<64x128xf32> -> vector<64x128xf32>
    %cst_17 = arith.constant dense<0.000000e+00> : vector<64x256xf32>
    %41 = tpu.matmul %6, %36, %cst_17 {dimension_numbers = #tpu.dot_dimension_numbers<[1], [0], [0], [1], [0, 0, 1, 1], [], []>} : vector<64x32xf32>, vector<32x256xf32>, vector<64x256xf32> -> vector<64x256xf32>
    %42 = vector.extract_strided_slice %41 {offsets = [0, 0], sizes = [64, 128], strides = [1, 1]} : vector<64x256xf32> to vector<64x128xf32>
    %43 = arith.addf %42, %39 : vector<64x128xf32>
    %44 = vector.extract_strided_slice %41 {offsets = [0, 128], sizes = [64, 128], strides = [1, 1]} : vector<64x256xf32> to vector<64x128xf32>
    %45 = arith.addf %44, %39 : vector<64x128xf32>
    %46 = arith.mulf %40, %43 : vector<64x128xf32>
    %cst_18 = arith.constant dense<0.000000e+00> : vector<64x8xf32>
    %47 = tpu.matmul %46, %24, %cst_18 {dimension_numbers = #tpu.dot_dimension_numbers<[1], [0], [0], [1], [0, 0, 1, 1], [], []>} : vector<64x128xf32>, vector<128x8xf32>, vector<64x8xf32> -> vector<64x8xf32>
    %cst_19 = arith.constant dense<0xFF800000> : vector<8xf32>
    %48 = vector.multi_reduction <maximumf>, %47, %cst_19 [0] : vector<64x8xf32> to vector<8xf32>
    %49 = vector.shape_cast %48 : vector<8xf32> to vector<1x8xf32>
    %50 = vector.broadcast %49 : vector<1x8xf32> to vector<64x8xf32>
    %51 = arith.subf %47, %50 : vector<64x8xf32>
    %52 = math.exp %51 : vector<64x8xf32>
    %cst_20 = arith.constant dense<0.000000e+00> : vector<64x8xf32>
    %53 = tpu.matmul %11, %52, %cst_20 {dimension_numbers = #tpu.dot_dimension_numbers<[1], [0], [0], [1], [0, 0, 1, 1], [], []>} : vector<64x64xf32>, vector<64x8xf32>, vector<64x8xf32> -> vector<64x8xf32>
    %cst_21 = arith.constant 1.000000e-30 : f32
    %54 = vector.broadcast %cst_21 : f32 to vector<64x8xf32>
    %55 = arith.maximumf %53, %54 : vector<64x8xf32>
    %56 = tpu.reciprocal %55 {approx = true} : vector<64x8xf32> -> vector<64x8xf32>
    %57 = arith.mulf %52, %56 : vector<64x8xf32>
    %cst_22 = arith.constant dense<0.000000e+00> : vector<64x128xf32>
    %58 = tpu.matmul %57, %24, %cst_22 {dimension_numbers = #tpu.dot_dimension_numbers<[1], [1], [0], [0], [0, 0, 1, 0], [], []>} : vector<64x8xf32>, vector<128x8xf32>, vector<64x128xf32> -> vector<64x128xf32>
    %59 = arith.mulf %58, %45 : vector<64x128xf32>
    %cst_23 = arith.constant dense<0.000000e+00> : vector<32x128xf32>
    %60 = tpu.matmul %10, %59, %cst_23 {dimension_numbers = #tpu.dot_dimension_numbers<[0], [0], [1], [1], [0, 1, 1, 1], [], []>} : vector<64x32xf32>, vector<64x128xf32>, vector<32x128xf32> -> vector<32x128xf32>
    %61 = arith.addf %60, %37 : vector<32x128xf32>
    %cst_24 = arith.constant 0.000000e+00 : f32
    %62 = vector.broadcast %cst_24 : f32 to vector<32x128xf32>
    %63 = arith.maximumf %61, %62 : vector<32x128xf32>
    %cst_25 = arith.constant dense<0.000000e+00> : vector<32x512xf32>
    %64 = tpu.matmul %63, %28, %cst_25 {dimension_numbers = #tpu.dot_dimension_numbers<[1], [0], [0], [1], [0, 0, 1, 1], [], []>} : vector<32x128xf32>, vector<128x512xf32>, vector<32x512xf32> -> vector<32x512xf32>
    %65 = vector.broadcast %29 : vector<1x512xf32> to vector<32x512xf32>
    %66 = arith.addf %64, %65 : vector<32x512xf32>
    %67 = vector.extract_strided_slice %66 {offsets = [0, 0], sizes = [32, 128], strides = [1, 1]} : vector<32x512xf32> to vector<32x128xf32>
    %68 = vector.extract_strided_slice %66 {offsets = [0, 128], sizes = [32, 256], strides = [1, 1]} : vector<32x512xf32> to vector<32x256xf32>
    %69 = vector.extract_strided_slice %66 {offsets = [0, 384], sizes = [32, 128], strides = [1, 1]} : vector<32x512xf32> to vector<32x128xf32>
    %c0_26 = arith.constant 0 : index
    %c0_27 = arith.constant 0 : index
    %70 = vector.load %arg1[%c0_26, %c0_27] : memref<64x8xf32, #tpu.memory_space<vmem>>, vector<64x8xf32>
    %cst_28 = arith.constant dense<0.000000e+00> : vector<64x128xf32>
    %71 = tpu.matmul %70, %30, %cst_28 {dimension_numbers = #tpu.dot_dimension_numbers<[1], [0], [0], [1], [0, 0, 1, 1], [], []>} : vector<64x8xf32>, vector<8x128xf32>, vector<64x128xf32> -> vector<64x128xf32>
    %cst_29 = arith.constant dense<0.000000e+00> : vector<64x128xf32>
    %72 = tpu.matmul %10, %67, %cst_29 {dimension_numbers = #tpu.dot_dimension_numbers<[1], [0], [0], [1], [0, 0, 1, 1], [], []>} : vector<64x32xf32>, vector<32x128xf32>, vector<64x128xf32> -> vector<64x128xf32>
    %cst_30 = arith.constant dense<0.000000e+00> : vector<64x256xf32>
    %73 = tpu.matmul %6, %68, %cst_30 {dimension_numbers = #tpu.dot_dimension_numbers<[1], [0], [0], [1], [0, 0, 1, 1], [], []>} : vector<64x32xf32>, vector<32x256xf32>, vector<64x256xf32> -> vector<64x256xf32>
    %74 = vector.extract_strided_slice %73 {offsets = [0, 0], sizes = [64, 128], strides = [1, 1]} : vector<64x256xf32> to vector<64x128xf32>
    %75 = arith.addf %74, %71 : vector<64x128xf32>
    %76 = vector.extract_strided_slice %73 {offsets = [0, 128], sizes = [64, 128], strides = [1, 1]} : vector<64x256xf32> to vector<64x128xf32>
    %77 = arith.addf %76, %71 : vector<64x128xf32>
    %78 = arith.mulf %72, %75 : vector<64x128xf32>
    %cst_31 = arith.constant dense<0.000000e+00> : vector<64x8xf32>
    %79 = tpu.matmul %78, %24, %cst_31 {dimension_numbers = #tpu.dot_dimension_numbers<[1], [0], [0], [1], [0, 0, 1, 1], [], []>} : vector<64x128xf32>, vector<128x8xf32>, vector<64x8xf32> -> vector<64x8xf32>
    %cst_32 = arith.constant dense<0xFF800000> : vector<8xf32>
    %80 = vector.multi_reduction <maximumf>, %79, %cst_32 [0] : vector<64x8xf32> to vector<8xf32>
    %81 = vector.shape_cast %80 : vector<8xf32> to vector<1x8xf32>
    %82 = vector.broadcast %81 : vector<1x8xf32> to vector<64x8xf32>
    %83 = arith.subf %79, %82 : vector<64x8xf32>
    %84 = math.exp %83 : vector<64x8xf32>
    %cst_33 = arith.constant dense<0.000000e+00> : vector<64x8xf32>
    %85 = tpu.matmul %11, %84, %cst_33 {dimension_numbers = #tpu.dot_dimension_numbers<[1], [0], [0], [1], [0, 0, 1, 1], [], []>} : vector<64x64xf32>, vector<64x8xf32>, vector<64x8xf32> -> vector<64x8xf32>
    %cst_34 = arith.constant 1.000000e-30 : f32
    %86 = vector.broadcast %cst_34 : f32 to vector<64x8xf32>
    %87 = arith.maximumf %85, %86 : vector<64x8xf32>
    %88 = tpu.reciprocal %87 {approx = true} : vector<64x8xf32> -> vector<64x8xf32>
    %89 = arith.mulf %84, %88 : vector<64x8xf32>
    %cst_35 = arith.constant dense<0.000000e+00> : vector<64x128xf32>
    %90 = tpu.matmul %89, %24, %cst_35 {dimension_numbers = #tpu.dot_dimension_numbers<[1], [1], [0], [0], [0, 0, 1, 0], [], []>} : vector<64x8xf32>, vector<128x8xf32>, vector<64x128xf32> -> vector<64x128xf32>
    %91 = arith.mulf %90, %77 : vector<64x128xf32>
    %cst_36 = arith.constant dense<0.000000e+00> : vector<32x128xf32>
    %92 = tpu.matmul %10, %91, %cst_36 {dimension_numbers = #tpu.dot_dimension_numbers<[0], [0], [1], [1], [0, 1, 1, 1], [], []>} : vector<64x32xf32>, vector<64x128xf32>, vector<32x128xf32> -> vector<32x128xf32>
    %93 = arith.addf %92, %69 : vector<32x128xf32>
    %cst_37 = arith.constant 0.000000e+00 : f32
    %94 = vector.broadcast %cst_37 : f32 to vector<32x128xf32>
    %95 = arith.maximumf %93, %94 : vector<32x128xf32>
    %c0_38 = arith.constant 0 : index
    %c0_39 = arith.constant 0 : index
    %96 = vector.load %arg4[%c0_38, %c0_39] : memref<160x16xf32, #tpu.memory_space<vmem>>, vector<128x16xf32>
    %c128 = arith.constant 128 : index
    %c0_40 = arith.constant 0 : index
    %97 = vector.load %arg4[%c128, %c0_40] : memref<160x16xf32, #tpu.memory_space<vmem>>, vector<1x16xf32>
    %c136 = arith.constant 136 : index
    %c0_41 = arith.constant 0 : index
    %98 = vector.load %arg4[%c136, %c0_41] : memref<160x16xf32, #tpu.memory_space<vmem>>, vector<16x16xf32>
    %c152_42 = arith.constant 152 : index
    %c0_43 = arith.constant 0 : index
    %99 = vector.load %arg4[%c152_42, %c0_43] : memref<160x16xf32, #tpu.memory_space<vmem>>, vector<1x16xf32>
    %cst_44 = arith.constant dense<0.000000e+00> : vector<32x16xf32>
    %100 = tpu.matmul %95, %96, %cst_44 {dimension_numbers = #tpu.dot_dimension_numbers<[1], [0], [0], [1], [0, 0, 1, 1], [], []>} : vector<32x128xf32>, vector<128x16xf32>, vector<32x16xf32> -> vector<32x16xf32>
    %101 = vector.broadcast %97 : vector<1x16xf32> to vector<32x16xf32>
    %102 = arith.addf %100, %101 : vector<32x16xf32>
    %cst_45 = arith.constant 0.000000e+00 : f32
    %103 = vector.broadcast %cst_45 : f32 to vector<32x16xf32>
    %104 = arith.maximumf %102, %103 : vector<32x16xf32>
    %cst_46 = arith.constant dense<0.000000e+00> : vector<32x16xf32>
    %105 = tpu.matmul %104, %98, %cst_46 {dimension_numbers = #tpu.dot_dimension_numbers<[1], [0], [0], [1], [0, 0, 1, 1], [], []>} : vector<32x16xf32>, vector<16x16xf32>, vector<32x16xf32> -> vector<32x16xf32>
    %106 = vector.broadcast %99 : vector<1x16xf32> to vector<32x16xf32>
    %107 = arith.addf %105, %106 : vector<32x16xf32>
    %108 = vector.extract_strided_slice %107 {offsets = [0, 0], sizes = [32, 2], strides = [1, 1]} : vector<32x16xf32> to vector<32x2xf32>
    %c0_47 = arith.constant 0 : index
    %c0_48 = arith.constant 0 : index
    %109 = vector.load %arg5[%c0_47, %c0_48] : memref<32x2xf32, #tpu.memory_space<vmem>>, vector<32x2xf32>
    tpu.vector_store %arg5[%c0_47, %c0_48], %108 {strides = array<i32>} : memref<32x2xf32, #tpu.memory_space<vmem>>, vector<32x2xf32>,
    return
  }
}

</mosaic_0001>

<llo_original>
// kernel: model_attention_multi_head.1
$region0: #{model_attention_multi_head.1}
  #allocation0 [shape = 'u32[]', space=smem, size = 0x4, offset = 0x4, fixed_abs, tag = 'smem constant byte address 0x4 - core index']
  #allocation1 [shape = 'u32[144,128]{1,0:T(1,128)}', space=vmem, size = 0x12000, scoped, tag = 'internal scratch']
  %s0 = inlined_call_operand.vmem [shape: f32[32,8], index: 0, kind: input, shape index: {}]
  %s1 = inlined_call_operand.vmem [shape: f32[64,8], index: 1, kind: input, shape index: {}]
  %s2 = inlined_call_operand.vmem [shape: s32[64,2], index: 2, kind: input, shape index: {}]
  %s3 = inlined_call_operand.hbm [shape: f32[168,512], index: 3, kind: input, shape index: {}]
  %s4 = inlined_call_operand.vmem [shape: f32[160,16], index: 4, kind: input, shape index: {}]
  %s5 = inlined_call_operand.vmem [shape: f32[32,2], index: 5, kind: output, shape index: {}]
  %s6 = sld [smem:[#allocation0]]
  $region34: #{model_attention_multi_head.1} parent=0
    _
  %s8 = ssub.s32 1, %s6
  %s9 = scalar_select 0, %s8, %s6
  $region1: #{model_attention_multi_head.1} parent=0
    #allocation2 [shape = 'u8[344064]{0}', space=vmem, size = 0x54000, scoped, tag = 'input window, operand 3, single buffered']
    #allocation3 [shape = 's32[1]{0}', space=sflag, size = 0x4, scoped, tag = 'scoped memory for model_attention_multi_head.1']
    %10 = vsyncpa [#allocation3], 0
    // Predicated region
    $region2: #{model_attention_multi_head.1} parent=1 // pred_check
      _
    $region3: #{model_attention_multi_head.1} parent=1 // pred_check_branch
      %12 = sbr.rel (0) target = $region5
    $region4: #{model_attention_multi_head.1} parent=1 // pred_region
      _
    $region5: #{model_attention_multi_head.1} parent=1 // pred_fallthru
      _
    // Predicated region
    $region6: #{model_attention_multi_head.1} parent=1 // pred_check
      _
    $region7: #{model_attention_multi_head.1} parent=1 // pred_check_branch
      %14 = sbr.rel (0) target = $region9
    $region8: #{model_attention_multi_head.1} parent=1 // pred_region
      _
    $region9: #{model_attention_multi_head.1} parent=1 // pred_fallthru
      _
    // Predicated region
    $region10: #{model_attention_multi_head.1} parent=1 // pred_check
      _
    $region11: #{model_attention_multi_head.1} parent=1 // pred_check_branch
      %16 = sbr.rel (0) target = $region13
    $region12: #{model_attention_multi_head.1} parent=1 // pred_region
      _
    $region13: #{model_attention_multi_head.1} parent=1 // pred_fallthru
      _
    // Predicated region
    $region14: #{model_attention_multi_head.1} parent=1 // pred_check
      _
    $region15: #{model_attention_multi_head.1} parent=1 // pred_check_branch
      %18 = sbr.rel (0) target = $region17
    $region16: #{model_attention_multi_head.1} parent=1 // pred_region
      %s20 = ssub.s32 10752, 10752
      %21 = vsyncadd [#allocation3], %s20
      %s22 = sshll.u32 [#allocation2], 4
      %s23 = int_to_ptr.vmem [resolvable:$true] %s22
      %28 = dma.hbm_to_vmem [thread:$0]  %s3, 10752, %s23, [#allocation3], 512, 512, 32
    $region17: #{model_attention_multi_head.1} parent=1 // pred_fallthru
      _
    // Predicated region
    $region18: #{model_attention_multi_head.1} parent=1 // pred_check
      _
    $region19: #{model_attention_multi_head.1} parent=1 // pred_check_branch
      %30 = sbr.rel (0) target = $region21
    $region20: #{model_attention_multi_head.1} parent=1 // pred_region
      _
    $region21: #{model_attention_multi_head.1} parent=1 // pred_fallthru
      _
    // Predicated region
    $region22: #{model_attention_multi_head.1} parent=1 // pred_check
      _
    $region23: #{model_attention_multi_head.1} parent=1 // pred_check_branch
      %32 = sbr.rel (0) target = $region25
    $region24: #{model_attention_multi_head.1} parent=1 // pred_region
      %33 = dma.done [#allocation3], 10752
    $region25: #{model_attention_multi_head.1} parent=1 // pred_fallthru
      _
    %v34 = vld [vmem:[%s2] sm:$0xff]
    %v35 = vld [vmem:[%s2 + $0x8] sm:$0xff]
    %v36 = vld [vmem:[%s2 + $0x10] sm:$0xff]
    %v37 = vld [vmem:[%s2 + $0x18] sm:$0xff]
    %v38 = vld [vmem:[%s2 + $0x20] sm:$0xff]
    %v39 = vld [vmem:[%s2 + $0x28] sm:$0xff]
    %v40 = vld [vmem:[%s2 + $0x30] sm:$0xff]
    %v41 = vld [vmem:[%s2 + $0x38] sm:$0xff]
    %v42 = vlaneseq
    %v43 = vand.u32 %v42, 127
    %44 = vset.pattern.permute.xlu0 0
    %45 = vperm.xlu0 %44, %v34
    %v46 = vpop.permute.xlu0 %45
    %47 = vset.pattern.permute.xlu0 0
    %48 = vperm.xlu0 %47, %v35
    %v49 = vpop.permute.xlu0 %48
    %50 = vset.pattern.permute.xlu0 0
    %51 = vperm.xlu0 %50, %v36
    %v52 = vpop.permute.xlu0 %51
    %53 = vset.pattern.permute.xlu0 0
    %54 = vperm.xlu0 %53, %v37
    %v55 = vpop.permute.xlu0 %54
    %56 = vset.pattern.permute.xlu0 0
    %57 = vperm.xlu0 %56, %v38
    %v58 = vpop.permute.xlu0 %57
    %59 = vset.pattern.permute.xlu0 0
    %60 = vperm.xlu0 %59, %v39
    %v61 = vpop.permute.xlu0 %60
    %62 = vset.pattern.permute.xlu0 0
    %63 = vperm.xlu0 %62, %v40
    %v64 = vpop.permute.xlu0 %63
    %65 = vset.pattern.permute.xlu0 0
    %66 = vperm.xlu0 %65, %v41
    %v67 = vpop.permute.xlu0 %66
    %vm68 = vcmp.eq.s32.totalorder %v46, %v43
    %vm69 = vcmp.eq.s32.totalorder %v49, %v43
    %vm70 = vcmp.eq.s32.totalorder %v52, %v43
    %vm71 = vcmp.eq.s32.totalorder %v55, %v43
    %vm72 = vcmp.eq.s32.totalorder %v58, %v43
    %vm73 = vcmp.eq.s32.totalorder %v61, %v43
    %vm74 = vcmp.eq.s32.totalorder %v64, %v43
    %vm75 = vcmp.eq.s32.totalorder %v67, %v43
    %v76 = vsel %vm68, 1, 0
    %v77 = vsel %vm69, 1, 0
    %v78 = vsel %vm70, 1, 0
    %v79 = vsel %vm71, 1, 0
    %v80 = vsel %vm72, 1, 0
    %v81 = vsel %vm73, 1, 0
    %v82 = vsel %vm74, 1, 0
    %v83 = vsel %vm75, 1, 0
    %v84 = vcvt.s32.f32 %v76
    %v85 = vcvt.s32.f32 %v77
    %v86 = vcvt.s32.f32 %v78
    %v87 = vcvt.s32.f32 %v79
    %v88 = vcvt.s32.f32 %v80
    %v89 = vcvt.s32.f32 %v81
    %v90 = vcvt.s32.f32 %v82
    %v91 = vcvt.s32.f32 %v83
    %92 = vset.pattern.permute.xlu0 1
    %93 = vperm.xlu0 %92, %v34
    %v94 = vpop.permute.xlu0 %93
    %95 = vset.pattern.permute.xlu0 1
    %96 = vperm.xlu0 %95, %v35
    %v97 = vpop.permute.xlu0 %96
    %98 = vset.pattern.permute.xlu0 1
    %99 = vperm.xlu0 %98, %v36
    %v100 = vpop.permute.xlu0 %99
    %101 = vset.pattern.permute.xlu0 1
    %102 = vperm.xlu0 %101, %v37
    %v103 = vpop.permute.xlu0 %102
    %104 = vset.pattern.permute.xlu0 1
    %105 = vperm.xlu0 %104, %v38
    %v106 = vpop.permute.xlu0 %105
    %107 = vset.pattern.permute.xlu0 1
    %108 = vperm.xlu0 %107, %v39
    %v109 = vpop.permute.xlu0 %108
    %110 = vset.pattern.permute.xlu0 1
    %111 = vperm.xlu0 %110, %v40
    %v112 = vpop.permute.xlu0 %111
    %113 = vset.pattern.permute.xlu0 1
    %114 = vperm.xlu0 %113, %v41
    %v115 = vpop.permute.xlu0 %114
    %vm116 = vcmp.eq.s32.totalorder %v94, %v43
    %vm117 = vcmp.eq.s32.totalorder %v97, %v43
    %vm118 = vcmp.eq.s32.totalorder %v100, %v43
    %vm119 = vcmp.eq.s32.totalorder %v103, %v43
    %vm120 = vcmp.eq.s32.totalorder %v106, %v43
    %vm121 = vcmp.eq.s32.totalorder %v109, %v43
    %vm122 = vcmp.eq.s32.totalorder %v112, %v43
    %vm123 = vcmp.eq.s32.totalorder %v115, %v43
    %v124 = vsel %vm116, 1, 0
    %v125 = vsel %vm117, 1, 0
    %v126 = vsel %vm118, 1, 0
    %v127 = vsel %vm119, 1, 0
    %v128 = vsel %vm120, 1, 0
    %v129 = vsel %vm121, 1, 0
    %v130 = vsel %vm122, 1, 0
    %v131 = vsel %vm123, 1, 0
    %v132 = vcvt.s32.f32 %v124
    %v133 = vcvt.s32.f32 %v125
    %v134 = vcvt.s32.f32 %v126
    %v135 = vcvt.s32.f32 %v127
    %v136 = vcvt.s32.f32 %v128
    %v137 = vcvt.s32.f32 %v129
    %v138 = vcvt.s32.f32 %v130
    %v139 = vcvt.s32.f32 %v131
    %vm140 = vcmask 261120
    %v142 = vsel %vm140, %v132, 0
    %v145 = vsel %vm140, %v133, 0
    %v148 = vsel %vm140, %v134, 0
    %v151 = vsel %vm140, %v135, 0
    %v154 = vsel %vm140, %v136, 0
    %v157 = vsel %vm140, %v137, 0
    %v160 = vsel %vm140, %v138, 0
    %v163 = vsel %vm140, %v139, 0
    %165 = vmatprep.subr.mxu0 0.0
    %166 = vmatpush1.xpose.msra.mxu0 %v142
    %167 = vmatprep.subr.mxu0 0.0
    %168 = vmatpush1.xpose.msra.mxu0 %v145
    %169 = vmatprep.subr.mxu0 0.0
    %170 = vmatpush1.xpose.msra.mxu0 %v148
    %171 = vmatprep.subr.mxu0 0.0
    %172 = vmatpush1.xpose.msra.mxu0 %v151
    %173 = vmatprep.subr.mxu0 0.0
    %174 = vmatpush1.xpose.msra.mxu0 %v154
    %175 = vmatprep.subr.mxu0 0.0
    %176 = vmatpush1.xpose.msra.mxu0 %v157
    %177 = vmatprep.subr.mxu0 0.0
    %178 = vmatpush1.xpose.msra.mxu0 %v160
    %179 = vmatprep.subr.mxu0 0.0
    %180 = vmatpush1.xpose.msra.mxu0 %v163
    %181 = vmatprep.subr.mxu0 0.0
    %182 = vmatpush1.xpose.msra.mxu0 0.0
    %183 = vmatprep.subr.mxu0 0.0
    %184 = vmatpush1.xpose.msra.mxu0 0.0
    %185 = vmatprep.subr.mxu0 0.0
    %186 = vmatpush1.xpose.msra.mxu0 0.0
    %187 = vmatprep.subr.mxu0 0.0
    %188 = vmatpush1.xpose.msra.mxu0 0.0
    %189 = vmatprep.subr.mxu0 0.0
    %190 = vmatpush1.xpose.msra.mxu0 0.0
    %191 = vmatprep.subr.mxu0 0.0
    %192 = vmatpush1.xpose.msra.mxu0 0.0
    %193 = vmatprep.subr.mxu0 0.0
    %194 = vmatpush1.xpose.msra.mxu0 0.0
    %195 = vmatprep.subr.mxu0 0.0
    %196 = vmatpush1.xpose.msra.mxu0 0.0
    %197 = vmatprep.subr.mxu0 0.0
    %198 = vmatpush1.xpose.msra.mxu0 0.0
    %199 = vmatprep.subr.mxu0 0.0
    %200 = vmatpush1.xpose.msra.mxu0 0.0
    %201 = vmatprep.subr.mxu0 0.0
    %202 = vmatpush1.xpose.msra.mxu0 0.0
    %203 = vmatprep.subr.mxu0 0.0
    %204 = vmatpush1.xpose.msra.mxu0 0.0
    %205 = vmatprep.subr.mxu0 0.0
    %206 = vmatpush1.xpose.msra.mxu0 0.0
    %207 = vmatprep.subr.mxu0 0.0
    %208 = vmatpush1.xpose.msra.mxu0 0.0
    %209 = vmatprep.subr.mxu0 0.0
    %210 = vmatpush1.xpose.msra.mxu0 0.0
    %211 = vmatprep.subr.mxu0 0.0
    %212 = vmatpush1.xpose.msra.mxu0 0.0
    %213 = vmatprep.subr.mxu0 0.0
    %214 = vmatpush1.xpose.msra.mxu0 0.0
    %215 = vmatprep.subr.mxu0 0.0
    %216 = vmatpush1.xpose.msra.mxu0 0.0
    %217 = vmatprep.subr.mxu0 0.0
    %218 = vmatpush1.xpose.msra.mxu0 0.0
    %219 = vmatprep.subr.mxu0 0.0
    %220 = vmatpush1.xpose.msra.mxu0 0.0
    %221 = vmatprep.subr.mxu0 0.0
    %222 = vmatpush1.xpose.msra.mxu0 0.0
    %223 = vmatprep.subr.mxu0 0.0
    %224 = vmatpush1.xpose.msra.mxu0 0.0
    %225 = vmatprep.subr.mxu0 0.0
    %226 = vmatpush1.xpose.msra.mxu0 0.0
    %227 = vmatprep.subr.mxu0 0.0
    %228 = vmatpush1.xpose.msra.mxu0 0.0
    %229 = vmatprep.mubr.f32.mxu0 0.0
    %230 = vmatmul.mubr.f32.gmra.mrb[0].mxu0 %v142
    %v231 = vpop.f32.mrb[0].mxu0
    %v232 = vadd.f32 0.0, %v231
    %v233 = vpop.f32.mrb[0].mxu0
    %234 = vmatprep.mubr.f32.mxu0 0.0
    %235 = vmatmul.mubr.f32.gmra.mrb[0].mxu0 %v145
    %v236 = vpop.f32.mrb[0].mxu0
    %v237 = vadd.f32 0.0, %v236
    %v238 = vpop.f32.mrb[0].mxu0
    %239 = vmatprep.mubr.f32.mxu0 0.0
    %240 = vmatmul.mubr.f32.gmra.mrb[0].mxu0 %v148
    %v241 = vpop.f32.mrb[0].mxu0
    %v242 = vadd.f32 0.0, %v241
    %v243 = vpop.f32.mrb[0].mxu0
    %244 = vmatprep.mubr.f32.mxu0 0.0
    %245 = vmatmul.mubr.f32.gmra.mrb[0].mxu0 %v151
    %v246 = vpop.f32.mrb[0].mxu0
    %v247 = vadd.f32 0.0, %v246
    %v248 = vpop.f32.mrb[0].mxu0
    %249 = vmatprep.mubr.f32.mxu0 0.0
    %250 = vmatmul.mubr.f32.gmra.mrb[0].mxu0 %v154
    %v251 = vpop.f32.mrb[0].mxu0
    %v252 = vadd.f32 0.0, %v251
    %v253 = vpop.f32.mrb[0].mxu0
    %254 = vmatprep.mubr.f32.mxu0 0.0
    %255 = vmatmul.mubr.f32.gmra.mrb[0].mxu0 %v157
    %v256 = vpop.f32.mrb[0].mxu0
    %v257 = vadd.f32 0.0, %v256
    %v258 = vpop.f32.mrb[0].mxu0
    %259 = vmatprep.mubr.f32.mxu0 0.0
    %260 = vmatmul.mubr.f32.gmra.mrb[0].mxu0 %v160
    %v261 = vpop.f32.mrb[0].mxu0
    %v262 = vadd.f32 0.0, %v261
    %v263 = vpop.f32.mrb[0].mxu0
    %264 = vmatprep.mubr.f32.mxu0 0.0
    %265 = vmatmul.mubr.f32.gmra.mrb[0].mxu0 %v163
    %v266 = vpop.f32.mrb[0].mxu0
    %v267 = vadd.f32 0.0, %v266
    %v268 = vpop.f32.mrb[0].mxu0
    %269 = vdwg.mxu0
    %v270 = vlaneseq
    %v271 = vshrl.u32 %v270, 7
    %v272 = vadd.s32 %v271, 8
    %v273 = vadd.s32 %v271, 16
    %v274 = vadd.s32 %v271, 24
    %v275 = vadd.s32 %v271, 32
    %v276 = vadd.s32 %v271, 40
    %v277 = vadd.s32 %v271, 48
    %v278 = vadd.s32 %v271, 56
    %v279 = vadd.s32 %v271, 64
    %v280 = vadd.s32 %v271, 72
    %v281 = vadd.s32 %v271, 80
    %v282 = vadd.s32 %v271, 88
    %v283 = vadd.s32 %v271, 96
    %v284 = vadd.s32 %v271, 104
    %v285 = vadd.s32 %v271, 112
    %v286 = vadd.s32 %v271, 120
    %v287 = vmul.u32 %v43, 16
    %vm288 = vcmp.ge.s32.totalorder %v271, %v287
    %vm289 = vcmp.ge.s32.totalorder %v272, %v287
    %vm290 = vcmp.ge.s32.totalorder %v273, %v287
    %vm291 = vcmp.ge.s32.totalorder %v274, %v287
    %vm292 = vcmp.ge.s32.totalorder %v275, %v287
    %vm293 = vcmp.ge.s32.totalorder %v276, %v287
    %vm294 = vcmp.ge.s32.totalorder %v277, %v287
    %vm295 = vcmp.ge.s32.totalorder %v278, %v287
    %vm296 = vcmp.ge.s32.totalorder %v279, %v287
    %vm297 = vcmp.ge.s32.totalorder %v280, %v287
    %vm298 = vcmp.ge.s32.totalorder %v281, %v287
    %vm299 = vcmp.ge.s32.totalorder %v282, %v287
    %vm300 = vcmp.ge.s32.totalorder %v283, %v287
    %vm301 = vcmp.ge.s32.totalorder %v284, %v287
    %vm302 = vcmp.ge.s32.totalorder %v285, %v287
    %vm303 = vcmp.ge.s32.totalorder %v286, %v287
    %v304 = vadd.s32 %v43, 1
    %v305 = vmul.u32 %v304, 16
    %vm306 = vcmp.lt.s32.totalorder %v271, %v305
    %vm307 = vcmp.lt.s32.totalorder %v272, %v305
    %vm308 = vcmp.lt.s32.totalorder %v273, %v305
    %vm309 = vcmp.lt.s32.totalorder %v274, %v305
    %vm310 = vcmp.lt.s32.totalorder %v275, %v305
    %vm311 = vcmp.lt.s32.totalorder %v276, %v305
    %vm312 = vcmp.lt.s32.totalorder %v277, %v305
    %vm313 = vcmp.lt.s32.totalorder %v278, %v305
    %vm314 = vcmp.lt.s32.totalorder %v279, %v305
    %vm315 = vcmp.lt.s32.totalorder %v280, %v305
    %vm316 = vcmp.lt.s32.totalorder %v281, %v305
    %vm317 = vcmp.lt.s32.totalorder %v282, %v305
    %vm318 = vcmp.lt.s32.totalorder %v283, %v305
    %vm319 = vcmp.lt.s32.totalorder %v284, %v305
    %vm320 = vcmp.lt.s32.totalorder %v285, %v305
    %vm321 = vcmp.lt.s32.totalorder %v286, %v305
    %vm322 = vmand %vm288, %vm306
    %vm323 = vmand %vm289, %vm307
    %vm324 = vmand %vm290, %vm308
    %vm325 = vmand %vm291, %vm309
    %vm326 = vmand %vm292, %vm310
    %vm327 = vmand %vm293, %vm311
    %vm328 = vmand %vm294, %vm312
    %vm329 = vmand %vm295, %vm313
    %vm330 = vmand %vm296, %vm314
    %vm331 = vmand %vm297, %vm315
    %vm332 = vmand %vm298, %vm316
    %vm333 = vmand %vm299, %vm317
    %vm334 = vmand %vm300, %vm318
    %vm335 = vmand %vm301, %vm319
    %vm336 = vmand %vm302, %vm320
    %vm337 = vmand %vm303, %vm321
    %v338 = vsel %vm322, 1, 0
    %v339 = vsel %vm323, 1, 0
    %v340 = vsel %vm324, 1, 0
    %v341 = vsel %vm325, 1, 0
    %v342 = vsel %vm326, 1, 0
    %v343 = vsel %vm327, 1, 0
    %v344 = vsel %vm328, 1, 0
    %v345 = vsel %vm329, 1, 0
    %v346 = vsel %vm330, 1, 0
    %v347 = vsel %vm331, 1, 0
    %v348 = vsel %vm332, 1, 0
    %v349 = vsel %vm333, 1, 0
    %v350 = vsel %vm334, 1, 0
    %v351 = vsel %vm335, 1, 0
    %v352 = vsel %vm336, 1, 0
    %v353 = vsel %vm337, 1, 0
    %v354 = vcvt.s32.f32 %v338
    %v355 = vcvt.s32.f32 %v339
    %v356 = vcvt.s32.f32 %v340
    %v357 = vcvt.s32.f32 %v341
    %v358 = vcvt.s32.f32 %v342
    %v359 = vcvt.s32.f32 %v343
    %v360 = vcvt.s32.f32 %v344
    %v361 = vcvt.s32.f32 %v345
    %v362 = vcvt.s32.f32 %v346
    %v363 = vcvt.s32.f32 %v347
    %v364 = vcvt.s32.f32 %v348
    %v365 = vcvt.s32.f32 %v349
    %v366 = vcvt.s32.f32 %v350
    %v367 = vcvt.s32.f32 %v351
    %v368 = vcvt.s32.f32 %v352
    %v369 = vcvt.s32.f32 %v353
    %v370 = vld [vmem:[#allocation2] sm:$0xff]
    %v371 = vld [vmem:[#allocation2 + $0x8] sm:$0xff]
    %v372 = vld [vmem:[#allocation2 + $0x10] sm:$0xff]
    %v373 = vld [vmem:[#allocation2 + $0x18] sm:$0xff]
    %s374 = scalar_lea.vmem [#allocation2], 32
    %v375 = vld [vmem:[%s374] ss:$8 sm:$0xf]
    %v376 = vld [vmem:[#allocation2 + $0x40] sm:$0xff]
    %v377 = vld [vmem:[#allocation2 + $0x60] sm:$0xff]
    %v378 = vld [vmem:[#allocation2 + $0x68] sm:$0xff]
    %v379 = vld [vmem:[#allocation2 + $0x70] sm:$0xff]
    %v380 = vld [vmem:[#allocation2 + $0x78] sm:$0xff]
    %v381 = vld [vmem:[#allocation2 + $0x80] sm:$0xff]
    %v382 = vld [vmem:[#allocation2 + $0x88] sm:$0xff]
    %v383 = vld [vmem:[#allocation2 + $0x90] sm:$0xff]
    %v384 = vld [vmem:[#allocation2 + $0x98] sm:$0xff]
    %v385 = vld [vmem:[#allocation2 + $0xa0] sm:$0xff]
    %v386 = vld [vmem:[#allocation2 + $0xa8] sm:$0xff]
    %v387 = vld [vmem:[#allocation2 + $0xb0] sm:$0xff]
    %v388 = vld [vmem:[#allocation2 + $0xb8] sm:$0xff]
    %v389 = vld [vmem:[#allocation2 + $0xc0] sm:$0xff]
    %v390 = vld [vmem:[#allocation2 + $0xc8] sm:$0xff]
    %v391 = vld [vmem:[#allocation2 + $0xd0] sm:$0xff]
    %v392 = vld [vmem:[#allocation2 + $0xd8] sm:$0xff]
    %v393 = vld [vmem:[#allocation2 + $0xe0] sm:$0xff]
    %v394 = vld [vmem:[#allocation2 + $0xe8] sm:$0xff]
    %v395 = vld [vmem:[#allocation2 + $0xf0] sm:$0xff]
    %v396 = vld [vmem:[#allocation2 + $0xf8] sm:$0xff]
    %v397 = vld [vmem:[#allocation2 + $0x100] sm:$0xff]
    %v398 = vld [vmem:[#allocation2 + $0x108] sm:$0xff]
    %v399 = vld [vmem:[#allocation2 + $0x110] sm:$0xff]
    %v400 = vld [vmem:[#allocation2 + $0x118] sm:$0xff]
    %v401 = vld [vmem:[#allocation2 + $0x120] sm:$0xff]
    %v402 = vld [vmem:[#allocation2 + $0x128] sm:$0xff]
    %v403 = vld [vmem:[#allocation2 + $0x130] sm:$0xff]
    %v404 = vld [vmem:[#allocation2 + $0x138] sm:$0xff]
    %v405 = vld [vmem:[#allocation2 + $0x140] sm:$0xff]
    %v406 = vld [vmem:[#allocation2 + $0x148] sm:$0xff]
    %v407 = vld [vmem:[#allocation2 + $0x150] sm:$0xff]
    %v408 = vld [vmem:[#allocation2 + $0x158] sm:$0xff]
    %v409 = vld [vmem:[#allocation2 + $0x160] sm:$0xff]
    %v410 = vld [vmem:[#allocation2 + $0x168] sm:$0xff]
    %v411 = vld [vmem:[#allocation2 + $0x170] sm:$0xff]
    %v412 = vld [vmem:[#allocation2 + $0x178] sm:$0xff]
    %v413 = vld [vmem:[#allocation2 + $0x180] sm:$0xff]
    %v414 = vld [vmem:[#allocation2 + $0x188] sm:$0xff]
    %v415 = vld [vmem:[#allocation2 + $0x190] sm:$0xff]
    %v416 = vld [vmem:[#allocation2 + $0x198] sm:$0xff]
    %v417 = vld [vmem:[#allocation2 + $0x1a0] sm:$0xff]
    %v418 = vld [vmem:[#allocation2 + $0x1a8] sm:$0xff]
    %v419 = vld [vmem:[#allocation2 + $0x1b0] sm:$0xff]
    %v420 = vld [vmem:[#allocation2 + $0x1b8] sm:$0xff]
    %v421 = vld [vmem:[#allocation2 + $0x1c0] sm:$0xff]
    %v422 = vld [vmem:[#allocation2 + $0x1c8] sm:$0xff]
    %v423 = vld [vmem:[#allocation2 + $0x1d0] sm:$0xff]
    %v424 = vld [vmem:[#allocation2 + $0x1d8] sm:$0xff]
    %v425 = vld [vmem:[#allocation2 + $0x1e0] sm:$0xff]
    %v426 = vld [vmem:[#allocation2 + $0x1e8] sm:$0xff]
    %v427 = vld [vmem:[#allocation2 + $0x1f0] sm:$0xff]
    %v428 = vld [vmem:[#allocation2 + $0x1f8] sm:$0xff]
    %v429 = vld [vmem:[#allocation2 + $0x200] sm:$0xff]
    %v430 = vld [vmem:[#allocation2 + $0x208] sm:$0xff]
    %v431 = vld [vmem:[#allocation2 + $0x210] sm:$0xff]
    %v432 = vld [vmem:[#allocation2 + $0x218] sm:$0xff]
    %v433 = vld [vmem:[#allocation2 + $0x220] sm:$0xff]
    %v434 = vld [vmem:[#allocation2 + $0x228] sm:$0xff]
    %v435 = vld [vmem:[#allocation2 + $0x230] sm:$0xff]
    %v436 = vld [vmem:[#allocation2 + $0x238] sm:$0xff]
    %v437 = vld [vmem:[#allocation2 + $0x240] sm:$0xff]
    %v438 = vld [vmem:[#allocation2 + $0x248] sm:$0xff]
    %v439 = vld [vmem:[#allocation2 + $0x250] sm:$0xff]
    %v440 = vld [vmem:[#allocation2 + $0x258] sm:$0xff]
    %s441 = scalar_lea.vmem [#allocation2], 608
    %v442 = vld [vmem:[%s441] ss:$8 sm:$0xf]
    %v443 = vld [vmem:[#allocation2 + $0x280] sm:$0xff]
    %v444 = vld [vmem:[%s0] sm:$0xff]
    %v445 = vld [vmem:[%s0 + $0x8] sm:$0xff]
    %v446 = vld [vmem:[%s0 + $0x10] sm:$0xff]
    %v447 = vld [vmem:[%s0 + $0x18] sm:$0xff]
    %v449 = vlaneseq
    %v450 = vshrl.u32 %v449, 7
    %v451 = vsub.s32 0, %v450
    %v452 = vrot.slane %v375, %v451
    %v453 = vlaneseq
    %v454 = vshrl.u32 %v453, 7
    %v455 = vsub.s32 1, %v454
    %v456 = vrot.slane %v375, %v455
    %v457 = vlaneseq
    %v458 = vshrl.u32 %v457, 7
    %v459 = vsub.s32 2, %v458
    %v460 = vrot.slane %v375, %v459
    %v461 = vlaneseq
    %v462 = vshrl.u32 %v461, 7
    %v463 = vsub.s32 3, %v462
    %v464 = vrot.slane %v375, %v463
    %vm469 = vcmask 64512
    %v471 = vsel %vm469, %v444, 0
    %v474 = vsel %vm469, %v445, 0
    %v477 = vsel %vm469, %v446, 0
    %v480 = vsel %vm469, %v447, 0
    %482 = vmatprep.subr.mxu0 %v371
    %483 = vmatpush1.msra.mxu0 %v370
    %484 = vmatprep.subr.mxu0 0.0
    %485 = vmatpush1.msra.mxu0 0.0
    %486 = vmatprep.subr.mxu0 0.0
    %487 = vmatpush1.msra.mxu0 0.0
    %488 = vmatprep.subr.mxu0 0.0
    %489 = vmatpush1.msra.mxu0 0.0
    %490 = vmatprep.subr.mxu0 0.0
    %491 = vmatpush1.msra.mxu0 0.0
    %492 = vmatprep.subr.mxu0 0.0
    %493 = vmatpush1.msra.mxu0 0.0
    %494 = vmatprep.subr.mxu0 0.0
    %495 = vmatpush1.msra.mxu0 0.0
    %496 = vmatprep.subr.mxu0 0.0
    %497 = vmatpush1.msra.mxu0 0.0
    %498 = vmatprep.subr.mxu0 0.0
    %499 = vmatpush1.msra.mxu0 0.0
    %500 = vmatprep.subr.mxu0 0.0
    %501 = vmatpush1.msra.mxu0 0.0
    %502 = vmatprep.subr.mxu0 0.0
    %503 = vmatpush1.msra.mxu0 0.0
    %504 = vmatprep.subr.mxu0 0.0
    %505 = vmatpush1.msra.mxu0 0.0
    %506 = vmatprep.subr.mxu0 0.0
    %507 = vmatpush1.msra.mxu0 0.0
    %508 = vmatprep.subr.mxu0 0.0
    %509 = vmatpush1.msra.mxu0 0.0
    %510 = vmatprep.subr.mxu0 0.0
    %511 = vmatpush1.msra.mxu0 0.0
    %512 = vmatprep.subr.mxu0 0.0
    %513 = vmatpush1.msra.mxu0 0.0
    %514 = vmatprep.subr.mxu0 0.0
    %515 = vmatpush1.msra.mxu0 0.0
    %516 = vmatprep.subr.mxu0 0.0
    %517 = vmatpush1.msra.mxu0 0.0
    %518 = vmatprep.subr.mxu0 0.0
    %519 = vmatpush1.msra.mxu0 0.0
    %520 = vmatprep.subr.mxu0 0.0
    %521 = vmatpush1.msra.mxu0 0.0
    %522 = vmatprep.subr.mxu0 0.0
    %523 = vmatpush1.msra.mxu0 0.0
    %524 = vmatprep.subr.mxu0 0.0
    %525 = vmatpush1.msra.mxu0 0.0
    %526 = vmatprep.subr.mxu0 0.0
    %527 = vmatpush1.msra.mxu0 0.0
    %528 = vmatprep.subr.mxu0 0.0
    %529 = vmatpush1.msra.mxu0 0.0
    %530 = vmatprep.subr.mxu0 0.0
    %531 = vmatpush1.msra.mxu0 0.0
    %532 = vmatprep.subr.mxu0 0.0
    %533 = vmatpush1.msra.mxu0 0.0
    %534 = vmatprep.subr.mxu0 0.0
    %535 = vmatpush1.msra.mxu0 0.0
    %536 = vmatprep.subr.mxu0 0.0
    %537 = vmatpush1.msra.mxu0 0.0
    %538 = vmatprep.subr.mxu0 0.0
    %539 = vmatpush1.msra.mxu0 0.0
    %540 = vmatprep.subr.mxu0 0.0
    %541 = vmatpush1.msra.mxu0 0.0
    %542 = vmatprep.subr.mxu0 0.0
    %543 = vmatpush1.msra.mxu0 0.0
    %544 = vmatprep.subr.mxu0 0.0
    %545 = vmatpush1.msra.mxu0 0.0
    %546 = vmatprep.mubr.f32.mxu0 0.0
    %547 = vmatmul.mubr.f32.gmra.mrb[0].mxu0 %v471
    %v548 = vpop.f32.mrb[0].mxu0
    %v549 = vadd.f32 %v452, %v548
    %v550 = vpop.f32.mrb[0].mxu0
    %v551 = vadd.f32 %v456, %v550
    %552 = vmatprep.mubr.f32.mxu0 0.0
    %553 = vmatmul.mubr.f32.gmra.mrb[0].mxu0 %v474
    %v554 = vpop.f32.mrb[0].mxu0
    %v555 = vadd.f32 %v452, %v554
    %v556 = vpop.f32.mrb[0].mxu0
    %v557 = vadd.f32 %v456, %v556
    %558 = vmatprep.mubr.f32.mxu0 0.0
    %559 = vmatmul.mubr.f32.gmra.mrb[0].mxu0 %v477
    %v560 = vpop.f32.mrb[0].mxu0
    %v561 = vadd.f32 %v452, %v560
    %v562 = vpop.f32.mrb[0].mxu0
    %v563 = vadd.f32 %v456, %v562
    %564 = vmatprep.mubr.f32.mxu0 0.0
    %565 = vmatmul.mubr.f32.gmra.mrb[0].mxu0 %v480
    %v566 = vpop.f32.mrb[0].mxu0
    %v567 = vadd.f32 %v452, %v566
    %v568 = vpop.f32.mrb[0].mxu0
    %v569 = vadd.f32 %v456, %v568
    %570 = vdwg.mxu0
    %571 = vmatprep.subr.mxu0 %v373
    %572 = vmatpush1.msra.mxu0 %v372
    %573 = vmatprep.subr.mxu0 0.0
    %574 = vmatpush1.msra.mxu0 0.0
    %575 = vmatprep.subr.mxu0 0.0
    %576 = vmatpush1.msra.mxu0 0.0
    %577 = vmatprep.subr.mxu0 0.0
    %578 = vmatpush1.msra.mxu0 0.0
    %579 = vmatprep.subr.mxu0 0.0
    %580 = vmatpush1.msra.mxu0 0.0
    %581 = vmatprep.subr.mxu0 0.0
    %582 = vmatpush1.msra.mxu0 0.0
    %583 = vmatprep.subr.mxu0 0.0
    %584 = vmatpush1.msra.mxu0 0.0
    %585 = vmatprep.subr.mxu0 0.0
    %586 = vmatpush1.msra.mxu0 0.0
    %587 = vmatprep.subr.mxu0 0.0
    %588 = vmatpush1.msra.mxu0 0.0
    %589 = vmatprep.subr.mxu0 0.0
    %590 = vmatpush1.msra.mxu0 0.0
    %591 = vmatprep.subr.mxu0 0.0
    %592 = vmatpush1.msra.mxu0 0.0
    %593 = vmatprep.subr.mxu0 0.0
    %594 = vmatpush1.msra.mxu0 0.0
    %595 = vmatprep.subr.mxu0 0.0
    %596 = vmatpush1.msra.mxu0 0.0
    %597 = vmatprep.subr.mxu0 0.0
    %598 = vmatpush1.msra.mxu0 0.0
    %599 = vmatprep.subr.mxu0 0.0
    %600 = vmatpush1.msra.mxu0 0.0
    %601 = vmatprep.subr.mxu0 0.0
    %602 = vmatpush1.msra.mxu0 0.0
    %603 = vmatprep.subr.mxu0 0.0
    %604 = vmatpush1.msra.mxu0 0.0
    %605 = vmatprep.subr.mxu0 0.0
    %606 = vmatpush1.msra.mxu0 0.0
    %607 = vmatprep.subr.mxu0 0.0
    %608 = vmatpush1.msra.mxu0 0.0
    %609 = vmatprep.subr.mxu0 0.0
    %610 = vmatpush1.msra.mxu0 0.0
    %611 = vmatprep.subr.mxu0 0.0
    %612 = vmatpush1.msra.mxu0 0.0
    %613 = vmatprep.subr.mxu0 0.0
    %614 = vmatpush1.msra.mxu0 0.0
    %615 = vmatprep.subr.mxu0 0.0
    %616 = vmatpush1.msra.mxu0 0.0
    %617 = vmatprep.subr.mxu0 0.0
    %618 = vmatpush1.msra.mxu0 0.0
    %619 = vmatprep.subr.mxu0 0.0
    %620 = vmatpush1.msra.mxu0 0.0
    %621 = vmatprep.subr.mxu0 0.0
    %622 = vmatpush1.msra.mxu0 0.0
    %623 = vmatprep.subr.mxu0 0.0
    %624 = vmatpush1.msra.mxu0 0.0
    %625 = vmatprep.subr.mxu0 0.0
    %626 = vmatpush1.msra.mxu0 0.0
    %627 = vmatprep.subr.mxu0 0.0
    %628 = vmatpush1.msra.mxu0 0.0
    %629 = vmatprep.subr.mxu0 0.0
    %630 = vmatpush1.msra.mxu0 0.0
    %631 = vmatprep.subr.mxu0 0.0
    %632 = vmatpush1.msra.mxu0 0.0
    %633 = vmatprep.subr.mxu0 0.0
    %634 = vmatpush1.msra.mxu0 0.0
    %635 = vmatprep.mubr.f32.mxu0 0.0
    %636 = vmatmul.mubr.f32.gmra.mrb[0].mxu0 %v471
    %v637 = vpop.f32.mrb[0].mxu0
    %v638 = vadd.f32 %v460, %v637
    %v639 = vpop.f32.mrb[0].mxu0
    %v640 = vadd.f32 %v464, %v639
    %641 = vmatprep.mubr.f32.mxu0 0.0
    %642 = vmatmul.mubr.f32.gmra.mrb[0].mxu0 %v474
    %v643 = vpop.f32.mrb[0].mxu0
    %v644 = vadd.f32 %v460, %v643
    %v645 = vpop.f32.mrb[0].mxu0
    %v646 = vadd.f32 %v464, %v645
    %647 = vmatprep.mubr.f32.mxu0 0.0
    %648 = vmatmul.mubr.f32.gmra.mrb[0].mxu0 %v477
    %v649 = vpop.f32.mrb[0].mxu0
    %v650 = vadd.f32 %v460, %v649
    %v651 = vpop.f32.mrb[0].mxu0
    %v652 = vadd.f32 %v464, %v651
    %653 = vmatprep.mubr.f32.mxu0 0.0
    %654 = vmatmul.mubr.f32.gmra.mrb[0].mxu0 %v480
    %v655 = vpop.f32.mrb[0].mxu0
    %v656 = vadd.f32 %v460, %v655
    %v657 = vpop.f32.mrb[0].mxu0
    %v658 = vadd.f32 %v464, %v657
    %659 = vdwg.mxu0
    %v660 = vld [vmem:[%s1] sm:$0xff]
    %v661 = vld [vmem:[%s1 + $0x8] sm:$0xff]
    %v662 = vld [vmem:[%s1 + $0x10] sm:$0xff]
    %v663 = vld [vmem:[%s1 + $0x18] sm:$0xff]
    %v664 = vld [vmem:[%s1 + $0x20] sm:$0xff]
    %v665 = vld [vmem:[%s1 + $0x28] sm:$0xff]
    %v666 = vld [vmem:[%s1 + $0x30] sm:$0xff]
    %v667 = vld [vmem:[%s1 + $0x38] sm:$0xff]
    %v669 = vsel %vm469, %v660, 0
    %v672 = vsel %vm469, %v661, 0
    %v675 = vsel %vm469, %v662, 0
    %v678 = vsel %vm469, %v663, 0
    %v681 = vsel %vm469, %v664, 0
    %v684 = vsel %vm469, %v665, 0
    %v687 = vsel %vm469, %v666, 0
    %v690 = vsel %vm469, %v667, 0
    %692 = vmatprep.subr.mxu0 0.0
    %693 = vmatpush1.msra.mxu0 %v376
    %694 = vmatprep.subr.mxu0 0.0
    %695 = vmatpush1.msra.mxu0 0.0
    %696 = vmatprep.subr.mxu0 0.0
    %697 = vmatpush1.msra.mxu0 0.0
    %698 = vmatprep.subr.mxu0 0.0
    %699 = vmatpush1.msra.mxu0 0.0
    %700 = vmatprep.subr.mxu0 0.0
    %701 = vmatpush1.msra.mxu0 0.0
    %702 = vmatprep.subr.mxu0 0.0
    %703 = vmatpush1.msra.mxu0 0.0
    %704 = vmatprep.subr.mxu0 0.0
    %705 = vmatpush1.msra.mxu0 0.0
    %706 = vmatprep.subr.mxu0 0.0
    %707 = vmatpush1.msra.mxu0 0.0
    %708 = vmatprep.subr.mxu0 0.0
    %709 = vmatpush1.msra.mxu0 0.0
    %710 = vmatprep.subr.mxu0 0.0
    %711 = vmatpush1.msra.mxu0 0.0
    %712 = vmatprep.subr.mxu0 0.0
    %713 = vmatpush1.msra.mxu0 0.0
    %714 = vmatprep.subr.mxu0 0.0
    %715 = vmatpush1.msra.mxu0 0.0
    %716 = vmatprep.subr.mxu0 0.0
    %717 = vmatpush1.msra.mxu0 0.0
    %718 = vmatprep.subr.mxu0 0.0
    %719 = vmatpush1.msra.mxu0 0.0
    %720 = vmatprep.subr.mxu0 0.0
    %721 = vmatpush1.msra.mxu0 0.0
    %722 = vmatprep.subr.mxu0 0.0
    %723 = vmatpush1.msra.mxu0 0.0
    %724 = vmatprep.subr.mxu0 0.0
    %725 = vmatpush1.msra.mxu0 0.0
    %726 = vmatprep.subr.mxu0 0.0
    %727 = vmatpush1.msra.mxu0 0.0
    %728 = vmatprep.subr.mxu0 0.0
    %729 = vmatpush1.msra.mxu0 0.0
    %730 = vmatprep.subr.mxu0 0.0
    %731 = vmatpush1.msra.mxu0 0.0
    %732 = vmatprep.subr.mxu0 0.0
    %733 = vmatpush1.msra.mxu0 0.0
    %734 = vmatprep.subr.mxu0 0.0
    %735 = vmatpush1.msra.mxu0 0.0
    %736 = vmatprep.subr.mxu0 0.0
    %737 = vmatpush1.msra.mxu0 0.0
    %738 = vmatprep.subr.mxu0 0.0
    %739 = vmatpush1.msra.mxu0 0.0
    %740 = vmatprep.subr.mxu0 0.0
    %741 = vmatpush1.msra.mxu0 0.0
    %742 = vmatprep.subr.mxu0 0.0
    %743 = vmatpush1.msra.mxu0 0.0
    %744 = vmatprep.subr.mxu0 0.0
    %745 = vmatpush1.msra.mxu0 0.0
    %746 = vmatprep.subr.mxu0 0.0
    %747 = vmatpush1.msra.mxu0 0.0
    %748 = vmatprep.subr.mxu0 0.0
    %749 = vmatpush1.msra.mxu0 0.0
    %750 = vmatprep.subr.mxu0 0.0
    %751 = vmatpush1.msra.mxu0 0.0
    %752 = vmatprep.subr.mxu0 0.0
    %753 = vmatpush1.msra.mxu0 0.0
    %754 = vmatprep.subr.mxu0 0.0
    %755 = vmatpush1.msra.mxu0 0.0
    %756 = vmatprep.mubr.f32.mxu0 0.0
    %757 = vmatmul.mubr.f32.gmra.mrb[0].mxu0 %v669
    %v758 = vpop.f32.mrb[0].mxu0
    %v759 = vadd.f32 0.0, %v758
    %v760 = vpop.f32.mrb[0].mxu0
    %761 = vmatprep.mubr.f32.mxu0 0.0
    %762 = vmatmul.mubr.f32.gmra.mrb[0].mxu0 %v672
    %v763 = vpop.f32.mrb[0].mxu0
    %v764 = vadd.f32 0.0, %v763
    %v765 = vpop.f32.mrb[0].mxu0
    %766 = vmatprep.mubr.f32.mxu0 0.0
    %767 = vmatmul.mubr.f32.gmra.mrb[0].mxu0 %v675
    %v768 = vpop.f32.mrb[0].mxu0
    %v769 = vadd.f32 0.0, %v768
    %v770 = vpop.f32.mrb[0].mxu0
    %771 = vmatprep.mubr.f32.mxu0 0.0
    %772 = vmatmul.mubr.f32.gmra.mrb[0].mxu0 %v678
    %v773 = vpop.f32.mrb[0].mxu0
    %v774 = vadd.f32 0.0, %v773
    %v775 = vpop.f32.mrb[0].mxu0
    %776 = vmatprep.mubr.f32.mxu0 0.0
    %777 = vmatmul.mubr.f32.gmra.mrb[0].mxu0 %v681
    %v778 = vpop.f32.mrb[0].mxu0
    %v779 = vadd.f32 0.0, %v778
    %v780 = vpop.f32.mrb[0].mxu0
    %781 = vmatprep.mubr.f32.mxu0 0.0
    %782 = vmatmul.mubr.f32.gmra.mrb[0].mxu0 %v684
    %v783 = vpop.f32.mrb[0].mxu0
    %v784 = vadd.f32 0.0, %v783
    %v785 = vpop.f32.mrb[0].mxu0
    %786 = vmatprep.mubr.f32.mxu0 0.0
    %787 = vmatmul.mubr.f32.gmra.mrb[0].mxu0 %v687
    %v788 = vpop.f32.mrb[0].mxu0
    %v789 = vadd.f32 0.0, %v788
    %v790 = vpop.f32.mrb[0].mxu0
    %791 = vmatprep.mubr.f32.mxu0 0.0
    %792 = vmatmul.mubr.f32.gmra.mrb[0].mxu0 %v690
    %v793 = vpop.f32.mrb[0].mxu0
    %v794 = vadd.f32 0.0, %v793
    %v795 = vpop.f32.mrb[0].mxu0
    %796 = vdwg.mxu0
    %797 = vmatprep.subr.mxu0 0.0
    %798 = vmatpush1.msra.mxu0 %v549
    %799 = vmatprep.subr.mxu0 0.0
    %800 = vmatpush1.msra.mxu0 %v555
    %801 = vmatprep.subr.mxu0 0.0
    %802 = vmatpush1.msra.mxu0 %v561
    %803 = vmatprep.subr.mxu0 0.0
    %804 = vmatpush1.msra.mxu0 %v567
    %805 = vmatprep.subr.mxu0 0.0
    %806 = vmatpush1.msra.mxu0 0.0
    %807 = vmatprep.subr.mxu0 0.0
    %808 = vmatpush1.msra.mxu0 0.0
    %809 = vmatprep.subr.mxu0 0.0
    %810 = vmatpush1.msra.mxu0 0.0
    %811 = vmatprep.subr.mxu0 0.0
    %812 = vmatpush1.msra.mxu0 0.0
    %813 = vmatprep.subr.mxu0 0.0
    %814 = vmatpush1.msra.mxu0 0.0
    %815 = vmatprep.subr.mxu0 0.0
    %816 = vmatpush1.msra.mxu0 0.0
    %817 = vmatprep.subr.mxu0 0.0
    %818 = vmatpush1.msra.mxu0 0.0
    %819 = vmatprep.subr.mxu0 0.0
    %820 = vmatpush1.msra.mxu0 0.0
    %821 = vmatprep.subr.mxu0 0.0
    %822 = vmatpush1.msra.mxu0 0.0
    %823 = vmatprep.subr.mxu0 0.0
    %824 = vmatpush1.msra.mxu0 0.0
    %825 = vmatprep.subr.mxu0 0.0
    %826 = vmatpush1.msra.mxu0 0.0
    %827 = vmatprep.subr.mxu0 0.0
    %828 = vmatpush1.msra.mxu0 0.0
    %829 = vmatprep.subr.mxu0 0.0
    %830 = vmatpush1.msra.mxu0 0.0
    %831 = vmatprep.subr.mxu0 0.0
    %832 = vmatpush1.msra.mxu0 0.0
    %833 = vmatprep.subr.mxu0 0.0
    %834 = vmatpush1.msra.mxu0 0.0
    %835 = vmatprep.subr.mxu0 0.0
    %836 = vmatpush1.msra.mxu0 0.0
    %837 = vmatprep.subr.mxu0 0.0
    %838 = vmatpush1.msra.mxu0 0.0
    %839 = vmatprep.subr.mxu0 0.0
    %840 = vmatpush1.msra.mxu0 0.0
    %841 = vmatprep.subr.mxu0 0.0
    %842 = vmatpush1.msra.mxu0 0.0
    %843 = vmatprep.subr.mxu0 0.0
    %844 = vmatpush1.msra.mxu0 0.0
    %845 = vmatprep.subr.mxu0 0.0
    %846 = vmatpush1.msra.mxu0 0.0
    %847 = vmatprep.subr.mxu0 0.0
    %848 = vmatpush1.msra.mxu0 0.0
    %849 = vmatprep.subr.mxu0 0.0
    %850 = vmatpush1.msra.mxu0 0.0
    %851 = vmatprep.subr.mxu0 0.0
    %852 = vmatpush1.msra.mxu0 0.0
    %853 = vmatprep.subr.mxu0 0.0
    %854 = vmatpush1.msra.mxu0 0.0
    %855 = vmatprep.subr.mxu0 0.0
    %856 = vmatpush1.msra.mxu0 0.0
    %857 = vmatprep.subr.mxu0 0.0
    %858 = vmatpush1.msra.mxu0 0.0
    %859 = vmatprep.subr.mxu0 0.0
    %860 = vmatpush1.msra.mxu0 0.0
    %861 = vmatprep.mubr.f32.mxu0 0.0
    %862 = vmatmul.mubr.f32.gmra.mrb[0].mxu0 %v142
    %v863 = vpop.f32.mrb[0].mxu0
    %v864 = vadd.f32 0.0, %v863
    %v865 = vpop.f32.mrb[0].mxu0
    %866 = vmatprep.mubr.f32.mxu0 0.0
    %867 = vmatmul.mubr.f32.gmra.mrb[0].mxu0 %v145
    %v868 = vpop.f32.mrb[0].mxu0
    %v869 = vadd.f32 0.0, %v868
    %v870 = vpop.f32.mrb[0].mxu0
    %871 = vmatprep.mubr.f32.mxu0 0.0
    %872 = vmatmul.mubr.f32.gmra.mrb[0].mxu0 %v148
    %v873 = vpop.f32.mrb[0].mxu0
    %v874 = vadd.f32 0.0, %v873
    %v875 = vpop.f32.mrb[0].mxu0
    %876 = vmatprep.mubr.f32.mxu0 0.0
    %877 = vmatmul.mubr.f32.gmra.mrb[0].mxu0 %v151
    %v878 = vpop.f32.mrb[0].mxu0
    %v879 = vadd.f32 0.0, %v878
    %v880 = vpop.f32.mrb[0].mxu0
    %881 = vmatprep.mubr.f32.mxu0 0.0
    %882 = vmatmul.mubr.f32.gmra.mrb[0].mxu0 %v154
    %v883 = vpop.f32.mrb[0].mxu0
    %v884 = vadd.f32 0.0, %v883
    %v885 = vpop.f32.mrb[0].mxu0
    %886 = vmatprep.mubr.f32.mxu0 0.0
    %887 = vmatmul.mubr.f32.gmra.mrb[0].mxu0 %v157
    %v888 = vpop.f32.mrb[0].mxu0
    %v889 = vadd.f32 0.0, %v888
    %v890 = vpop.f32.mrb[0].mxu0
    %891 = vmatprep.mubr.f32.mxu0 0.0
    %892 = vmatmul.mubr.f32.gmra.mrb[0].mxu0 %v160
    %v893 = vpop.f32.mrb[0].mxu0
    %v894 = vadd.f32 0.0, %v893
    %v895 = vpop.f32.mrb[0].mxu0
    %896 = vmatprep.mubr.f32.mxu0 0.0
    %897 = vmatmul.mubr.f32.gmra.mrb[0].mxu0 %v163
    %v898 = vpop.f32.mrb[0].mxu0
    %v899 = vadd.f32 0.0, %v898
    %v900 = vpop.f32.mrb[0].mxu0
    %901 = vdwg.mxu0
    %v903 = vsel %vm140, %v84, 0
    %v906 = vsel %vm140, %v85, 0
    %v909 = vsel %vm140, %v86, 0
    %v912 = vsel %vm140, %v87, 0
    %v915 = vsel %vm140, %v88, 0
    %v918 = vsel %vm140, %v89, 0
    %v921 = vsel %vm140, %v90, 0
    %v924 = vsel %vm140, %v91, 0
    %926 = vmatprep.subr.mxu0 %v638
    %927 = vmatpush1.msra.mxu0 %v551
    %928 = vmatprep.subr.mxu0 %v644
    %929 = vmatpush1.msra.mxu0 %v557
    %930 = vmatprep.subr.mxu0 %v650
    %931 = vmatpush1.msra.mxu0 %v563
    %932 = vmatprep.subr.mxu0 %v656
    %933 = vmatpush1.msra.mxu0 %v569
    %934 = vmatprep.subr.mxu0 0.0
    %935 = vmatpush1.msra.mxu0 0.0
    %936 = vmatprep.subr.mxu0 0.0
    %937 = vmatpush1.msra.mxu0 0.0
    %938 = vmatprep.subr.mxu0 0.0
    %939 = vmatpush1.msra.mxu0 0.0
    %940 = vmatprep.subr.mxu0 0.0
    %941 = vmatpush1.msra.mxu0 0.0
    %942 = vmatprep.subr.mxu0 0.0
    %943 = vmatpush1.msra.mxu0 0.0
    %944 = vmatprep.subr.mxu0 0.0
    %945 = vmatpush1.msra.mxu0 0.0
    %946 = vmatprep.subr.mxu0 0.0
    %947 = vmatpush1.msra.mxu0 0.0
    %948 = vmatprep.subr.mxu0 0.0
    %949 = vmatpush1.msra.mxu0 0.0
    %950 = vmatprep.subr.mxu0 0.0
    %951 = vmatpush1.msra.mxu0 0.0
    %952 = vmatprep.subr.mxu0 0.0
    %953 = vmatpush1.msra.mxu0 0.0
    %954 = vmatprep.subr.mxu0 0.0
    %955 = vmatpush1.msra.mxu0 0.0
    %956 = vmatprep.subr.mxu0 0.0
    %957 = vmatpush1.msra.mxu0 0.0
    %958 = vmatprep.subr.mxu0 0.0
    %959 = vmatpush1.msra.mxu0 0.0
    %960 = vmatprep.subr.mxu0 0.0
    %961 = vmatpush1.msra.mxu0 0.0
    %962 = vmatprep.subr.mxu0 0.0
    %963 = vmatpush1.msra.mxu0 0.0
    %964 = vmatprep.subr.mxu0 0.0
    %965 = vmatpush1.msra.mxu0 0.0
    %966 = vmatprep.subr.mxu0 0.0
    %967 = vmatpush1.msra.mxu0 0.0
    %968 = vmatprep.subr.mxu0 0.0
    %969 = vmatpush1.msra.mxu0 0.0
    %970 = vmatprep.subr.mxu0 0.0
    %971 = vmatpush1.msra.mxu0 0.0
    %972 = vmatprep.subr.mxu0 0.0
    %973 = vmatpush1.msra.mxu0 0.0
    %974 = vmatprep.subr.mxu0 0.0
    %975 = vmatpush1.msra.mxu0 0.0
    %976 = vmatprep.subr.mxu0 0.0
    %977 = vmatpush1.msra.mxu0 0.0
    %978 = vmatprep.subr.mxu0 0.0
    %979 = vmatpush1.msra.mxu0 0.0
    %980 = vmatprep.subr.mxu0 0.0
    %981 = vmatpush1.msra.mxu0 0.0
    %982 = vmatprep.subr.mxu0 0.0
    %983 = vmatpush1.msra.mxu0 0.0
    %984 = vmatprep.subr.mxu0 0.0
    %985 = vmatpush1.msra.mxu0 0.0
    %986 = vmatprep.subr.mxu0 0.0
    %987 = vmatpush1.msra.mxu0 0.0
    %988 = vmatprep.subr.mxu0 0.0
    %989 = vmatpush1.msra.mxu0 0.0
    %990 = vmatprep.mubr.f32.mxu0 0.0
    %991 = vmatmul.mubr.f32.gmra.mrb[0].mxu0 %v903
    %v992 = vpop.f32.mrb[0].mxu0
    %v993 = vadd.f32 0.0, %v992
    %v994 = vpop.f32.mrb[0].mxu0
    %v995 = vadd.f32 0.0, %v994
    %996 = vmatprep.mubr.f32.mxu0 0.0
    %997 = vmatmul.mubr.f32.gmra.mrb[0].mxu0 %v906
    %v998 = vpop.f32.mrb[0].mxu0
    %v999 = vadd.f32 0.0, %v998
    %v1000 = vpop.f32.mrb[0].mxu0
    %v1001 = vadd.f32 0.0, %v1000
    %1002 = vmatprep.mubr.f32.mxu0 0.0
    %1003 = vmatmul.mubr.f32.gmra.mrb[0].mxu0 %v909
    %v1004 = vpop.f32.mrb[0].mxu0
    %v1005 = vadd.f32 0.0, %v1004
    %v1006 = vpop.f32.mrb[0].mxu0
    %v1007 = vadd.f32 0.0, %v1006
    %1008 = vmatprep.mubr.f32.mxu0 0.0
    %1009 = vmatmul.mubr.f32.gmra.mrb[0].mxu0 %v912
    %v1010 = vpop.f32.mrb[0].mxu0
    %v1011 = vadd.f32 0.0, %v1010
    %v1012 = vpop.f32.mrb[0].mxu0
    %v1013 = vadd.f32 0.0, %v1012
    %1014 = vmatprep.mubr.f32.mxu0 0.0
    %1015 = vmatmul.mubr.f32.gmra.mrb[0].mxu0 %v915
    %v1016 = vpop.f32.mrb[0].mxu0
    %v1017 = vadd.f32 0.0, %v1016
    %v1018 = vpop.f32.mrb[0].mxu0
    %v1019 = vadd.f32 0.0, %v1018
    %1020 = vmatprep.mubr.f32.mxu0 0.0
    %1021 = vmatmul.mubr.f32.gmra.mrb[0].mxu0 %v918
    %v1022 = vpop.f32.mrb[0].mxu0
    %v1023 = vadd.f32 0.0, %v1022
    %v1024 = vpop.f32.mrb[0].mxu0
    %v1025 = vadd.f32 0.0, %v1024
    %1026 = vmatprep.mubr.f32.mxu0 0.0
    %1027 = vmatmul.mubr.f32.gmra.mrb[0].mxu0 %v921
    %v1028 = vpop.f32.mrb[0].mxu0
    %v1029 = vadd.f32 0.0, %v1028
    %v1030 = vpop.f32.mrb[0].mxu0
    %v1031 = vadd.f32 0.0, %v1030
    %1032 = vmatprep.mubr.f32.mxu0 0.0
    %1033 = vmatmul.mubr.f32.gmra.mrb[0].mxu0 %v924
    %v1034 = vpop.f32.mrb[0].mxu0
    %v1035 = vadd.f32 0.0, %v1034
    %v1036 = vpop.f32.mrb[0].mxu0
    %v1037 = vadd.f32 0.0, %v1036
    %1038 = vdwg.mxu0
    %v1039 = vadd.f32 %v993, %v759
    %v1040 = vadd.f32 %v999, %v764
    %v1041 = vadd.f32 %v1005, %v769
    %v1042 = vadd.f32 %v1011, %v774
    %v1043 = vadd.f32 %v1017, %v779
    %v1044 = vadd.f32 %v1023, %v784
    %v1045 = vadd.f32 %v1029, %v789
    %v1046 = vadd.f32 %v1035, %v794
    %v1047 = vadd.f32 %v995, %v759
    %v1048 = vadd.f32 %v1001, %v764
    %v1049 = vadd.f32 %v1007, %v769
    %v1050 = vadd.f32 %v1013, %v774
    %v1051 = vadd.f32 %v1019, %v779
    %v1052 = vadd.f32 %v1025, %v784
    %v1053 = vadd.f32 %v1031, %v789
    %v1054 = vadd.f32 %v1037, %v794
    %v1055 = vmul.f32 %v864, %v1039
    %v1056 = vmul.f32 %v869, %v1040
    %v1057 = vmul.f32 %v874, %v1041
    %v1058 = vmul.f32 %v879, %v1042
    %v1059 = vmul.f32 %v884, %v1043
    %v1060 = vmul.f32 %v889, %v1044
    %v1061 = vmul.f32 %v894, %v1045
    %v1062 = vmul.f32 %v899, %v1046
    %1063 = vmatprep.subr.mxu0 0.0
    %1064 = vmatpush1.msra.mxu0 %v354
    %1065 = vmatprep.subr.mxu0 0.0
    %1066 = vmatpush1.msra.mxu0 %v355
    %1067 = vmatprep.subr.mxu0 0.0
    %1068 = vmatpush1.msra.mxu0 %v356
    %1069 = vmatprep.subr.mxu0 0.0
    %1070 = vmatpush1.msra.mxu0 %v357
    %1071 = vmatprep.subr.mxu0 0.0
    %1072 = vmatpush1.msra.mxu0 %v358
    %1073 = vmatprep.subr.mxu0 0.0
    %1074 = vmatpush1.msra.mxu0 %v359
    %1075 = vmatprep.subr.mxu0 0.0
    %1076 = vmatpush1.msra.mxu0 %v360
    %1077 = vmatprep.subr.mxu0 0.0
    %1078 = vmatpush1.msra.mxu0 %v361
    %1079 = vmatprep.subr.mxu0 0.0
    %1080 = vmatpush1.msra.mxu0 %v362
    %1081 = vmatprep.subr.mxu0 0.0
    %1082 = vmatpush1.msra.mxu0 %v363
    %1083 = vmatprep.subr.mxu0 0.0
    %1084 = vmatpush1.msra.mxu0 %v364
    %1085 = vmatprep.subr.mxu0 0.0
    %1086 = vmatpush1.msra.mxu0 %v365
    %1087 = vmatprep.subr.mxu0 0.0
    %1088 = vmatpush1.msra.mxu0 %v366
    %1089 = vmatprep.subr.mxu0 0.0
    %1090 = vmatpush1.msra.mxu0 %v367
    %1091 = vmatprep.subr.mxu0 0.0
    %1092 = vmatpush1.msra.mxu0 %v368
    %1093 = vmatprep.subr.mxu0 0.0
    %1094 = vmatpush1.msra.mxu0 %v369
    %1095 = vmatprep.subr.mxu0 0.0
    %1096 = vmatpush1.msra.mxu0 0.0
    %1097 = vmatprep.subr.mxu0 0.0
    %1098 = vmatpush1.msra.mxu0 0.0
    %1099 = vmatprep.subr.mxu0 0.0
    %1100 = vmatpush1.msra.mxu0 0.0
    %1101 = vmatprep.subr.mxu0 0.0
    %1102 = vmatpush1.msra.mxu0 0.0
    %1103 = vmatprep.subr.mxu0 0.0
    %1104 = vmatpush1.msra.mxu0 0.0
    %1105 = vmatprep.subr.mxu0 0.0
    %1106 = vmatpush1.msra.mxu0 0.0
    %1107 = vmatprep.subr.mxu0 0.0
    %1108 = vmatpush1.msra.mxu0 0.0
    %1109 = vmatprep.subr.mxu0 0.0
    %1110 = vmatpush1.msra.mxu0 0.0
    %1111 = vmatprep.subr.mxu0 0.0
    %1112 = vmatpush1.msra.mxu0 0.0
    %1113 = vmatprep.subr.mxu0 0.0
    %1114 = vmatpush1.msra.mxu0 0.0
    %1115 = vmatprep.subr.mxu0 0.0
    %1116 = vmatpush1.msra.mxu0 0.0
    %1117 = vmatprep.subr.mxu0 0.0
    %1118 = vmatpush1.msra.mxu0 0.0
    %1119 = vmatprep.subr.mxu0 0.0
    %1120 = vmatpush1.msra.mxu0 0.0
    %1121 = vmatprep.subr.mxu0 0.0
    %1122 = vmatpush1.msra.mxu0 0.0
    %1123 = vmatprep.subr.mxu0 0.0
    %1124 = vmatpush1.msra.mxu0 0.0
    %1125 = vmatprep.subr.mxu0 0.0
    %1126 = vmatpush1.msra.mxu0 0.0
    %1127 = vmatprep.mubr.f32.mxu0 0.0
    %1128 = vmatmul.mubr.f32.gmra.mrb[0].mxu0 %v1055
    %v1129 = vpop.f32.mrb[0].mxu0
    %v1130 = vadd.f32 0.0, %v1129
    %v1131 = vpop.f32.mrb[0].mxu0
    %1132 = vmatprep.mubr.f32.mxu0 0.0
    %1133 = vmatmul.mubr.f32.gmra.mrb[0].mxu0 %v1056
    %v1134 = vpop.f32.mrb[0].mxu0
    %v1135 = vadd.f32 0.0, %v1134
    %v1136 = vpop.f32.mrb[0].mxu0
    %1137 = vmatprep.mubr.f32.mxu0 0.0
    %1138 = vmatmul.mubr.f32.gmra.mrb[0].mxu0 %v1057
    %v1139 = vpop.f32.mrb[0].mxu0
    %v1140 = vadd.f32 0.0, %v1139
    %v1141 = vpop.f32.mrb[0].mxu0
    %1142 = vmatprep.mubr.f32.mxu0 0.0
    %1143 = vmatmul.mubr.f32.gmra.mrb[0].mxu0 %v1058
    %v1144 = vpop.f32.mrb[0].mxu0
    %v1145 = vadd.f32 0.0, %v1144
    %v1146 = vpop.f32.mrb[0].mxu0
    %1147 = vmatprep.mubr.f32.mxu0 0.0
    %1148 = vmatmul.mubr.f32.gmra.mrb[0].mxu0 %v1059
    %v1149 = vpop.f32.mrb[0].mxu0
    %v1150 = vadd.f32 0.0, %v1149
    %v1151 = vpop.f32.mrb[0].mxu0
    %1152 = vmatprep.mubr.f32.mxu0 0.0
    %1153 = vmatmul.mubr.f32.gmra.mrb[0].mxu0 %v1060
    %v1154 = vpop.f32.mrb[0].mxu0
    %v1155 = vadd.f32 0.0, %v1154
    %v1156 = vpop.f32.mrb[0].mxu0
    %1157 = vmatprep.mubr.f32.mxu0 0.0
    %1158 = vmatmul.mubr.f32.gmra.mrb[0].mxu0 %v1061
    %v1159 = vpop.f32.mrb[0].mxu0
    %v1160 = vadd.f32 0.0, %v1159
    %v1161 = vpop.f32.mrb[0].mxu0
    %1162 = vmatprep.mubr.f32.mxu0 0.0
    %1163 = vmatmul.mubr.f32.gmra.mrb[0].mxu0 %v1062
    %v1164 = vpop.f32.mrb[0].mxu0
    %v1165 = vadd.f32 0.0, %v1164
    %v1166 = vpop.f32.mrb[0].mxu0
    %1167 = vdwg.mxu0
    %v1168 = vsel %vm469, %v1130, -inf
    %v1169 = vsel %vm469, %v1135, -inf
    %v1170 = vsel %vm469, %v1140, -inf
    %v1171 = vsel %vm469, %v1145, -inf
    %v1172 = vsel %vm469, %v1150, -inf
    %v1173 = vmax.f32 %v1168, %v1172
    %v1174 = vsel %vm469, %v1155, -inf
    %v1175 = vmax.f32 %v1169, %v1174
    %v1176 = vsel %vm469, %v1160, -inf
    %v1177 = vmax.f32 %v1170, %v1176
    %v1178 = vsel %vm469, %v1165, -inf
    %v1179 = vmax.f32 %v1171, %v1178
    %v1180 = vmax.f32 %v1173, %v1175
    %v1181 = vmax.f32 %v1177, %v1179
    %v1182 = vmax.f32 %v1180, %v1181
    %v1183 = vrot.slane %v1182, 4
    %v1184 = vmax.f32 %v1182, %v1183
    %v1185 = vrot.slane %v1184, 2
    %v1186 = vmax.f32 %v1184, %v1185
    %v1187 = vrot.slane %v1186, 1
    %v1188 = vmax.f32 %v1186, %v1187
    %v1189 = vsub.f32 %v1130, %v1188
    %v1190 = vsub.f32 %v1135, %v1188
    %v1191 = vsub.f32 %v1140, %v1188
    %v1192 = vsub.f32 %v1145, %v1188
    %v1193 = vsub.f32 %v1150, %v1188
    %v1194 = vsub.f32 %v1155, %v1188
    %v1195 = vsub.f32 %v1160, %v1188
    %v1196 = vsub.f32 %v1165, %v1188
    %v1197 = vmul.f32 %v1189, 1.442695
    %v1198 = vpow.pop %v1197
    %v1199 = vmul.f32 %v1190, 1.442695
    %v1200 = vpow.pop %v1199
    %v1201 = vmul.f32 %v1191, 1.442695
    %v1202 = vpow.pop %v1201
    %v1203 = vmul.f32 %v1192, 1.442695
    %v1204 = vpow.pop %v1203
    %v1205 = vmul.f32 %v1193, 1.442695
    %v1206 = vpow.pop %v1205
    %v1207 = vmul.f32 %v1194, 1.442695
    %v1208 = vpow.pop %v1207
    %v1209 = vmul.f32 %v1195, 1.442695
    %v1210 = vpow.pop %v1209
    %v1211 = vmul.f32 %v1196, 1.442695
    %v1212 = vpow.pop %v1211
    %vm1213 = vcmask 523264
    %v1215 = vsel %vm1213, %v232, 0
    %v1218 = vsel %vm1213, %v237, 0
    %v1221 = vsel %vm1213, %v242, 0
    %v1224 = vsel %vm1213, %v247, 0
    %v1227 = vsel %vm1213, %v252, 0
    %v1230 = vsel %vm1213, %v257, 0
    %v1233 = vsel %vm1213, %v262, 0
    %v1236 = vsel %vm1213, %v267, 0
    %1238 = vmatprep.subr.mxu0 0.0
    %1239 = vmatpush1.msra.mxu0 %v1198
    %1240 = vmatprep.subr.mxu0 0.0
    %1241 = vmatpush1.msra.mxu0 %v1200
    %1242 = vmatprep.subr.mxu0 0.0
    %1243 = vmatpush1.msra.mxu0 %v1202
    %1244 = vmatprep.subr.mxu0 0.0
    %1245 = vmatpush1.msra.mxu0 %v1204
    %1246 = vmatprep.subr.mxu0 0.0
    %1247 = vmatpush1.msra.mxu0 %v1206
    %1248 = vmatprep.subr.mxu0 0.0
    %1249 = vmatpush1.msra.mxu0 %v1208
    %1250 = vmatprep.subr.mxu0 0.0
    %1251 = vmatpush1.msra.mxu0 %v1210
    %1252 = vmatprep.subr.mxu0 0.0
    %1253 = vmatpush1.msra.mxu0 %v1212
    %1254 = vmatprep.subr.mxu0 0.0
    %1255 = vmatpush1.msra.mxu0 0.0
    %1256 = vmatprep.subr.mxu0 0.0
    %1257 = vmatpush1.msra.mxu0 0.0
    %1258 = vmatprep.subr.mxu0 0.0
    %1259 = vmatpush1.msra.mxu0 0.0
    %1260 = vmatprep.subr.mxu0 0.0
    %1261 = vmatpush1.msra.mxu0 0.0
    %1262 = vmatprep.subr.mxu0 0.0
    %1263 = vmatpush1.msra.mxu0 0.0
    %1264 = vmatprep.subr.mxu0 0.0
    %1265 = vmatpush1.msra.mxu0 0.0
    %1266 = vmatprep.subr.mxu0 0.0
    %1267 = vmatpush1.msra.mxu0 0.0
    %1268 = vmatprep.subr.mxu0 0.0
    %1269 = vmatpush1.msra.mxu0 0.0
    %1270 = vmatprep.subr.mxu0 0.0
    %1271 = vmatpush1.msra.mxu0 0.0
    %1272 = vmatprep.subr.mxu0 0.0
    %1273 = vmatpush1.msra.mxu0 0.0
    %1274 = vmatprep.subr.mxu0 0.0
    %1275 = vmatpush1.msra.mxu0 0.0
    %1276 = vmatprep.subr.mxu0 0.0
    %1277 = vmatpush1.msra.mxu0 0.0
    %1278 = vmatprep.subr.mxu0 0.0
    %1279 = vmatpush1.msra.mxu0 0.0
    %1280 = vmatprep.subr.mxu0 0.0
    %1281 = vmatpush1.msra.mxu0 0.0
    %1282 = vmatprep.subr.mxu0 0.0
    %1283 = vmatpush1.msra.mxu0 0.0
    %1284 = vmatprep.subr.mxu0 0.0
    %1285 = vmatpush1.msra.mxu0 0.0
    %1286 = vmatprep.subr.mxu0 0.0
    %1287 = vmatpush1.msra.mxu0 0.0
    %1288 = vmatprep.subr.mxu0 0.0
    %1289 = vmatpush1.msra.mxu0 0.0
    %1290 = vmatprep.subr.mxu0 0.0
    %1291 = vmatpush1.msra.mxu0 0.0
    %1292 = vmatprep.subr.mxu0 0.0
    %1293 = vmatpush1.msra.mxu0 0.0
    %1294 = vmatprep.subr.mxu0 0.0
    %1295 = vmatpush1.msra.mxu0 0.0
    %1296 = vmatprep.subr.mxu0 0.0
    %1297 = vmatpush1.msra.mxu0 0.0
    %1298 = vmatprep.subr.mxu0 0.0
    %1299 = vmatpush1.msra.mxu0 0.0
    %1300 = vmatprep.subr.mxu0 0.0
    %1301 = vmatpush1.msra.mxu0 0.0
    %1302 = vmatprep.mubr.f32.mxu0 0.0
    %1303 = vmatmul.mubr.f32.gmra.mrb[0].mxu0 %v1215
    %v1304 = vpop.f32.mrb[0].mxu0
    %v1305 = vadd.f32 0.0, %v1304
    %v1306 = vpop.f32.mrb[0].mxu0
    %1307 = vmatprep.mubr.f32.mxu0 0.0
    %1308 = vmatmul.mubr.f32.gmra.mrb[0].mxu0 %v1218
    %v1309 = vpop.f32.mrb[0].mxu0
    %v1310 = vadd.f32 0.0, %v1309
    %v1311 = vpop.f32.mrb[0].mxu0
    %1312 = vmatprep.mubr.f32.mxu0 0.0
    %1313 = vmatmul.mubr.f32.gmra.mrb[0].mxu0 %v1221
    %v1314 = vpop.f32.mrb[0].mxu0
    %v1315 = vadd.f32 0.0, %v1314
    %v1316 = vpop.f32.mrb[0].mxu0
    %1317 = vmatprep.mubr.f32.mxu0 0.0
    %1318 = vmatmul.mubr.f32.gmra.mrb[0].mxu0 %v1224
    %v1319 = vpop.f32.mrb[0].mxu0
    %v1320 = vadd.f32 0.0, %v1319
    %v1321 = vpop.f32.mrb[0].mxu0
    %1322 = vmatprep.mubr.f32.mxu0 0.0
    %1323 = vmatmul.mubr.f32.gmra.mrb[0].mxu0 %v1227
    %v1324 = vpop.f32.mrb[0].mxu0
    %v1325 = vadd.f32 0.0, %v1324
    %v1326 = vpop.f32.mrb[0].mxu0
    %1327 = vmatprep.mubr.f32.mxu0 0.0
    %1328 = vmatmul.mubr.f32.gmra.mrb[0].mxu0 %v1230
    %v1329 = vpop.f32.mrb[0].mxu0
    %v1330 = vadd.f32 0.0, %v1329
    %v1331 = vpop.f32.mrb[0].mxu0
    %1332 = vmatprep.mubr.f32.mxu0 0.0
    %1333 = vmatmul.mubr.f32.gmra.mrb[0].mxu0 %v1233
    %v1334 = vpop.f32.mrb[0].mxu0
    %v1335 = vadd.f32 0.0, %v1334
    %v1336 = vpop.f32.mrb[0].mxu0
    %1337 = vmatprep.mubr.f32.mxu0 0.0
    %1338 = vmatmul.mubr.f32.gmra.mrb[0].mxu0 %v1236
    %v1339 = vpop.f32.mrb[0].mxu0
    %v1340 = vadd.f32 0.0, %v1339
    %v1341 = vpop.f32.mrb[0].mxu0
    %1342 = vdwg.mxu0
    %v1343 = vmax.f32 %v1305, 1e-30
    %v1344 = vmax.f32 %v1310, 1e-30
    %v1345 = vmax.f32 %v1315, 1e-30
    %v1346 = vmax.f32 %v1320, 1e-30
    %v1347 = vmax.f32 %v1325, 1e-30
    %v1348 = vmax.f32 %v1330, 1e-30
    %v1349 = vmax.f32 %v1335, 1e-30
    %v1350 = vmax.f32 %v1340, 1e-30
    %v1351 = vrcp.pop %v1343
    %v1352 = vrcp.pop %v1344
    %v1353 = vrcp.pop %v1345
    %v1354 = vrcp.pop %v1346
    %v1355 = vrcp.pop %v1347
    %v1356 = vrcp.pop %v1348
    %v1357 = vrcp.pop %v1349
    %v1358 = vrcp.pop %v1350
    %v1359 = vmul.f32 %v1198, %v1351
    %v1360 = vmul.f32 %v1200, %v1352
    %v1361 = vmul.f32 %v1202, %v1353
    %v1362 = vmul.f32 %v1204, %v1354
    %v1363 = vmul.f32 %v1206, %v1355
    %v1364 = vmul.f32 %v1208, %v1356
    %v1365 = vmul.f32 %v1210, %v1357
    %v1366 = vmul.f32 %v1212, %v1358
    %v1368 = vsel %vm469, %v1359, 0
    %v1371 = vsel %vm469, %v1360, 0
    %v1374 = vsel %vm469, %v1361, 0
    %v1377 = vsel %vm469, %v1362, 0
    %v1380 = vsel %vm469, %v1363, 0
    %v1383 = vsel %vm469, %v1364, 0
    %v1386 = vsel %vm469, %v1365, 0
    %v1389 = vsel %vm469, %v1366, 0
    %v1392 = vsel %vm469, %v354, 0
    %v1395 = vsel %vm469, %v355, 0
    %v1398 = vsel %vm469, %v356, 0
    %v1401 = vsel %vm469, %v357, 0
    %v1404 = vsel %vm469, %v358, 0
    %v1407 = vsel %vm469, %v359, 0
    %v1410 = vsel %vm469, %v360, 0
    %v1413 = vsel %vm469, %v361, 0
    %v1416 = vsel %vm469, %v362, 0
    %v1419 = vsel %vm469, %v363, 0
    %v1422 = vsel %vm469, %v364, 0
    %v1425 = vsel %vm469, %v365, 0
    %v1428 = vsel %vm469, %v366, 0
    %v1431 = vsel %vm469, %v367, 0
    %v1434 = vsel %vm469, %v368, 0
    %v1437 = vsel %vm469, %v369, 0
    %1439 = vmatprep.subr.mxu0 0.0
    %1440 = vmatpush1.xpose.msra.mxu0 %v1392
    %1441 = vmatprep.subr.mxu0 0.0
    %1442 = vmatpush1.xpose.msra.mxu0 %v1395
    %1443 = vmatprep.subr.mxu0 0.0
    %1444 = vmatpush1.xpose.msra.mxu0 %v1398
    %1445 = vmatprep.subr.mxu0 0.0
    %1446 = vmatpush1.xpose.msra.mxu0 %v1401
    %1447 = vmatprep.subr.mxu0 0.0
    %1448 = vmatpush1.xpose.msra.mxu0 %v1404
    %1449 = vmatprep.subr.mxu0 0.0
    %1450 = vmatpush1.xpose.msra.mxu0 %v1407
    %1451 = vmatprep.subr.mxu0 0.0
    %1452 = vmatpush1.xpose.msra.mxu0 %v1410
    %1453 = vmatprep.subr.mxu0 0.0
    %1454 = vmatpush1.xpose.msra.mxu0 %v1413
    %1455 = vmatprep.subr.mxu0 0.0
    %1456 = vmatpush1.xpose.msra.mxu0 %v1416
    %1457 = vmatprep.subr.mxu0 0.0
    %1458 = vmatpush1.xpose.msra.mxu0 %v1419
    %1459 = vmatprep.subr.mxu0 0.0
    %1460 = vmatpush1.xpose.msra.mxu0 %v1422
    %1461 = vmatprep.subr.mxu0 0.0
    %1462 = vmatpush1.xpose.msra.mxu0 %v1425
    %1463 = vmatprep.subr.mxu0 0.0
    %1464 = vmatpush1.xpose.msra.mxu0 %v1428
    %1465 = vmatprep.subr.mxu0 0.0
    %1466 = vmatpush1.xpose.msra.mxu0 %v1431
    %1467 = vmatprep.subr.mxu0 0.0
    %1468 = vmatpush1.xpose.msra.mxu0 %v1434
    %1469 = vmatprep.subr.mxu0 0.0
    %1470 = vmatpush1.xpose.msra.mxu0 %v1437
    %1471 = vmatprep.subr.mxu0 0.0
    %1472 = vmatpush1.xpose.msra.mxu0 0.0
    %1473 = vmatprep.subr.mxu0 0.0
    %1474 = vmatpush1.xpose.msra.mxu0 0.0
    %1475 = vmatprep.subr.mxu0 0.0
    %1476 = vmatpush1.xpose.msra.mxu0 0.0
    %1477 = vmatprep.subr.mxu0 0.0
    %1478 = vmatpush1.xpose.msra.mxu0 0.0
    %1479 = vmatprep.subr.mxu0 0.0
    %1480 = vmatpush1.xpose.msra.mxu0 0.0
    %1481 = vmatprep.subr.mxu0 0.0
    %1482 = vmatpush1.xpose.msra.mxu0 0.0
    %1483 = vmatprep.subr.mxu0 0.0
    %1484 = vmatpush1.xpose.msra.mxu0 0.0
    %1485 = vmatprep.subr.mxu0 0.0
    %1486 = vmatpush1.xpose.msra.mxu0 0.0
    %1487 = vmatprep.subr.mxu0 0.0
    %1488 = vmatpush1.xpose.msra.mxu0 0.0
    %1489 = vmatprep.subr.mxu0 0.0
    %1490 = vmatpush1.xpose.msra.mxu0 0.0
    %1491 = vmatprep.subr.mxu0 0.0
    %1492 = vmatpush1.xpose.msra.mxu0 0.0
    %1493 = vmatprep.subr.mxu0 0.0
    %1494 = vmatpush1.xpose.msra.mxu0 0.0
    %1495 = vmatprep.subr.mxu0 0.0
    %1496 = vmatpush1.xpose.msra.mxu0 0.0
    %1497 = vmatprep.subr.mxu0 0.0
    %1498 = vmatpush1.xpose.msra.mxu0 0.0
    %1499 = vmatprep.subr.mxu0 0.0
    %1500 = vmatpush1.xpose.msra.mxu0 0.0
    %1501 = vmatprep.subr.mxu0 0.0
    %1502 = vmatpush1.xpose.msra.mxu0 0.0
    %1503 = vmatprep.mubr.f32.mxu0 0.0
    %1504 = vmatmul.mubr.f32.gmra.mrb[0].mxu0 %v1368
    %v1505 = vpop.f32.mrb[0].mxu0
    %v1506 = vadd.f32 0.0, %v1505
    %v1507 = vpop.f32.mrb[0].mxu0
    %1508 = vmatprep.mubr.f32.mxu0 0.0
    %1509 = vmatmul.mubr.f32.gmra.mrb[0].mxu0 %v1371
    %v1510 = vpop.f32.mrb[0].mxu0
    %v1511 = vadd.f32 0.0, %v1510
    %v1512 = vpop.f32.mrb[0].mxu0
    %1513 = vmatprep.mubr.f32.mxu0 0.0
    %1514 = vmatmul.mubr.f32.gmra.mrb[0].mxu0 %v1374
    %v1515 = vpop.f32.mrb[0].mxu0
    %v1516 = vadd.f32 0.0, %v1515
    %v1517 = vpop.f32.mrb[0].mxu0
    %1518 = vmatprep.mubr.f32.mxu0 0.0
    %1519 = vmatmul.mubr.f32.gmra.mrb[0].mxu0 %v1377
    %v1520 = vpop.f32.mrb[0].mxu0
    %v1521 = vadd.f32 0.0, %v1520
    %v1522 = vpop.f32.mrb[0].mxu0
    %1523 = vmatprep.mubr.f32.mxu0 0.0
    %1524 = vmatmul.mubr.f32.gmra.mrb[0].mxu0 %v1380
    %v1525 = vpop.f32.mrb[0].mxu0
    %v1526 = vadd.f32 0.0, %v1525
    %v1527 = vpop.f32.mrb[0].mxu0
    %1528 = vmatprep.mubr.f32.mxu0 0.0
    %1529 = vmatmul.mubr.f32.gmra.mrb[0].mxu0 %v1383
    %v1530 = vpop.f32.mrb[0].mxu0
    %v1531 = vadd.f32 0.0, %v1530
    %v1532 = vpop.f32.mrb[0].mxu0
    %1533 = vmatprep.mubr.f32.mxu0 0.0
    %1534 = vmatmul.mubr.f32.gmra.mrb[0].mxu0 %v1386
    %v1535 = vpop.f32.mrb[0].mxu0
    %v1536 = vadd.f32 0.0, %v1535
    %v1537 = vpop.f32.mrb[0].mxu0
    %1538 = vmatprep.mubr.f32.mxu0 0.0
    %1539 = vmatmul.mubr.f32.gmra.mrb[0].mxu0 %v1389
    %v1540 = vpop.f32.mrb[0].mxu0
    %v1541 = vadd.f32 0.0, %v1540
    %v1542 = vpop.f32.mrb[0].mxu0
    %1543 = vdwg.mxu0
    %v1544 = vmul.f32 %v1506, %v1047
    %v1545 = vmul.f32 %v1511, %v1048
    %v1546 = vmul.f32 %v1516, %v1049
    %v1547 = vmul.f32 %v1521, %v1050
    %v1548 = vmul.f32 %v1526, %v1051
    %v1549 = vmul.f32 %v1531, %v1052
    %v1550 = vmul.f32 %v1536, %v1053
    %v1551 = vmul.f32 %v1541, %v1054
    %1552 = vxpose.xlu0.b32.start [1/16] %v132, 128
    %1553 = vxpose.xlu0.b32.cont [2/16] %v133, 128
    %1554 = vxpose.xlu0.b32.cont [3/16] %v134, 128
    %1555 = vxpose.xlu0.b32.cont [4/16] %v135, 128
    %1556 = vxpose.xlu0.b32.cont [5/16] %v136, 128
    %1557 = vxpose.xlu0.b32.cont [6/16] %v137, 128
    %1558 = vxpose.xlu0.b32.cont [7/16] %v138, 128
    %1559 = vxpose.xlu0.b32.cont [8/16] %v139, 128
    %1560 = vxpose.xlu0.b32.cont [9/16] 0.0, 128
    %1561 = vxpose.xlu0.b32.cont [10/16] 0.0, 128
    %1562 = vxpose.xlu0.b32.cont [11/16] 0.0, 128
    %1563 = vxpose.xlu0.b32.cont [12/16] 0.0, 128
    %1564 = vxpose.xlu0.b32.cont [13/16] 0.0, 128
    %1565 = vxpose.xlu0.b32.cont [14/16] 0.0, 128
    %1566 = vxpose.xlu0.b32.cont [15/16] 0.0, 128
    %1567 = vxpose.xlu0.b32.end [16/16] 0.0, 128
    %v1568 = vpop.trf.xlu0
    %v1569 = vpop.trf.xlu0
    %v1570 = vpop.trf.xlu0
    %v1571 = vpop.trf.xlu0
    %v1572 = vpop.trf.xlu0
    %v1573 = vpop.trf.xlu0
    %v1574 = vpop.trf.xlu0
    %v1575 = vpop.trf.xlu0
    %v1576 = vpop.trf.xlu0
    %v1577 = vpop.trf.xlu0
    %v1578 = vpop.trf.xlu0
    %v1579 = vpop.trf.xlu0
    %v1580 = vpop.trf.xlu0
    %v1581 = vpop.trf.xlu0
    %v1582 = vpop.trf.xlu0
    %v1583 = vpop.trf.xlu0
    %v1585 = vsel %vm1213, %v1568, 0
    %v1588 = vsel %vm1213, %v1569, 0
    %v1591 = vsel %vm1213, %v1570, 0
    %v1594 = vsel %vm1213, %v1571, 0
    %1596 = vmatprep.subr.mxu0 0.0
    %1597 = vmatpush1.msra.mxu0 %v1544
    %1598 = vmatprep.subr.mxu0 0.0
    %1599 = vmatpush1.msra.mxu0 %v1545
    %1600 = vmatprep.subr.mxu0 0.0
    %1601 = vmatpush1.msra.mxu0 %v1546
    %1602 = vmatprep.subr.mxu0 0.0
    %1603 = vmatpush1.msra.mxu0 %v1547
    %1604 = vmatprep.subr.mxu0 0.0
    %1605 = vmatpush1.msra.mxu0 %v1548
    %1606 = vmatprep.subr.mxu0 0.0
    %1607 = vmatpush1.msra.mxu0 %v1549
    %1608 = vmatprep.subr.mxu0 0.0
    %1609 = vmatpush1.msra.mxu0 %v1550
    %1610 = vmatprep.subr.mxu0 0.0
    %1611 = vmatpush1.msra.mxu0 %v1551
    %1612 = vmatprep.subr.mxu0 0.0
    %1613 = vmatpush1.msra.mxu0 0.0
    %1614 = vmatprep.subr.mxu0 0.0
    %1615 = vmatpush1.msra.mxu0 0.0
    %1616 = vmatprep.subr.mxu0 0.0
    %1617 = vmatpush1.msra.mxu0 0.0
    %1618 = vmatprep.subr.mxu0 0.0
    %1619 = vmatpush1.msra.mxu0 0.0
    %1620 = vmatprep.subr.mxu0 0.0
    %1621 = vmatpush1.msra.mxu0 0.0
    %1622 = vmatprep.subr.mxu0 0.0
    %1623 = vmatpush1.msra.mxu0 0.0
    %1624 = vmatprep.subr.mxu0 0.0
    %1625 = vmatpush1.msra.mxu0 0.0
    %1626 = vmatprep.subr.mxu0 0.0
    %1627 = vmatpush1.msra.mxu0 0.0
    %1628 = vmatprep.subr.mxu0 0.0
    %1629 = vmatpush1.msra.mxu0 0.0
    %1630 = vmatprep.subr.mxu0 0.0
    %1631 = vmatpush1.msra.mxu0 0.0
    %1632 = vmatprep.subr.mxu0 0.0
    %1633 = vmatpush1.msra.mxu0 0.0
    %1634 = vmatprep.subr.mxu0 0.0
    %1635 = vmatpush1.msra.mxu0 0.0
    %1636 = vmatprep.subr.mxu0 0.0
    %1637 = vmatpush1.msra.mxu0 0.0
    %1638 = vmatprep.subr.mxu0 0.0
    %1639 = vmatpush1.msra.mxu0 0.0
    %1640 = vmatprep.subr.mxu0 0.0
    %1641 = vmatpush1.msra.mxu0 0.0
    %1642 = vmatprep.subr.mxu0 0.0
    %1643 = vmatpush1.msra.mxu0 0.0
    %1644 = vmatprep.subr.mxu0 0.0
    %1645 = vmatpush1.msra.mxu0 0.0
    %1646 = vmatprep.subr.mxu0 0.0
    %1647 = vmatpush1.msra.mxu0 0.0
    %1648 = vmatprep.subr.mxu0 0.0
    %1649 = vmatpush1.msra.mxu0 0.0
    %1650 = vmatprep.subr.mxu0 0.0
    %1651 = vmatpush1.msra.mxu0 0.0
    %1652 = vmatprep.subr.mxu0 0.0
    %1653 = vmatpush1.msra.mxu0 0.0
    %1654 = vmatprep.subr.mxu0 0.0
    %1655 = vmatpush1.msra.mxu0 0.0
    %1656 = vmatprep.subr.mxu0 0.0
    %1657 = vmatpush1.msra.mxu0 0.0
    %1658 = vmatprep.subr.mxu0 0.0
    %1659 = vmatpush1.msra.mxu0 0.0
    %1660 = vmatprep.mubr.f32.mxu0 0.0
    %1661 = vmatmul.mubr.f32.gmra.mrb[0].mxu0 %v1585
    %v1662 = vpop.f32.mrb[0].mxu0
    %v1663 = vadd.f32 %v640, %v1662
    %v1664 = vpop.f32.mrb[0].mxu0
    %1665 = vmatprep.mubr.f32.mxu0 0.0
    %1666 = vmatmul.mubr.f32.gmra.mrb[0].mxu0 %v1588
    %v1667 = vpop.f32.mrb[0].mxu0
    %v1668 = vadd.f32 %v646, %v1667
    %v1669 = vpop.f32.mrb[0].mxu0
    %1670 = vmatprep.mubr.f32.mxu0 0.0
    %1671 = vmatmul.mubr.f32.gmra.mrb[0].mxu0 %v1591
    %v1672 = vpop.f32.mrb[0].mxu0
    %v1673 = vadd.f32 %v652, %v1672
    %v1674 = vpop.f32.mrb[0].mxu0
    %1675 = vmatprep.mubr.f32.mxu0 0.0
    %1676 = vmatmul.mubr.f32.gmra.mrb[0].mxu0 %v1594
    %v1677 = vpop.f32.mrb[0].mxu0
    %v1678 = vadd.f32 %v658, %v1677
    %v1679 = vpop.f32.mrb[0].mxu0
    %1680 = vdwg.mxu0
    %v1681 = vmax.f32 %v1663, 0.0
    %v1682 = vmax.f32 %v1668, 0.0
    %v1683 = vmax.f32 %v1673, 0.0
    %v1684 = vmax.f32 %v1678, 0.0
    %v1686 = vlaneseq
    %v1687 = vshrl.u32 %v1686, 7
    %v1688 = vsub.s32 0, %v1687
    %v1689 = vrot.slane %v442, %v1688
    %v1690 = vlaneseq
    %v1691 = vshrl.u32 %v1690, 7
    %v1692 = vsub.s32 1, %v1691
    %v1693 = vrot.slane %v442, %v1692
    %v1694 = vlaneseq
    %v1695 = vshrl.u32 %v1694, 7
    %v1696 = vsub.s32 2, %v1695
    %v1697 = vrot.slane %v442, %v1696
    %v1698 = vlaneseq
    %v1699 = vshrl.u32 %v1698, 7
    %v1700 = vsub.s32 3, %v1699
    %v1701 = vrot.slane %v442, %v1700
    %1706 = vmatprep.subr.mxu0 %v378
    %1707 = vmatpush1.msra.mxu0 %v377
    %1708 = vmatprep.subr.mxu0 %v382
    %1709 = vmatpush1.msra.mxu0 %v381
    %1710 = vmatprep.subr.mxu0 %v386
    %1711 = vmatpush1.msra.mxu0 %v385
    %1712 = vmatprep.subr.mxu0 %v390
    %1713 = vmatpush1.msra.mxu0 %v389
    %1714 = vmatprep.subr.mxu0 %v394
    %1715 = vmatpush1.msra.mxu0 %v393
    %1716 = vmatprep.subr.mxu0 %v398
    %1717 = vmatpush1.msra.mxu0 %v397
    %1718 = vmatprep.subr.mxu0 %v402
    %1719 = vmatpush1.msra.mxu0 %v401
    %1720 = vmatprep.subr.mxu0 %v406
    %1721 = vmatpush1.msra.mxu0 %v405
    %1722 = vmatprep.subr.mxu0 %v410
    %1723 = vmatpush1.msra.mxu0 %v409
    %1724 = vmatprep.subr.mxu0 %v414
    %1725 = vmatpush1.msra.mxu0 %v413
    %1726 = vmatprep.subr.mxu0 %v418
    %1727 = vmatpush1.msra.mxu0 %v417
    %1728 = vmatprep.subr.mxu0 %v422
    %1729 = vmatpush1.msra.mxu0 %v421
    %1730 = vmatprep.subr.mxu0 %v426
    %1731 = vmatpush1.msra.mxu0 %v425
    %1732 = vmatprep.subr.mxu0 %v430
    %1733 = vmatpush1.msra.mxu0 %v429
    %1734 = vmatprep.subr.mxu0 %v434
    %1735 = vmatpush1.msra.mxu0 %v433
    %1736 = vmatprep.subr.mxu0 %v438
    %1737 = vmatpush1.msra.mxu0 %v437
    %1738 = vmatprep.subr.mxu0 0.0
    %1739 = vmatpush1.msra.mxu0 0.0
    %1740 = vmatprep.subr.mxu0 0.0
    %1741 = vmatpush1.msra.mxu0 0.0
    %1742 = vmatprep.subr.mxu0 0.0
    %1743 = vmatpush1.msra.mxu0 0.0
    %1744 = vmatprep.subr.mxu0 0.0
    %1745 = vmatpush1.msra.mxu0 0.0
    %1746 = vmatprep.subr.mxu0 0.0
    %1747 = vmatpush1.msra.mxu0 0.0
    %1748 = vmatprep.subr.mxu0 0.0
    %1749 = vmatpush1.msra.mxu0 0.0
    %1750 = vmatprep.subr.mxu0 0.0
    %1751 = vmatpush1.msra.mxu0 0.0
    %1752 = vmatprep.subr.mxu0 0.0
    %1753 = vmatpush1.msra.mxu0 0.0
    %1754 = vmatprep.subr.mxu0 0.0
    %1755 = vmatpush1.msra.mxu0 0.0
    %1756 = vmatprep.subr.mxu0 0.0
    %1757 = vmatpush1.msra.mxu0 0.0
    %1758 = vmatprep.subr.mxu0 0.0
    %1759 = vmatpush1.msra.mxu0 0.0
    %1760 = vmatprep.subr.mxu0 0.0
    %1761 = vmatpush1.msra.mxu0 0.0
    %1762 = vmatprep.subr.mxu0 0.0
    %1763 = vmatpush1.msra.mxu0 0.0
    %1764 = vmatprep.subr.mxu0 0.0
    %1765 = vmatpush1.msra.mxu0 0.0
    %1766 = vmatprep.subr.mxu0 0.0
    %1767 = vmatpush1.msra.mxu0 0.0
    %1768 = vmatprep.subr.mxu0 0.0
    %1769 = vmatpush1.msra.mxu0 0.0
    %1770 = vmatprep.mubr.f32.mxu0 0.0
    %1771 = vmatmul.mubr.f32.gmra.mrb[0].mxu0 %v1681
    %v1772 = vpop.f32.mrb[0].mxu0
    %v1773 = vadd.f32 %v1689, %v1772
    %v1774 = vpop.f32.mrb[0].mxu0
    %v1775 = vadd.f32 %v1693, %v1774
    %1776 = vmatprep.mubr.f32.mxu0 0.0
    %1777 = vmatmul.mubr.f32.gmra.mrb[0].mxu0 %v1682
    %v1778 = vpop.f32.mrb[0].mxu0
    %v1779 = vadd.f32 %v1689, %v1778
    %v1780 = vpop.f32.mrb[0].mxu0
    %v1781 = vadd.f32 %v1693, %v1780
    %1782 = vmatprep.mubr.f32.mxu0 0.0
    %1783 = vmatmul.mubr.f32.gmra.mrb[0].mxu0 %v1683
    %v1784 = vpop.f32.mrb[0].mxu0
    %v1785 = vadd.f32 %v1689, %v1784
    %v1786 = vpop.f32.mrb[0].mxu0
    %v1787 = vadd.f32 %v1693, %v1786
    %1788 = vmatprep.mubr.f32.mxu0 0.0
    %1789 = vmatmul.mubr.f32.gmra.mrb[0].mxu0 %v1684
    %v1790 = vpop.f32.mrb[0].mxu0
    %v1791 = vadd.f32 %v1689, %v1790
    %v1792 = vpop.f32.mrb[0].mxu0
    %v1793 = vadd.f32 %v1693, %v1792
    %1794 = vdwg.mxu0
    %1795 = vmatprep.subr.mxu0 %v380
    %1796 = vmatpush1.msra.mxu0 %v379
    %1797 = vmatprep.subr.mxu0 %v384
    %1798 = vmatpush1.msra.mxu0 %v383
    %1799 = vmatprep.subr.mxu0 %v388
    %1800 = vmatpush1.msra.mxu0 %v387
    %1801 = vmatprep.subr.mxu0 %v392
    %1802 = vmatpush1.msra.mxu0 %v391
    %1803 = vmatprep.subr.mxu0 %v396
    %1804 = vmatpush1.msra.mxu0 %v395
    %1805 = vmatprep.subr.mxu0 %v400
    %1806 = vmatpush1.msra.mxu0 %v399
    %1807 = vmatprep.subr.mxu0 %v404
    %1808 = vmatpush1.msra.mxu0 %v403
    %1809 = vmatprep.subr.mxu0 %v408
    %1810 = vmatpush1.msra.mxu0 %v407
    %1811 = vmatprep.subr.mxu0 %v412
    %1812 = vmatpush1.msra.mxu0 %v411
    %1813 = vmatprep.subr.mxu0 %v416
    %1814 = vmatpush1.msra.mxu0 %v415
    %1815 = vmatprep.subr.mxu0 %v420
    %1816 = vmatpush1.msra.mxu0 %v419
    %1817 = vmatprep.subr.mxu0 %v424
    %1818 = vmatpush1.msra.mxu0 %v423
    %1819 = vmatprep.subr.mxu0 %v428
    %1820 = vmatpush1.msra.mxu0 %v427
    %1821 = vmatprep.subr.mxu0 %v432
    %1822 = vmatpush1.msra.mxu0 %v431
    %1823 = vmatprep.subr.mxu0 %v436
    %1824 = vmatpush1.msra.mxu0 %v435
    %1825 = vmatprep.subr.mxu0 %v440
    %1826 = vmatpush1.msra.mxu0 %v439
    %1827 = vmatprep.subr.mxu0 0.0
    %1828 = vmatpush1.msra.mxu0 0.0
    %1829 = vmatprep.subr.mxu0 0.0
    %1830 = vmatpush1.msra.mxu0 0.0
    %1831 = vmatprep.subr.mxu0 0.0
    %1832 = vmatpush1.msra.mxu0 0.0
    %1833 = vmatprep.subr.mxu0 0.0
    %1834 = vmatpush1.msra.mxu0 0.0
    %1835 = vmatprep.subr.mxu0 0.0
    %1836 = vmatpush1.msra.mxu0 0.0
    %1837 = vmatprep.subr.mxu0 0.0
    %1838 = vmatpush1.msra.mxu0 0.0
    %1839 = vmatprep.subr.mxu0 0.0
    %1840 = vmatpush1.msra.mxu0 0.0
    %1841 = vmatprep.subr.mxu0 0.0
    %1842 = vmatpush1.msra.mxu0 0.0
    %1843 = vmatprep.subr.mxu0 0.0
    %1844 = vmatpush1.msra.mxu0 0.0
    %1845 = vmatprep.subr.mxu0 0.0
    %1846 = vmatpush1.msra.mxu0 0.0
    %1847 = vmatprep.subr.mxu0 0.0
    %1848 = vmatpush1.msra.mxu0 0.0
    %1849 = vmatprep.subr.mxu0 0.0
    %1850 = vmatpush1.msra.mxu0 0.0
    %1851 = vmatprep.subr.mxu0 0.0
    %1852 = vmatpush1.msra.mxu0 0.0
    %1853 = vmatprep.subr.mxu0 0.0
    %1854 = vmatpush1.msra.mxu0 0.0
    %1855 = vmatprep.subr.mxu0 0.0
    %1856 = vmatpush1.msra.mxu0 0.0
    %1857 = vmatprep.subr.mxu0 0.0
    %1858 = vmatpush1.msra.mxu0 0.0
    %1859 = vmatprep.mubr.f32.mxu0 0.0
    %1860 = vmatmul.mubr.f32.gmra.mrb[0].mxu0 %v1681
    %v1861 = vpop.f32.mrb[0].mxu0
    %v1862 = vadd.f32 %v1697, %v1861
    %v1863 = vpop.f32.mrb[0].mxu0
    %v1864 = vadd.f32 %v1701, %v1863
    %1865 = vmatprep.mubr.f32.mxu0 0.0
    %1866 = vmatmul.mubr.f32.gmra.mrb[0].mxu0 %v1682
    %v1867 = vpop.f32.mrb[0].mxu0
    %v1868 = vadd.f32 %v1697, %v1867
    %v1869 = vpop.f32.mrb[0].mxu0
    %v1870 = vadd.f32 %v1701, %v1869
    %1871 = vmatprep.mubr.f32.mxu0 0.0
    %1872 = vmatmul.mubr.f32.gmra.mrb[0].mxu0 %v1683
    %v1873 = vpop.f32.mrb[0].mxu0
    %v1874 = vadd.f32 %v1697, %v1873
    %v1875 = vpop.f32.mrb[0].mxu0
    %v1876 = vadd.f32 %v1701, %v1875
    %1877 = vmatprep.mubr.f32.mxu0 0.0
    %1878 = vmatmul.mubr.f32.gmra.mrb[0].mxu0 %v1684
    %v1879 = vpop.f32.mrb[0].mxu0
    %v1880 = vadd.f32 %v1697, %v1879
    %v1881 = vpop.f32.mrb[0].mxu0
    %v1882 = vadd.f32 %v1701, %v1881
    %1883 = vdwg.mxu0
    %1884 = vmatprep.subr.mxu0 0.0
    %1885 = vmatpush1.msra.mxu0 %v443
    %1886 = vmatprep.subr.mxu0 0.0
    %1887 = vmatpush1.msra.mxu0 0.0
    %1888 = vmatprep.subr.mxu0 0.0
    %1889 = vmatpush1.msra.mxu0 0.0
    %1890 = vmatprep.subr.mxu0 0.0
    %1891 = vmatpush1.msra.mxu0 0.0
    %1892 = vmatprep.subr.mxu0 0.0
    %1893 = vmatpush1.msra.mxu0 0.0
    %1894 = vmatprep.subr.mxu0 0.0
    %1895 = vmatpush1.msra.mxu0 0.0
    %1896 = vmatprep.subr.mxu0 0.0
    %1897 = vmatpush1.msra.mxu0 0.0
    %1898 = vmatprep.subr.mxu0 0.0
    %1899 = vmatpush1.msra.mxu0 0.0
    %1900 = vmatprep.subr.mxu0 0.0
    %1901 = vmatpush1.msra.mxu0 0.0
    %1902 = vmatprep.subr.mxu0 0.0
    %1903 = vmatpush1.msra.mxu0 0.0
    %1904 = vmatprep.subr.mxu0 0.0
    %1905 = vmatpush1.msra.mxu0 0.0
    %1906 = vmatprep.subr.mxu0 0.0
    %1907 = vmatpush1.msra.mxu0 0.0
    %1908 = vmatprep.subr.mxu0 0.0
    %1909 = vmatpush1.msra.mxu0 0.0
    %1910 = vmatprep.subr.mxu0 0.0
    %1911 = vmatpush1.msra.mxu0 0.0
    %1912 = vmatprep.subr.mxu0 0.0
    %1913 = vmatpush1.msra.mxu0 0.0
    %1914 = vmatprep.subr.mxu0 0.0
    %1915 = vmatpush1.msra.mxu0 0.0
    %1916 = vmatprep.subr.mxu0 0.0
    %1917 = vmatpush1.msra.mxu0 0.0
    %1918 = vmatprep.subr.mxu0 0.0
    %1919 = vmatpush1.msra.mxu0 0.0
    %1920 = vmatprep.subr.mxu0 0.0
    %1921 = vmatpush1.msra.mxu0 0.0
    %1922 = vmatprep.subr.mxu0 0.0
    %1923 = vmatpush1.msra.mxu0 0.0
    %1924 = vmatprep.subr.mxu0 0.0
    %1925 = vmatpush1.msra.mxu0 0.0
    %1926 = vmatprep.subr.mxu0 0.0
    %1927 = vmatpush1.msra.mxu0 0.0
    %1928 = vmatprep.subr.mxu0 0.0
    %1929 = vmatpush1.msra.mxu0 0.0
    %1930 = vmatprep.subr.mxu0 0.0
    %1931 = vmatpush1.msra.mxu0 0.0
    %1932 = vmatprep.subr.mxu0 0.0
    %1933 = vmatpush1.msra.mxu0 0.0
    %1934 = vmatprep.subr.mxu0 0.0
    %1935 = vmatpush1.msra.mxu0 0.0
    %1936 = vmatprep.subr.mxu0 0.0
    %1937 = vmatpush1.msra.mxu0 0.0
    %1938 = vmatprep.subr.mxu0 0.0
    %1939 = vmatpush1.msra.mxu0 0.0
    %1940 = vmatprep.subr.mxu0 0.0
    %1941 = vmatpush1.msra.mxu0 0.0
    %1942 = vmatprep.subr.mxu0 0.0
    %1943 = vmatpush1.msra.mxu0 0.0
    %1944 = vmatprep.subr.mxu0 0.0
    %1945 = vmatpush1.msra.mxu0 0.0
    %1946 = vmatprep.subr.mxu0 0.0
    %1947 = vmatpush1.msra.mxu0 0.0
    %1948 = vmatprep.mubr.f32.mxu0 0.0
    %1949 = vmatmul.mubr.f32.gmra.mrb[0].mxu0 %v669
    %v1950 = vpop.f32.mrb[0].mxu0
    %v1951 = vadd.f32 0.0, %v1950
    %v1952 = vpop.f32.mrb[0].mxu0
    %1953 = vmatprep.mubr.f32.mxu0 0.0
    %1954 = vmatmul.mubr.f32.gmra.mrb[0].mxu0 %v672
    %v1955 = vpop.f32.mrb[0].mxu0
    %v1956 = vadd.f32 0.0, %v1955
    %v1957 = vpop.f32.mrb[0].mxu0
    %1958 = vmatprep.mubr.f32.mxu0 0.0
    %1959 = vmatmul.mubr.f32.gmra.mrb[0].mxu0 %v675
    %v1960 = vpop.f32.mrb[0].mxu0
    %v1961 = vadd.f32 0.0, %v1960
    %v1962 = vpop.f32.mrb[0].mxu0
    %1963 = vmatprep.mubr.f32.mxu0 0.0
    %1964 = vmatmul.mubr.f32.gmra.mrb[0].mxu0 %v678
    %v1965 = vpop.f32.mrb[0].mxu0
    %v1966 = vadd.f32 0.0, %v1965
    %v1967 = vpop.f32.mrb[0].mxu0
    %1968 = vmatprep.mubr.f32.mxu0 0.0
    %1969 = vmatmul.mubr.f32.gmra.mrb[0].mxu0 %v681
    %v1970 = vpop.f32.mrb[0].mxu0
    %v1971 = vadd.f32 0.0, %v1970
    %v1972 = vpop.f32.mrb[0].mxu0
    %1973 = vmatprep.mubr.f32.mxu0 0.0
    %1974 = vmatmul.mubr.f32.gmra.mrb[0].mxu0 %v684
    %v1975 = vpop.f32.mrb[0].mxu0
    %v1976 = vadd.f32 0.0, %v1975
    %v1977 = vpop.f32.mrb[0].mxu0
    %1978 = vmatprep.mubr.f32.mxu0 0.0
    %1979 = vmatmul.mubr.f32.gmra.mrb[0].mxu0 %v687
    %v1980 = vpop.f32.mrb[0].mxu0
    %v1981 = vadd.f32 0.0, %v1980
    %v1982 = vpop.f32.mrb[0].mxu0
    %1983 = vmatprep.mubr.f32.mxu0 0.0
    %1984 = vmatmul.mubr.f32.gmra.mrb[0].mxu0 %v690
    %v1985 = vpop.f32.mrb[0].mxu0
    %v1986 = vadd.f32 0.0, %v1985
    %v1987 = vpop.f32.mrb[0].mxu0
    %1988 = vdwg.mxu0
    %1989 = vmatprep.subr.mxu0 0.0
    %1990 = vmatpush1.msra.mxu0 %v1773
    %1991 = vmatprep.subr.mxu0 0.0
    %1992 = vmatpush1.msra.mxu0 %v1779
    %1993 = vmatprep.subr.mxu0 0.0
    %1994 = vmatpush1.msra.mxu0 %v1785
    %1995 = vmatprep.subr.mxu0 0.0
    %1996 = vmatpush1.msra.mxu0 %v1791
    %1997 = vmatprep.subr.mxu0 0.0
    %1998 = vmatpush1.msra.mxu0 0.0
    %1999 = vmatprep.subr.mxu0 0.0
    %2000 = vmatpush1.msra.mxu0 0.0
    %2001 = vmatprep.subr.mxu0 0.0
    %2002 = vmatpush1.msra.mxu0 0.0
    %2003 = vmatprep.subr.mxu0 0.0
    %2004 = vmatpush1.msra.mxu0 0.0
    %2005 = vmatprep.subr.mxu0 0.0
    %2006 = vmatpush1.msra.mxu0 0.0
    %2007 = vmatprep.subr.mxu0 0.0
    %2008 = vmatpush1.msra.mxu0 0.0
    %2009 = vmatprep.subr.mxu0 0.0
    %2010 = vmatpush1.msra.mxu0 0.0
    %2011 = vmatprep.subr.mxu0 0.0
    %2012 = vmatpush1.msra.mxu0 0.0
    %2013 = vmatprep.subr.mxu0 0.0
    %2014 = vmatpush1.msra.mxu0 0.0
    %2015 = vmatprep.subr.mxu0 0.0
    %2016 = vmatpush1.msra.mxu0 0.0
    %2017 = vmatprep.subr.mxu0 0.0
    %2018 = vmatpush1.msra.mxu0 0.0
    %2019 = vmatprep.subr.mxu0 0.0
    %2020 = vmatpush1.msra.mxu0 0.0
    %2021 = vmatprep.subr.mxu0 0.0
    %2022 = vmatpush1.msra.mxu0 0.0
    %2023 = vmatprep.subr.mxu0 0.0
    %2024 = vmatpush1.msra.mxu0 0.0
    %2025 = vmatprep.subr.mxu0 0.0
    %2026 = vmatpush1.msra.mxu0 0.0
    %2027 = vmatprep.subr.mxu0 0.0
    %2028 = vmatpush1.msra.mxu0 0.0
    %2029 = vmatprep.subr.mxu0 0.0
    %2030 = vmatpush1.msra.mxu0 0.0
    %2031 = vmatprep.subr.mxu0 0.0
    %2032 = vmatpush1.msra.mxu0 0.0
    %2033 = vmatprep.subr.mxu0 0.0
    %2034 = vmatpush1.msra.mxu0 0.0
    %2035 = vmatprep.subr.mxu0 0.0
    %2036 = vmatpush1.msra.mxu0 0.0
    %2037 = vmatprep.subr.mxu0 0.0
    %2038 = vmatpush1.msra.mxu0 0.0
    %2039 = vmatprep.subr.mxu0 0.0
    %2040 = vmatpush1.msra.mxu0 0.0
    %2041 = vmatprep.subr.mxu0 0.0
    %2042 = vmatpush1.msra.mxu0 0.0
    %2043 = vmatprep.subr.mxu0 0.0
    %2044 = vmatpush1.msra.mxu0 0.0
    %2045 = vmatprep.subr.mxu0 0.0
    %2046 = vmatpush1.msra.mxu0 0.0
    %2047 = vmatprep.subr.mxu0 0.0
    %2048 = vmatpush1.msra.mxu0 0.0
    %2049 = vmatprep.subr.mxu0 0.0
    %2050 = vmatpush1.msra.mxu0 0.0
    %2051 = vmatprep.subr.mxu0 0.0
    %2052 = vmatpush1.msra.mxu0 0.0
    %2053 = vmatprep.mubr.f32.mxu0 0.0
    %2054 = vmatmul.mubr.f32.gmra.mrb[0].mxu0 %v142
    %v2055 = vpop.f32.mrb[0].mxu0
    %v2056 = vadd.f32 0.0, %v2055
    %v2057 = vpop.f32.mrb[0].mxu0
    %2058 = vmatprep.mubr.f32.mxu0 0.0
    %2059 = vmatmul.mubr.f32.gmra.mrb[0].mxu0 %v145
    %v2060 = vpop.f32.mrb[0].mxu0
    %v2061 = vadd.f32 0.0, %v2060
    %v2062 = vpop.f32.mrb[0].mxu0
    %2063 = vmatprep.mubr.f32.mxu0 0.0
    %2064 = vmatmul.mubr.f32.gmra.mrb[0].mxu0 %v148
    %v2065 = vpop.f32.mrb[0].mxu0
    %v2066 = vadd.f32 0.0, %v2065
    %v2067 = vpop.f32.mrb[0].mxu0
    %2068 = vmatprep.mubr.f32.mxu0 0.0
    %2069 = vmatmul.mubr.f32.gmra.mrb[0].mxu0 %v151
    %v2070 = vpop.f32.mrb[0].mxu0
    %v2071 = vadd.f32 0.0, %v2070
    %v2072 = vpop.f32.mrb[0].mxu0
    %2073 = vmatprep.mubr.f32.mxu0 0.0
    %2074 = vmatmul.mubr.f32.gmra.mrb[0].mxu0 %v154
    %v2075 = vpop.f32.mrb[0].mxu0
    %v2076 = vadd.f32 0.0, %v2075
    %v2077 = vpop.f32.mrb[0].mxu0
    %2078 = vmatprep.mubr.f32.mxu0 0.0
    %2079 = vmatmul.mubr.f32.gmra.mrb[0].mxu0 %v157
    %v2080 = vpop.f32.mrb[0].mxu0
    %v2081 = vadd.f32 0.0, %v2080
    %v2082 = vpop.f32.mrb[0].mxu0
    %2083 = vmatprep.mubr.f32.mxu0 0.0
    %2084 = vmatmul.mubr.f32.gmra.mrb[0].mxu0 %v160
    %v2085 = vpop.f32.mrb[0].mxu0
    %v2086 = vadd.f32 0.0, %v2085
    %v2087 = vpop.f32.mrb[0].mxu0
    %2088 = vmatprep.mubr.f32.mxu0 0.0
    %2089 = vmatmul.mubr.f32.gmra.mrb[0].mxu0 %v163
    %v2090 = vpop.f32.mrb[0].mxu0
    %v2091 = vadd.f32 0.0, %v2090
    %v2092 = vpop.f32.mrb[0].mxu0
    %2093 = vdwg.mxu0
    %2094 = vmatprep.subr.mxu0 %v1862
    %2095 = vmatpush1.msra.mxu0 %v1775
    %2096 = vmatprep.subr.mxu0 %v1868
    %2097 = vmatpush1.msra.mxu0 %v1781
    %2098 = vmatprep.subr.mxu0 %v1874
    %2099 = vmatpush1.msra.mxu0 %v1787
    %2100 = vmatprep.subr.mxu0 %v1880
    %2101 = vmatpush1.msra.mxu0 %v1793
    %2102 = vmatprep.subr.mxu0 0.0
    %2103 = vmatpush1.msra.mxu0 0.0
    %2104 = vmatprep.subr.mxu0 0.0
    %2105 = vmatpush1.msra.mxu0 0.0
    %2106 = vmatprep.subr.mxu0 0.0
    %2107 = vmatpush1.msra.mxu0 0.0
    %2108 = vmatprep.subr.mxu0 0.0
    %2109 = vmatpush1.msra.mxu0 0.0
    %2110 = vmatprep.subr.mxu0 0.0
    %2111 = vmatpush1.msra.mxu0 0.0
    %2112 = vmatprep.subr.mxu0 0.0
    %2113 = vmatpush1.msra.mxu0 0.0
    %2114 = vmatprep.subr.mxu0 0.0
    %2115 = vmatpush1.msra.mxu0 0.0
    %2116 = vmatprep.subr.mxu0 0.0
    %2117 = vmatpush1.msra.mxu0 0.0
    %2118 = vmatprep.subr.mxu0 0.0
    %2119 = vmatpush1.msra.mxu0 0.0
    %2120 = vmatprep.subr.mxu0 0.0
    %2121 = vmatpush1.msra.mxu0 0.0
    %2122 = vmatprep.subr.mxu0 0.0
    %2123 = vmatpush1.msra.mxu0 0.0
    %2124 = vmatprep.subr.mxu0 0.0
    %2125 = vmatpush1.msra.mxu0 0.0
    %2126 = vmatprep.subr.mxu0 0.0
    %2127 = vmatpush1.msra.mxu0 0.0
    %2128 = vmatprep.subr.mxu0 0.0
    %2129 = vmatpush1.msra.mxu0 0.0
    %2130 = vmatprep.subr.mxu0 0.0
    %2131 = vmatpush1.msra.mxu0 0.0
    %2132 = vmatprep.subr.mxu0 0.0
    %2133 = vmatpush1.msra.mxu0 0.0
    %2134 = vmatprep.subr.mxu0 0.0
    %2135 = vmatpush1.msra.mxu0 0.0
    %2136 = vmatprep.subr.mxu0 0.0
    %2137 = vmatpush1.msra.mxu0 0.0
    %2138 = vmatprep.subr.mxu0 0.0
    %2139 = vmatpush1.msra.mxu0 0.0
    %2140 = vmatprep.subr.mxu0 0.0
    %2141 = vmatpush1.msra.mxu0 0.0
    %2142 = vmatprep.subr.mxu0 0.0
    %2143 = vmatpush1.msra.mxu0 0.0
    %2144 = vmatprep.subr.mxu0 0.0
    %2145 = vmatpush1.msra.mxu0 0.0
    %2146 = vmatprep.subr.mxu0 0.0
    %2147 = vmatpush1.msra.mxu0 0.0
    %2148 = vmatprep.subr.mxu0 0.0
    %2149 = vmatpush1.msra.mxu0 0.0
    %2150 = vmatprep.subr.mxu0 0.0
    %2151 = vmatpush1.msra.mxu0 0.0
    %2152 = vmatprep.subr.mxu0 0.0
    %2153 = vmatpush1.msra.mxu0 0.0
    %2154 = vmatprep.subr.mxu0 0.0
    %2155 = vmatpush1.msra.mxu0 0.0
    %2156 = vmatprep.subr.mxu0 0.0
    %2157 = vmatpush1.msra.mxu0 0.0
    %2158 = vmatprep.mubr.f32.mxu0 0.0
    %2159 = vmatmul.mubr.f32.gmra.mrb[0].mxu0 %v903
    %v2160 = vpop.f32.mrb[0].mxu0
    %v2161 = vadd.f32 0.0, %v2160
    %v2162 = vpop.f32.mrb[0].mxu0
    %v2163 = vadd.f32 0.0, %v2162
    %2164 = vmatprep.mubr.f32.mxu0 0.0
    %2165 = vmatmul.mubr.f32.gmra.mrb[0].mxu0 %v906
    %v2166 = vpop.f32.mrb[0].mxu0
    %v2167 = vadd.f32 0.0, %v2166
    %v2168 = vpop.f32.mrb[0].mxu0
    %v2169 = vadd.f32 0.0, %v2168
    %2170 = vmatprep.mubr.f32.mxu0 0.0
    %2171 = vmatmul.mubr.f32.gmra.mrb[0].mxu0 %v909
    %v2172 = vpop.f32.mrb[0].mxu0
    %v2173 = vadd.f32 0.0, %v2172
    %v2174 = vpop.f32.mrb[0].mxu0
    %v2175 = vadd.f32 0.0, %v2174
    %2176 = vmatprep.mubr.f32.mxu0 0.0
    %2177 = vmatmul.mubr.f32.gmra.mrb[0].mxu0 %v912
    %v2178 = vpop.f32.mrb[0].mxu0
    %v2179 = vadd.f32 0.0, %v2178
    %v2180 = vpop.f32.mrb[0].mxu0
    %v2181 = vadd.f32 0.0, %v2180
    %2182 = vmatprep.mubr.f32.mxu0 0.0
    %2183 = vmatmul.mubr.f32.gmra.mrb[0].mxu0 %v915
    %v2184 = vpop.f32.mrb[0].mxu0
    %v2185 = vadd.f32 0.0, %v2184
    %v2186 = vpop.f32.mrb[0].mxu0
    %v2187 = vadd.f32 0.0, %v2186
    %2188 = vmatprep.mubr.f32.mxu0 0.0
    %2189 = vmatmul.mubr.f32.gmra.mrb[0].mxu0 %v918
    %v2190 = vpop.f32.mrb[0].mxu0
    %v2191 = vadd.f32 0.0, %v2190
    %v2192 = vpop.f32.mrb[0].mxu0
    %v2193 = vadd.f32 0.0, %v2192
    %2194 = vmatprep.mubr.f32.mxu0 0.0
    %2195 = vmatmul.mubr.f32.gmra.mrb[0].mxu0 %v921
    %v2196 = vpop.f32.mrb[0].mxu0
    %v2197 = vadd.f32 0.0, %v2196
    %v2198 = vpop.f32.mrb[0].mxu0
    %v2199 = vadd.f32 0.0, %v2198
    %2200 = vmatprep.mubr.f32.mxu0 0.0
    %2201 = vmatmul.mubr.f32.gmra.mrb[0].mxu0 %v924
    %v2202 = vpop.f32.mrb[0].mxu0
    %v2203 = vadd.f32 0.0, %v2202
    %v2204 = vpop.f32.mrb[0].mxu0
    %v2205 = vadd.f32 0.0, %v2204
    %2206 = vdwg.mxu0
    %v2207 = vadd.f32 %v2161, %v1951
    %v2208 = vadd.f32 %v2167, %v1956
    %v2209 = vadd.f32 %v2173, %v1961
    %v2210 = vadd.f32 %v2179, %v1966
    %v2211 = vadd.f32 %v2185, %v1971
    %v2212 = vadd.f32 %v2191, %v1976
    %v2213 = vadd.f32 %v2197, %v1981
    %v2214 = vadd.f32 %v2203, %v1986
    %v2215 = vadd.f32 %v2163, %v1951
    %v2216 = vadd.f32 %v2169, %v1956
    %v2217 = vadd.f32 %v2175, %v1961
    %v2218 = vadd.f32 %v2181, %v1966
    %v2219 = vadd.f32 %v2187, %v1971
    %v2220 = vadd.f32 %v2193, %v1976
    %v2221 = vadd.f32 %v2199, %v1981
    %v2222 = vadd.f32 %v2205, %v1986
    %v2223 = vmul.f32 %v2056, %v2207
    %v2224 = vmul.f32 %v2061, %v2208
    %v2225 = vmul.f32 %v2066, %v2209
    %v2226 = vmul.f32 %v2071, %v2210
    %v2227 = vmul.f32 %v2076, %v2211
    %v2228 = vmul.f32 %v2081, %v2212
    %v2229 = vmul.f32 %v2086, %v2213
    %v2230 = vmul.f32 %v2091, %v2214
    %2231 = vmatprep.subr.mxu0 0.0
    %2232 = vmatpush1.msra.mxu0 %v354
    %2233 = vmatprep.subr.mxu0 0.0
    %2234 = vmatpush1.msra.mxu0 %v355
    %2235 = vmatprep.subr.mxu0 0.0
    %2236 = vmatpush1.msra.mxu0 %v356
    %2237 = vmatprep.subr.mxu0 0.0
    %2238 = vmatpush1.msra.mxu0 %v357
    %2239 = vmatprep.subr.mxu0 0.0
    %2240 = vmatpush1.msra.mxu0 %v358
    %2241 = vmatprep.subr.mxu0 0.0
    %2242 = vmatpush1.msra.mxu0 %v359
    %2243 = vmatprep.subr.mxu0 0.0
    %2244 = vmatpush1.msra.mxu0 %v360
    %2245 = vmatprep.subr.mxu0 0.0
    %2246 = vmatpush1.msra.mxu0 %v361
    %2247 = vmatprep.subr.mxu0 0.0
    %2248 = vmatpush1.msra.mxu0 %v362
    %2249 = vmatprep.subr.mxu0 0.0
    %2250 = vmatpush1.msra.mxu0 %v363
    %2251 = vmatprep.subr.mxu0 0.0
    %2252 = vmatpush1.msra.mxu0 %v364
    %2253 = vmatprep.subr.mxu0 0.0
    %2254 = vmatpush1.msra.mxu0 %v365
    %2255 = vmatprep.subr.mxu0 0.0
    %2256 = vmatpush1.msra.mxu0 %v366
    %2257 = vmatprep.subr.mxu0 0.0
    %2258 = vmatpush1.msra.mxu0 %v367
    %2259 = vmatprep.subr.mxu0 0.0
    %2260 = vmatpush1.msra.mxu0 %v368
    %2261 = vmatprep.subr.mxu0 0.0
    %2262 = vmatpush1.msra.mxu0 %v369
    %2263 = vmatprep.subr.mxu0 0.0
    %2264 = vmatpush1.msra.mxu0 0.0
    %2265 = vmatprep.subr.mxu0 0.0
    %2266 = vmatpush1.msra.mxu0 0.0
    %2267 = vmatprep.subr.mxu0 0.0
    %2268 = vmatpush1.msra.mxu0 0.0
    %2269 = vmatprep.subr.mxu0 0.0
    %2270 = vmatpush1.msra.mxu0 0.0
    %2271 = vmatprep.subr.mxu0 0.0
    %2272 = vmatpush1.msra.mxu0 0.0
    %2273 = vmatprep.subr.mxu0 0.0
    %2274 = vmatpush1.msra.mxu0 0.0
    %2275 = vmatprep.subr.mxu0 0.0
    %2276 = vmatpush1.msra.mxu0 0.0
    %2277 = vmatprep.subr.mxu0 0.0
    %2278 = vmatpush1.msra.mxu0 0.0
    %2279 = vmatprep.subr.mxu0 0.0
    %2280 = vmatpush1.msra.mxu0 0.0
    %2281 = vmatprep.subr.mxu0 0.0
    %2282 = vmatpush1.msra.mxu0 0.0
    %2283 = vmatprep.subr.mxu0 0.0
    %2284 = vmatpush1.msra.mxu0 0.0
    %2285 = vmatprep.subr.mxu0 0.0
    %2286 = vmatpush1.msra.mxu0 0.0
    %2287 = vmatprep.subr.mxu0 0.0
    %2288 = vmatpush1.msra.mxu0 0.0
    %2289 = vmatprep.subr.mxu0 0.0
    %2290 = vmatpush1.msra.mxu0 0.0
    %2291 = vmatprep.subr.mxu0 0.0
    %2292 = vmatpush1.msra.mxu0 0.0
    %2293 = vmatprep.subr.mxu0 0.0
    %2294 = vmatpush1.msra.mxu0 0.0
    %2295 = vmatprep.mubr.f32.mxu0 0.0
    %2296 = vmatmul.mubr.f32.gmra.mrb[0].mxu0 %v2223
    %v2297 = vpop.f32.mrb[0].mxu0
    %v2298 = vadd.f32 0.0, %v2297
    %v2299 = vpop.f32.mrb[0].mxu0
    %2300 = vmatprep.mubr.f32.mxu0 0.0
    %2301 = vmatmul.mubr.f32.gmra.mrb[0].mxu0 %v2224
    %v2302 = vpop.f32.mrb[0].mxu0
    %v2303 = vadd.f32 0.0, %v2302
    %v2304 = vpop.f32.mrb[0].mxu0
    %2305 = vmatprep.mubr.f32.mxu0 0.0
    %2306 = vmatmul.mubr.f32.gmra.mrb[0].mxu0 %v2225
    %v2307 = vpop.f32.mrb[0].mxu0
    %v2308 = vadd.f32 0.0, %v2307
    %v2309 = vpop.f32.mrb[0].mxu0
    %2310 = vmatprep.mubr.f32.mxu0 0.0
    %2311 = vmatmul.mubr.f32.gmra.mrb[0].mxu0 %v2226
    %v2312 = vpop.f32.mrb[0].mxu0
    %v2313 = vadd.f32 0.0, %v2312
    %v2314 = vpop.f32.mrb[0].mxu0
    %2315 = vmatprep.mubr.f32.mxu0 0.0
    %2316 = vmatmul.mubr.f32.gmra.mrb[0].mxu0 %v2227
    %v2317 = vpop.f32.mrb[0].mxu0
    %v2318 = vadd.f32 0.0, %v2317
    %v2319 = vpop.f32.mrb[0].mxu0
    %2320 = vmatprep.mubr.f32.mxu0 0.0
    %2321 = vmatmul.mubr.f32.gmra.mrb[0].mxu0 %v2228
    %v2322 = vpop.f32.mrb[0].mxu0
    %v2323 = vadd.f32 0.0, %v2322
    %v2324 = vpop.f32.mrb[0].mxu0
    %2325 = vmatprep.mubr.f32.mxu0 0.0
    %2326 = vmatmul.mubr.f32.gmra.mrb[0].mxu0 %v2229
    %v2327 = vpop.f32.mrb[0].mxu0
    %v2328 = vadd.f32 0.0, %v2327
    %v2329 = vpop.f32.mrb[0].mxu0
    %2330 = vmatprep.mubr.f32.mxu0 0.0
    %2331 = vmatmul.mubr.f32.gmra.mrb[0].mxu0 %v2230
    %v2332 = vpop.f32.mrb[0].mxu0
    %v2333 = vadd.f32 0.0, %v2332
    %v2334 = vpop.f32.mrb[0].mxu0
    %2335 = vdwg.mxu0
    %v2336 = vsel %vm469, %v2298, -inf
    %v2337 = vsel %vm469, %v2303, -inf
    %v2338 = vsel %vm469, %v2308, -inf
    %v2339 = vsel %vm469, %v2313, -inf
    %v2340 = vsel %vm469, %v2318, -inf
    %v2341 = vmax.f32 %v2336, %v2340
    %v2342 = vsel %vm469, %v2323, -inf
    %v2343 = vmax.f32 %v2337, %v2342
    %v2344 = vsel %vm469, %v2328, -inf
    %v2345 = vmax.f32 %v2338, %v2344
    %v2346 = vsel %vm469, %v2333, -inf
    %v2347 = vmax.f32 %v2339, %v2346
    %v2348 = vmax.f32 %v2341, %v2343
    %v2349 = vmax.f32 %v2345, %v2347
    %v2350 = vmax.f32 %v2348, %v2349
    %v2351 = vrot.slane %v2350, 4
    %v2352 = vmax.f32 %v2350, %v2351
    %v2353 = vrot.slane %v2352, 2
    %v2354 = vmax.f32 %v2352, %v2353
    %v2355 = vrot.slane %v2354, 1
    %v2356 = vmax.f32 %v2354, %v2355
    %v2357 = vsub.f32 %v2298, %v2356
    %v2358 = vsub.f32 %v2303, %v2356
    %v2359 = vsub.f32 %v2308, %v2356
    %v2360 = vsub.f32 %v2313, %v2356
    %v2361 = vsub.f32 %v2318, %v2356
    %v2362 = vsub.f32 %v2323, %v2356
    %v2363 = vsub.f32 %v2328, %v2356
    %v2364 = vsub.f32 %v2333, %v2356
    %v2365 = vmul.f32 %v2357, 1.442695
    %v2366 = vpow.pop %v2365
    %v2367 = vmul.f32 %v2358, 1.442695
    %v2368 = vpow.pop %v2367
    %v2369 = vmul.f32 %v2359, 1.442695
    %v2370 = vpow.pop %v2369
    %v2371 = vmul.f32 %v2360, 1.442695
    %v2372 = vpow.pop %v2371
    %v2373 = vmul.f32 %v2361, 1.442695
    %v2374 = vpow.pop %v2373
    %v2375 = vmul.f32 %v2362, 1.442695
    %v2376 = vpow.pop %v2375
    %v2377 = vmul.f32 %v2363, 1.442695
    %v2378 = vpow.pop %v2377
    %v2379 = vmul.f32 %v2364, 1.442695
    %v2380 = vpow.pop %v2379
    %2381 = vmatprep.subr.mxu0 0.0
    %2382 = vmatpush1.msra.mxu0 %v2366
    %2383 = vmatprep.subr.mxu0 0.0
    %2384 = vmatpush1.msra.mxu0 %v2368
    %2385 = vmatprep.subr.mxu0 0.0
    %2386 = vmatpush1.msra.mxu0 %v2370
    %2387 = vmatprep.subr.mxu0 0.0
    %2388 = vmatpush1.msra.mxu0 %v2372
    %2389 = vmatprep.subr.mxu0 0.0
    %2390 = vmatpush1.msra.mxu0 %v2374
    %2391 = vmatprep.subr.mxu0 0.0
    %2392 = vmatpush1.msra.mxu0 %v2376
    %2393 = vmatprep.subr.mxu0 0.0
    %2394 = vmatpush1.msra.mxu0 %v2378
    %2395 = vmatprep.subr.mxu0 0.0
    %2396 = vmatpush1.msra.mxu0 %v2380
    %2397 = vmatprep.subr.mxu0 0.0
    %2398 = vmatpush1.msra.mxu0 0.0
    %2399 = vmatprep.subr.mxu0 0.0
    %2400 = vmatpush1.msra.mxu0 0.0
    %2401 = vmatprep.subr.mxu0 0.0
    %2402 = vmatpush1.msra.mxu0 0.0
    %2403 = vmatprep.subr.mxu0 0.0
    %2404 = vmatpush1.msra.mxu0 0.0
    %2405 = vmatprep.subr.mxu0 0.0
    %2406 = vmatpush1.msra.mxu0 0.0
    %2407 = vmatprep.subr.mxu0 0.0
    %2408 = vmatpush1.msra.mxu0 0.0
    %2409 = vmatprep.subr.mxu0 0.0
    %2410 = vmatpush1.msra.mxu0 0.0
    %2411 = vmatprep.subr.mxu0 0.0
    %2412 = vmatpush1.msra.mxu0 0.0
    %2413 = vmatprep.subr.mxu0 0.0
    %2414 = vmatpush1.msra.mxu0 0.0
    %2415 = vmatprep.subr.mxu0 0.0
    %2416 = vmatpush1.msra.mxu0 0.0
    %2417 = vmatprep.subr.mxu0 0.0
    %2418 = vmatpush1.msra.mxu0 0.0
    %2419 = vmatprep.subr.mxu0 0.0
    %2420 = vmatpush1.msra.mxu0 0.0
    %2421 = vmatprep.subr.mxu0 0.0
    %2422 = vmatpush1.msra.mxu0 0.0
    %2423 = vmatprep.subr.mxu0 0.0
    %2424 = vmatpush1.msra.mxu0 0.0
    %2425 = vmatprep.subr.mxu0 0.0
    %2426 = vmatpush1.msra.mxu0 0.0
    %2427 = vmatprep.subr.mxu0 0.0
    %2428 = vmatpush1.msra.mxu0 0.0
    %2429 = vmatprep.subr.mxu0 0.0
    %2430 = vmatpush1.msra.mxu0 0.0
    %2431 = vmatprep.subr.mxu0 0.0
    %2432 = vmatpush1.msra.mxu0 0.0
    %2433 = vmatprep.subr.mxu0 0.0
    %2434 = vmatpush1.msra.mxu0 0.0
    %2435 = vmatprep.subr.mxu0 0.0
    %2436 = vmatpush1.msra.mxu0 0.0
    %2437 = vmatprep.subr.mxu0 0.0
    %2438 = vmatpush1.msra.mxu0 0.0
    %2439 = vmatprep.subr.mxu0 0.0
    %2440 = vmatpush1.msra.mxu0 0.0
    %2441 = vmatprep.subr.mxu0 0.0
    %2442 = vmatpush1.msra.mxu0 0.0
    %2443 = vmatprep.subr.mxu0 0.0
    %2444 = vmatpush1.msra.mxu0 0.0
    %2445 = vmatprep.mubr.f32.mxu0 0.0
    %2446 = vmatmul.mubr.f32.gmra.mrb[0].mxu0 %v1215
    %v2447 = vpop.f32.mrb[0].mxu0
    %v2448 = vadd.f32 0.0, %v2447
    %v2449 = vpop.f32.mrb[0].mxu0
    %2450 = vmatprep.mubr.f32.mxu0 0.0
    %2451 = vmatmul.mubr.f32.gmra.mrb[0].mxu0 %v1218
    %v2452 = vpop.f32.mrb[0].mxu0
    %v2453 = vadd.f32 0.0, %v2452
    %v2454 = vpop.f32.mrb[0].mxu0
    %2455 = vmatprep.mubr.f32.mxu0 0.0
    %2456 = vmatmul.mubr.f32.gmra.mrb[0].mxu0 %v1221
    %v2457 = vpop.f32.mrb[0].mxu0
    %v2458 = vadd.f32 0.0, %v2457
    %v2459 = vpop.f32.mrb[0].mxu0
    %2460 = vmatprep.mubr.f32.mxu0 0.0
    %2461 = vmatmul.mubr.f32.gmra.mrb[0].mxu0 %v1224
    %v2462 = vpop.f32.mrb[0].mxu0
    %v2463 = vadd.f32 0.0, %v2462
    %v2464 = vpop.f32.mrb[0].mxu0
    %2465 = vmatprep.mubr.f32.mxu0 0.0
    %2466 = vmatmul.mubr.f32.gmra.mrb[0].mxu0 %v1227
    %v2467 = vpop.f32.mrb[0].mxu0
    %v2468 = vadd.f32 0.0, %v2467
    %v2469 = vpop.f32.mrb[0].mxu0
    %2470 = vmatprep.mubr.f32.mxu0 0.0
    %2471 = vmatmul.mubr.f32.gmra.mrb[0].mxu0 %v1230
    %v2472 = vpop.f32.mrb[0].mxu0
    %v2473 = vadd.f32 0.0, %v2472
    %v2474 = vpop.f32.mrb[0].mxu0
    %2475 = vmatprep.mubr.f32.mxu0 0.0
    %2476 = vmatmul.mubr.f32.gmra.mrb[0].mxu0 %v1233
    %v2477 = vpop.f32.mrb[0].mxu0
    %v2478 = vadd.f32 0.0, %v2477
    %v2479 = vpop.f32.mrb[0].mxu0
    %2480 = vmatprep.mubr.f32.mxu0 0.0
    %2481 = vmatmul.mubr.f32.gmra.mrb[0].mxu0 %v1236
    %v2482 = vpop.f32.mrb[0].mxu0
    %v2483 = vadd.f32 0.0, %v2482
    %v2484 = vpop.f32.mrb[0].mxu0
    %2485 = vdwg.mxu0
    %v2486 = vmax.f32 %v2448, 1e-30
    %v2487 = vmax.f32 %v2453, 1e-30
    %v2488 = vmax.f32 %v2458, 1e-30
    %v2489 = vmax.f32 %v2463, 1e-30
    %v2490 = vmax.f32 %v2468, 1e-30
    %v2491 = vmax.f32 %v2473, 1e-30
    %v2492 = vmax.f32 %v2478, 1e-30
    %v2493 = vmax.f32 %v2483, 1e-30
    %v2494 = vrcp.pop %v2486
    %v2495 = vrcp.pop %v2487
    %v2496 = vrcp.pop %v2488
    %v2497 = vrcp.pop %v2489
    %v2498 = vrcp.pop %v2490
    %v2499 = vrcp.pop %v2491
    %v2500 = vrcp.pop %v2492
    %v2501 = vrcp.pop %v2493
    %v2502 = vmul.f32 %v2366, %v2494
    %v2503 = vmul.f32 %v2368, %v2495
    %v2504 = vmul.f32 %v2370, %v2496
    %v2505 = vmul.f32 %v2372, %v2497
    %v2506 = vmul.f32 %v2374, %v2498
    %v2507 = vmul.f32 %v2376, %v2499
    %v2508 = vmul.f32 %v2378, %v2500
    %v2509 = vmul.f32 %v2380, %v2501
    %v2511 = vsel %vm469, %v2502, 0
    %v2514 = vsel %vm469, %v2503, 0
    %v2517 = vsel %vm469, %v2504, 0
    %v2520 = vsel %vm469, %v2505, 0
    %v2523 = vsel %vm469, %v2506, 0
    %v2526 = vsel %vm469, %v2507, 0
    %v2529 = vsel %vm469, %v2508, 0
    %v2532 = vsel %vm469, %v2509, 0
    %2534 = vmatprep.subr.mxu0 0.0
    %2535 = vmatpush1.xpose.msra.mxu0 %v1392
    %2536 = vmatprep.subr.mxu0 0.0
    %2537 = vmatpush1.xpose.msra.mxu0 %v1395
    %2538 = vmatprep.subr.mxu0 0.0
    %2539 = vmatpush1.xpose.msra.mxu0 %v1398
    %2540 = vmatprep.subr.mxu0 0.0
    %2541 = vmatpush1.xpose.msra.mxu0 %v1401
    %2542 = vmatprep.subr.mxu0 0.0
    %2543 = vmatpush1.xpose.msra.mxu0 %v1404
    %2544 = vmatprep.subr.mxu0 0.0
    %2545 = vmatpush1.xpose.msra.mxu0 %v1407
    %2546 = vmatprep.subr.mxu0 0.0
    %2547 = vmatpush1.xpose.msra.mxu0 %v1410
    %2548 = vmatprep.subr.mxu0 0.0
    %2549 = vmatpush1.xpose.msra.mxu0 %v1413
    %2550 = vmatprep.subr.mxu0 0.0
    %2551 = vmatpush1.xpose.msra.mxu0 %v1416
    %2552 = vmatprep.subr.mxu0 0.0
    %2553 = vmatpush1.xpose.msra.mxu0 %v1419
    %2554 = vmatprep.subr.mxu0 0.0
    %2555 = vmatpush1.xpose.msra.mxu0 %v1422
    %2556 = vmatprep.subr.mxu0 0.0
    %2557 = vmatpush1.xpose.msra.mxu0 %v1425
    %2558 = vmatprep.subr.mxu0 0.0
    %2559 = vmatpush1.xpose.msra.mxu0 %v1428
    %2560 = vmatprep.subr.mxu0 0.0
    %2561 = vmatpush1.xpose.msra.mxu0 %v1431
    %2562 = vmatprep.subr.mxu0 0.0
    %2563 = vmatpush1.xpose.msra.mxu0 %v1434
    %2564 = vmatprep.subr.mxu0 0.0
    %2565 = vmatpush1.xpose.msra.mxu0 %v1437
    %2566 = vmatprep.subr.mxu0 0.0
    %2567 = vmatpush1.xpose.msra.mxu0 0.0
    %2568 = vmatprep.subr.mxu0 0.0
    %2569 = vmatpush1.xpose.msra.mxu0 0.0
    %2570 = vmatprep.subr.mxu0 0.0
    %2571 = vmatpush1.xpose.msra.mxu0 0.0
    %2572 = vmatprep.subr.mxu0 0.0
    %2573 = vmatpush1.xpose.msra.mxu0 0.0
    %2574 = vmatprep.subr.mxu0 0.0
    %2575 = vmatpush1.xpose.msra.mxu0 0.0
    %2576 = vmatprep.subr.mxu0 0.0
    %2577 = vmatpush1.xpose.msra.mxu0 0.0
    %2578 = vmatprep.subr.mxu0 0.0
    %2579 = vmatpush1.xpose.msra.mxu0 0.0
    %2580 = vmatprep.subr.mxu0 0.0
    %2581 = vmatpush1.xpose.msra.mxu0 0.0
    %2582 = vmatprep.subr.mxu0 0.0
    %2583 = vmatpush1.xpose.msra.mxu0 0.0
    %2584 = vmatprep.subr.mxu0 0.0
    %2585 = vmatpush1.xpose.msra.mxu0 0.0
    %2586 = vmatprep.subr.mxu0 0.0
    %2587 = vmatpush1.xpose.msra.mxu0 0.0
    %2588 = vmatprep.subr.mxu0 0.0
    %2589 = vmatpush1.xpose.msra.mxu0 0.0
    %2590 = vmatprep.subr.mxu0 0.0
    %2591 = vmatpush1.xpose.msra.mxu0 0.0
    %2592 = vmatprep.subr.mxu0 0.0
    %2593 = vmatpush1.xpose.msra.mxu0 0.0
    %2594 = vmatprep.subr.mxu0 0.0
    %2595 = vmatpush1.xpose.msra.mxu0 0.0
    %2596 = vmatprep.subr.mxu0 0.0
    %2597 = vmatpush1.xpose.msra.mxu0 0.0
    %2598 = vmatprep.mubr.f32.mxu0 0.0
    %2599 = vmatmul.mubr.f32.gmra.mrb[0].mxu0 %v2511
    %v2600 = vpop.f32.mrb[0].mxu0
    %v2601 = vadd.f32 0.0, %v2600
    %v2602 = vpop.f32.mrb[0].mxu0
    %2603 = vmatprep.mubr.f32.mxu0 0.0
    %2604 = vmatmul.mubr.f32.gmra.mrb[0].mxu0 %v2514
    %v2605 = vpop.f32.mrb[0].mxu0
    %v2606 = vadd.f32 0.0, %v2605
    %v2607 = vpop.f32.mrb[0].mxu0
    %2608 = vmatprep.mubr.f32.mxu0 0.0
    %2609 = vmatmul.mubr.f32.gmra.mrb[0].mxu0 %v2517
    %v2610 = vpop.f32.mrb[0].mxu0
    %v2611 = vadd.f32 0.0, %v2610
    %v2612 = vpop.f32.mrb[0].mxu0
    %2613 = vmatprep.mubr.f32.mxu0 0.0
    %2614 = vmatmul.mubr.f32.gmra.mrb[0].mxu0 %v2520
    %v2615 = vpop.f32.mrb[0].mxu0
    %v2616 = vadd.f32 0.0, %v2615
    %v2617 = vpop.f32.mrb[0].mxu0
    %2618 = vmatprep.mubr.f32.mxu0 0.0
    %2619 = vmatmul.mubr.f32.gmra.mrb[0].mxu0 %v2523
    %v2620 = vpop.f32.mrb[0].mxu0
    %v2621 = vadd.f32 0.0, %v2620
    %v2622 = vpop.f32.mrb[0].mxu0
    %2623 = vmatprep.mubr.f32.mxu0 0.0
    %2624 = vmatmul.mubr.f32.gmra.mrb[0].mxu0 %v2526
    %v2625 = vpop.f32.mrb[0].mxu0
    %v2626 = vadd.f32 0.0, %v2625
    %v2627 = vpop.f32.mrb[0].mxu0
    %2628 = vmatprep.mubr.f32.mxu0 0.0
    %2629 = vmatmul.mubr.f32.gmra.mrb[0].mxu0 %v2529
    %v2630 = vpop.f32.mrb[0].mxu0
    %v2631 = vadd.f32 0.0, %v2630
    %v2632 = vpop.f32.mrb[0].mxu0
    %2633 = vmatprep.mubr.f32.mxu0 0.0
    %2634 = vmatmul.mubr.f32.gmra.mrb[0].mxu0 %v2532
    %v2635 = vpop.f32.mrb[0].mxu0
    %v2636 = vadd.f32 0.0, %v2635
    %v2637 = vpop.f32.mrb[0].mxu0
    %2638 = vdwg.mxu0
    %v2639 = vmul.f32 %v2601, %v2215
    %v2640 = vmul.f32 %v2606, %v2216
    %v2641 = vmul.f32 %v2611, %v2217
    %v2642 = vmul.f32 %v2616, %v2218
    %v2643 = vmul.f32 %v2621, %v2219
    %v2644 = vmul.f32 %v2626, %v2220
    %v2645 = vmul.f32 %v2631, %v2221
    %v2646 = vmul.f32 %v2636, %v2222
    %2647 = vmatprep.subr.mxu0 0.0
    %2648 = vmatpush1.msra.mxu0 %v2639
    %2649 = vmatprep.subr.mxu0 0.0
    %2650 = vmatpush1.msra.mxu0 %v2640
    %2651 = vmatprep.subr.mxu0 0.0
    %2652 = vmatpush1.msra.mxu0 %v2641
    %2653 = vmatprep.subr.mxu0 0.0
    %2654 = vmatpush1.msra.mxu0 %v2642
    %2655 = vmatprep.subr.mxu0 0.0
    %2656 = vmatpush1.msra.mxu0 %v2643
    %2657 = vmatprep.subr.mxu0 0.0
    %2658 = vmatpush1.msra.mxu0 %v2644
    %2659 = vmatprep.subr.mxu0 0.0
    %2660 = vmatpush1.msra.mxu0 %v2645
    %2661 = vmatprep.subr.mxu0 0.0
    %2662 = vmatpush1.msra.mxu0 %v2646
    %2663 = vmatprep.subr.mxu0 0.0
    %2664 = vmatpush1.msra.mxu0 0.0
    %2665 = vmatprep.subr.mxu0 0.0
    %2666 = vmatpush1.msra.mxu0 0.0
    %2667 = vmatprep.subr.mxu0 0.0
    %2668 = vmatpush1.msra.mxu0 0.0
    %2669 = vmatprep.subr.mxu0 0.0
    %2670 = vmatpush1.msra.mxu0 0.0
    %2671 = vmatprep.subr.mxu0 0.0
    %2672 = vmatpush1.msra.mxu0 0.0
    %2673 = vmatprep.subr.mxu0 0.0
    %2674 = vmatpush1.msra.mxu0 0.0
    %2675 = vmatprep.subr.mxu0 0.0
    %2676 = vmatpush1.msra.mxu0 0.0
    %2677 = vmatprep.subr.mxu0 0.0
    %2678 = vmatpush1.msra.mxu0 0.0
    %2679 = vmatprep.subr.mxu0 0.0
    %2680 = vmatpush1.msra.mxu0 0.0
    %2681 = vmatprep.subr.mxu0 0.0
    %2682 = vmatpush1.msra.mxu0 0.0
    %2683 = vmatprep.subr.mxu0 0.0
    %2684 = vmatpush1.msra.mxu0 0.0
    %2685 = vmatprep.subr.mxu0 0.0
    %2686 = vmatpush1.msra.mxu0 0.0
    %2687 = vmatprep.subr.mxu0 0.0
    %2688 = vmatpush1.msra.mxu0 0.0
    %2689 = vmatprep.subr.mxu0 0.0
    %2690 = vmatpush1.msra.mxu0 0.0
    %2691 = vmatprep.subr.mxu0 0.0
    %2692 = vmatpush1.msra.mxu0 0.0
    %2693 = vmatprep.subr.mxu0 0.0
    %2694 = vmatpush1.msra.mxu0 0.0
    %2695 = vmatprep.subr.mxu0 0.0
    %2696 = vmatpush1.msra.mxu0 0.0
    %2697 = vmatprep.subr.mxu0 0.0
    %2698 = vmatpush1.msra.mxu0 0.0
    %2699 = vmatprep.subr.mxu0 0.0
    %2700 = vmatpush1.msra.mxu0 0.0
    %2701 = vmatprep.subr.mxu0 0.0
    %2702 = vmatpush1.msra.mxu0 0.0
    %2703 = vmatprep.subr.mxu0 0.0
    %2704 = vmatpush1.msra.mxu0 0.0
    %2705 = vmatprep.subr.mxu0 0.0
    %2706 = vmatpush1.msra.mxu0 0.0
    %2707 = vmatprep.subr.mxu0 0.0
    %2708 = vmatpush1.msra.mxu0 0.0
    %2709 = vmatprep.subr.mxu0 0.0
    %2710 = vmatpush1.msra.mxu0 0.0
    %2711 = vmatprep.mubr.f32.mxu0 0.0
    %2712 = vmatmul.mubr.f32.gmra.mrb[0].mxu0 %v1585
    %v2713 = vpop.f32.mrb[0].mxu0
    %v2714 = vadd.f32 %v1864, %v2713
    %v2715 = vpop.f32.mrb[0].mxu0
    %2716 = vmatprep.mubr.f32.mxu0 0.0
    %2717 = vmatmul.mubr.f32.gmra.mrb[0].mxu0 %v1588
    %v2718 = vpop.f32.mrb[0].mxu0
    %v2719 = vadd.f32 %v1870, %v2718
    %v2720 = vpop.f32.mrb[0].mxu0
    %2721 = vmatprep.mubr.f32.mxu0 0.0
    %2722 = vmatmul.mubr.f32.gmra.mrb[0].mxu0 %v1591
    %v2723 = vpop.f32.mrb[0].mxu0
    %v2724 = vadd.f32 %v1876, %v2723
    %v2725 = vpop.f32.mrb[0].mxu0
    %2726 = vmatprep.mubr.f32.mxu0 0.0
    %2727 = vmatmul.mubr.f32.gmra.mrb[0].mxu0 %v1594
    %v2728 = vpop.f32.mrb[0].mxu0
    %v2729 = vadd.f32 %v1882, %v2728
    %v2730 = vpop.f32.mrb[0].mxu0
    %2731 = vdwg.mxu0
    %v2732 = vmax.f32 %v2714, 0.0
    %v2733 = vmax.f32 %v2719, 0.0
    %v2734 = vmax.f32 %v2724, 0.0
    %v2735 = vmax.f32 %v2729, 0.0
    %v2736 = vld [vmem:[%s4] sm:$0xff]
    %v2737 = vld [vmem:[%s4 + $0x8] sm:$0xff]
    %v2738 = vld [vmem:[%s4 + $0x10] sm:$0xff]
    %v2739 = vld [vmem:[%s4 + $0x18] sm:$0xff]
    %v2740 = vld [vmem:[%s4 + $0x20] sm:$0xff]
    %v2741 = vld [vmem:[%s4 + $0x28] sm:$0xff]
    %v2742 = vld [vmem:[%s4 + $0x30] sm:$0xff]
    %v2743 = vld [vmem:[%s4 + $0x38] sm:$0xff]
    %v2744 = vld [vmem:[%s4 + $0x40] sm:$0xff]
    %v2745 = vld [vmem:[%s4 + $0x48] sm:$0xff]
    %v2746 = vld [vmem:[%s4 + $0x50] sm:$0xff]
    %v2747 = vld [vmem:[%s4 + $0x58] sm:$0xff]
    %v2748 = vld [vmem:[%s4 + $0x60] sm:$0xff]
    %v2749 = vld [vmem:[%s4 + $0x68] sm:$0xff]
    %v2750 = vld [vmem:[%s4 + $0x70] sm:$0xff]
    %v2751 = vld [vmem:[%s4 + $0x78] sm:$0xff]
    %v2752 = vld [vmem:[%s4 + $0x80] sm:$0x1]
    %v2753 = vld [vmem:[%s4 + $0x88] sm:$0xff]
    %v2754 = vld [vmem:[%s4 + $0x90] sm:$0xff]
    %v2755 = vld [vmem:[%s4 + $0x98] sm:$0x1]
    %v2756 = vlaneseq
    %v2757 = vshrl.u32 %v2756, 7
    %v2758 = vsub.s32 0, %v2757
    %v2759 = vrot.slane %v2752, %v2758
    %2760 = vmatprep.subr.mxu0 0.0
    %2761 = vmatpush1.msra.mxu0 %v2736
    %2762 = vmatprep.subr.mxu0 0.0
    %2763 = vmatpush1.msra.mxu0 %v2737
    %2764 = vmatprep.subr.mxu0 0.0
    %2765 = vmatpush1.msra.mxu0 %v2738
    %2766 = vmatprep.subr.mxu0 0.0
    %2767 = vmatpush1.msra.mxu0 %v2739
    %2768 = vmatprep.subr.mxu0 0.0
    %2769 = vmatpush1.msra.mxu0 %v2740
    %2770 = vmatprep.subr.mxu0 0.0
    %2771 = vmatpush1.msra.mxu0 %v2741
    %2772 = vmatprep.subr.mxu0 0.0
    %2773 = vmatpush1.msra.mxu0 %v2742
    %2774 = vmatprep.subr.mxu0 0.0
    %2775 = vmatpush1.msra.mxu0 %v2743
    %2776 = vmatprep.subr.mxu0 0.0
    %2777 = vmatpush1.msra.mxu0 %v2744
    %2778 = vmatprep.subr.mxu0 0.0
    %2779 = vmatpush1.msra.mxu0 %v2745
    %2780 = vmatprep.subr.mxu0 0.0
    %2781 = vmatpush1.msra.mxu0 %v2746
    %2782 = vmatprep.subr.mxu0 0.0
    %2783 = vmatpush1.msra.mxu0 %v2747
    %2784 = vmatprep.subr.mxu0 0.0
    %2785 = vmatpush1.msra.mxu0 %v2748
    %2786 = vmatprep.subr.mxu0 0.0
    %2787 = vmatpush1.msra.mxu0 %v2749
    %2788 = vmatprep.subr.mxu0 0.0
    %2789 = vmatpush1.msra.mxu0 %v2750
    %2790 = vmatprep.subr.mxu0 0.0
    %2791 = vmatpush1.msra.mxu0 %v2751
    %2792 = vmatprep.subr.mxu0 0.0
    %2793 = vmatpush1.msra.mxu0 0.0
    %2794 = vmatprep.subr.mxu0 0.0
    %2795 = vmatpush1.msra.mxu0 0.0
    %2796 = vmatprep.subr.mxu0 0.0
    %2797 = vmatpush1.msra.mxu0 0.0
    %2798 = vmatprep.subr.mxu0 0.0
    %2799 = vmatpush1.msra.mxu0 0.0
    %2800 = vmatprep.subr.mxu0 0.0
    %2801 = vmatpush1.msra.mxu0 0.0
    %2802 = vmatprep.subr.mxu0 0.0
    %2803 = vmatpush1.msra.mxu0 0.0
    %2804 = vmatprep.subr.mxu0 0.0
    %2805 = vmatpush1.msra.mxu0 0.0
    %2806 = vmatprep.subr.mxu0 0.0
    %2807 = vmatpush1.msra.mxu0 0.0
    %2808 = vmatprep.subr.mxu0 0.0
    %2809 = vmatpush1.msra.mxu0 0.0
    %2810 = vmatprep.subr.mxu0 0.0
    %2811 = vmatpush1.msra.mxu0 0.0
    %2812 = vmatprep.subr.mxu0 0.0
    %2813 = vmatpush1.msra.mxu0 0.0
    %2814 = vmatprep.subr.mxu0 0.0
    %2815 = vmatpush1.msra.mxu0 0.0
    %2816 = vmatprep.subr.mxu0 0.0
    %2817 = vmatpush1.msra.mxu0 0.0
    %2818 = vmatprep.subr.mxu0 0.0
    %2819 = vmatpush1.msra.mxu0 0.0
    %2820 = vmatprep.subr.mxu0 0.0
    %2821 = vmatpush1.msra.mxu0 0.0
    %2822 = vmatprep.subr.mxu0 0.0
    %2823 = vmatpush1.msra.mxu0 0.0
    %2824 = vmatprep.mubr.f32.mxu0 0.0
    %2825 = vmatmul.mubr.f32.gmra.mrb[0].mxu0 %v2732
    %v2826 = vpop.f32.mrb[0].mxu0
    %v2827 = vadd.f32 %v2759, %v2826
    %v2828 = vpop.f32.mrb[0].mxu0
    %2829 = vmatprep.mubr.f32.mxu0 0.0
    %2830 = vmatmul.mubr.f32.gmra.mrb[0].mxu0 %v2733
    %v2831 = vpop.f32.mrb[0].mxu0
    %v2832 = vadd.f32 %v2759, %v2831
    %v2833 = vpop.f32.mrb[0].mxu0
    %2834 = vmatprep.mubr.f32.mxu0 0.0
    %2835 = vmatmul.mubr.f32.gmra.mrb[0].mxu0 %v2734
    %v2836 = vpop.f32.mrb[0].mxu0
    %v2837 = vadd.f32 %v2759, %v2836
    %v2838 = vpop.f32.mrb[0].mxu0
    %2839 = vmatprep.mubr.f32.mxu0 0.0
    %2840 = vmatmul.mubr.f32.gmra.mrb[0].mxu0 %v2735
    %v2841 = vpop.f32.mrb[0].mxu0
    %v2842 = vadd.f32 %v2759, %v2841
    %v2843 = vpop.f32.mrb[0].mxu0
    %2844 = vdwg.mxu0
    %v2845 = vmax.f32 %v2827, 0.0
    %v2846 = vmax.f32 %v2832, 0.0
    %v2847 = vmax.f32 %v2837, 0.0
    %v2848 = vmax.f32 %v2842, 0.0
    %v2849 = vlaneseq
    %v2850 = vshrl.u32 %v2849, 7
    %v2851 = vsub.s32 0, %v2850
    %v2852 = vrot.slane %v2755, %v2851
    %vm2853 = vcmask 130048
    %v2855 = vsel %vm2853, %v2845, 0
    %v2858 = vsel %vm2853, %v2846, 0
    %v2861 = vsel %vm2853, %v2847, 0
    %v2864 = vsel %vm2853, %v2848, 0
    %2866 = vmatprep.subr.mxu0 0.0
    %2867 = vmatpush1.msra.mxu0 %v2753
    %2868 = vmatprep.subr.mxu0 0.0
    %2869 = vmatpush1.msra.mxu0 %v2754
    %2870 = vmatprep.subr.mxu0 0.0
    %2871 = vmatpush1.msra.mxu0 0.0
    %2872 = vmatprep.subr.mxu0 0.0
    %2873 = vmatpush1.msra.mxu0 0.0
    %2874 = vmatprep.subr.mxu0 0.0
    %2875 = vmatpush1.msra.mxu0 0.0
    %2876 = vmatprep.subr.mxu0 0.0
    %2877 = vmatpush1.msra.mxu0 0.0
    %2878 = vmatprep.subr.mxu0 0.0
    %2879 = vmatpush1.msra.mxu0 0.0
    %2880 = vmatprep.subr.mxu0 0.0
    %2881 = vmatpush1.msra.mxu0 0.0
    %2882 = vmatprep.subr.mxu0 0.0
    %2883 = vmatpush1.msra.mxu0 0.0
    %2884 = vmatprep.subr.mxu0 0.0
    %2885 = vmatpush1.msra.mxu0 0.0
    %2886 = vmatprep.subr.mxu0 0.0
    %2887 = vmatpush1.msra.mxu0 0.0
    %2888 = vmatprep.subr.mxu0 0.0
    %2889 = vmatpush1.msra.mxu0 0.0
    %2890 = vmatprep.subr.mxu0 0.0
    %2891 = vmatpush1.msra.mxu0 0.0
    %2892 = vmatprep.subr.mxu0 0.0
    %2893 = vmatpush1.msra.mxu0 0.0
    %2894 = vmatprep.subr.mxu0 0.0
    %2895 = vmatpush1.msra.mxu0 0.0
    %2896 = vmatprep.subr.mxu0 0.0
    %2897 = vmatpush1.msra.mxu0 0.0
    %2898 = vmatprep.subr.mxu0 0.0
    %2899 = vmatpush1.msra.mxu0 0.0
    %2900 = vmatprep.subr.mxu0 0.0
    %2901 = vmatpush1.msra.mxu0 0.0
    %2902 = vmatprep.subr.mxu0 0.0
    %2903 = vmatpush1.msra.mxu0 0.0
    %2904 = vmatprep.subr.mxu0 0.0
    %2905 = vmatpush1.msra.mxu0 0.0
    %2906 = vmatprep.subr.mxu0 0.0
    %2907 = vmatpush1.msra.mxu0 0.0
    %2908 = vmatprep.subr.mxu0 0.0
    %2909 = vmatpush1.msra.mxu0 0.0
    %2910 = vmatprep.subr.mxu0 0.0
    %2911 = vmatpush1.msra.mxu0 0.0
    %2912 = vmatprep.subr.mxu0 0.0
    %2913 = vmatpush1.msra.mxu0 0.0
    %2914 = vmatprep.subr.mxu0 0.0
    %2915 = vmatpush1.msra.mxu0 0.0
    %2916 = vmatprep.subr.mxu0 0.0
    %2917 = vmatpush1.msra.mxu0 0.0
    %2918 = vmatprep.subr.mxu0 0.0
    %2919 = vmatpush1.msra.mxu0 0.0
    %2920 = vmatprep.subr.mxu0 0.0
    %2921 = vmatpush1.msra.mxu0 0.0
    %2922 = vmatprep.subr.mxu0 0.0
    %2923 = vmatpush1.msra.mxu0 0.0
    %2924 = vmatprep.subr.mxu0 0.0
    %2925 = vmatpush1.msra.mxu0 0.0
    %2926 = vmatprep.subr.mxu0 0.0
    %2927 = vmatpush1.msra.mxu0 0.0
    %2928 = vmatprep.subr.mxu0 0.0
    %2929 = vmatpush1.msra.mxu0 0.0
    %2930 = vmatprep.mubr.f32.mxu0 0.0
    %2931 = vmatmul.mubr.f32.gmra.mrb[0].mxu0 %v2855
    %v2932 = vpop.f32.mrb[0].mxu0
    %v2933 = vadd.f32 %v2852, %v2932
    %v2934 = vpop.f32.mrb[0].mxu0
    %2935 = vmatprep.mubr.f32.mxu0 0.0
    %2936 = vmatmul.mubr.f32.gmra.mrb[0].mxu0 %v2858
    %v2937 = vpop.f32.mrb[0].mxu0
    %v2938 = vadd.f32 %v2852, %v2937
    %v2939 = vpop.f32.mrb[0].mxu0
    %2940 = vmatprep.mubr.f32.mxu0 0.0
    %2941 = vmatmul.mubr.f32.gmra.mrb[0].mxu0 %v2861
    %v2942 = vpop.f32.mrb[0].mxu0
    %v2943 = vadd.f32 %v2852, %v2942
    %v2944 = vpop.f32.mrb[0].mxu0
    %2945 = vmatprep.mubr.f32.mxu0 0.0
    %2946 = vmatmul.mubr.f32.gmra.mrb[0].mxu0 %v2864
    %v2947 = vpop.f32.mrb[0].mxu0
    %v2948 = vadd.f32 %v2852, %v2947
    %v2949 = vpop.f32.mrb[0].mxu0
    %2950 = vdwg.mxu0
    %vm2951 = vcmask 15360
    %2952 = vst.msk [vmem:[%s5] sm:$0xff] %vm2951, %v2933
    %2953 = vst.msk [vmem:[%s5 + $0x8] sm:$0xff] %vm2951, %v2938
    %2954 = vst.msk [vmem:[%s5 + $0x10] sm:$0xff] %vm2951, %v2943
    %2955 = vst.msk [vmem:[%s5 + $0x18] sm:$0xff] %vm2951, %v2948
    // Predicated region
    $region26: #{model_attention_multi_head.1} parent=1 // pred_check
      _
    $region27: #{model_attention_multi_head.1} parent=1 // pred_check_branch
      %2957 = sbr.rel (0) target = $region29
    $region28: #{model_attention_multi_head.1} parent=1 // pred_region
      _
    $region29: #{model_attention_multi_head.1} parent=1 // pred_fallthru
      _
    // Predicated region
    $region30: #{model_attention_multi_head.1} parent=1 // pred_check
      _
    $region31: #{model_attention_multi_head.1} parent=1 // pred_check_branch
      %2959 = sbr.rel (0) target = $region33
    $region32: #{model_attention_multi_head.1} parent=1 // pred_region
      _
    $region33: #{model_attention_multi_head.1} parent=1 // pred_fallthru
      _
    %2960 = vsyncpa [#allocation3], 1

</llo_original>
